<compile_context>
chip_gen: v6e
topology: v6e:2x2x1
jax: 0.10.0
libtpu: 0.0.40
codegen_flags: <defaults>
</compile_context>

<pallas_src>
import math

import jax
import jax.numpy as jnp
from jax.experimental import pallas as pl
from jax.experimental.pallas import tpu as pltpu

HIDDEN = 768          # fixed by the module (Linear(768, ...))
NUM_TAGS = 9          # e.g. NER tag set size
NT_PAD = 128          # pad tag dim to one full lane register (don't widen past 128)
TM_MAX = 512          # row-tile cap: amortizes per-step overhead, tiny VMEM cost


def _decoder_mlp_kernel(x_ref, w1_ref, b1_ref, w2_ref, b2_ref, w3_ref, b3_ref,
                        o_ref):
    """Fused Linear->ReLU->Linear->ReLU->Linear over one row-tile of tokens.

    x is cast to bf16 in-kernel (VPU work hidden under the MXU); matmul
    operands are bf16, accumulation is f32 (preferred_element_type), bias add
    and ReLU stay f32, the store is bf16 on a lane-dense 128-wide tile.
    """
    x = x_ref[...].astype(jnp.bfloat16)                            # (tm, 768) bf16
    h = jnp.dot(x, w1_ref[...], preferred_element_type=jnp.float32) + b1_ref[...]
    h = jnp.maximum(h, 0.0)                                        # ReLU(inplace=True), f32
    h = jnp.dot(h.astype(jnp.bfloat16), w2_ref[...],
                preferred_element_type=jnp.float32) + b2_ref[...]
    h = jnp.maximum(h, 0.0)
    y = jnp.dot(h.astype(jnp.bfloat16), w3_ref[...],
                preferred_element_type=jnp.float32) + b3_ref[...]
    o_ref[...] = y.astype(o_ref.dtype)                             # (tm, 128) bf16


def _choose_tm(m):
    """Row tile: big enough to amortize per-step overhead, but keep >= 2 grid
    steps when possible so v7x's two TensorCores both get work."""
    half = pl.cdiv(pl.cdiv(m, 2), 8) * 8      # ~M/2, rounded up to a sublane multiple
    return max(8, min(TM_MAX, half))


def _build_decoder_call(m, tm):
    """pallas_call for M tokens with row tile tm (grid = cdiv(M, tm); the
    boundary block, if any, is masked by Pallas — rows are independent)."""
    const = lambda i: (0, 0)        # weights/biases: same (only) block every grid step

    return pl.pallas_call(
        _decoder_mlp_kernel,
        out_shape=jax.ShapeDtypeStruct((m, NT_PAD), jnp.bfloat16),
        grid_spec=pltpu.PrefetchScalarGridSpec(
            num_scalar_prefetch=0,
            grid=(pl.cdiv(m, tm),),
            in_specs=[
                pl.BlockSpec((tm, HIDDEN), lambda i: (i, 0)),      # x tile (native dtype)
                pl.BlockSpec((HIDDEN, HIDDEN), const),             # W1 (in,out) bf16
                pl.BlockSpec((1, HIDDEN), const),                  # b1 f32
                pl.BlockSpec((HIDDEN, HIDDEN), const),             # W2
                pl.BlockSpec((1, HIDDEN), const),                  # b2
                pl.BlockSpec((HIDDEN, NT_PAD), const),             # W3 (lane-padded)
                pl.BlockSpec((1, NT_PAD), const),                  # b3 (lane-padded)
            ],
            out_specs=pl.BlockSpec((tm, NT_PAD), lambda i: (i, 0)),
        ),
        compiler_params=pltpu.CompilerParams(
            dimension_semantics=("parallel",)),                    # megacore-shardable
    )


def decoder_forward(x_flat, params):
    """x_flat: [M, 768] token features (f32 or bf16, cast happens in-kernel).
    params: pre-cast kernel params from prepare_params().
    Returns [M, NT_PAD] bf16 logits (padded lanes)."""
    m, h = x_flat.shape
    assert h == HIDDEN
    w1, b1, w2, b2, w3p, b3p = params
    tm = _choose_tm(m)
    return _build_decoder_call(m, tm)(x_flat, w1, b1, w2, b2, w3p, b3p)


def net_forward(hidden_states, params):
    """hidden_states: [B, S, 768] (stand-in for BERT out0).
    Returns [B, S, num_tags] bf16 logits."""
    b, s, h = hidden_states.shape
    x_flat = hidden_states.reshape(b * s, h)
    y = decoder_forward(x_flat, params)
    # Downstream consumers could read the padded (M, 128) logits directly; the
    # slice is kept here only to match the PyTorch module's output shape.
    return y[:, :NUM_TAGS].reshape(b, s, NUM_TAGS)


def _torch_linear_init(key, fan_in, fan_out):
    """Deterministic init matching nn.Linear defaults (uniform +/- 1/sqrt(fan_in)).

    Returns W transposed to (fan_in, fan_out) for x @ W, and b of shape (1, fan_out).
    """
    kw, kb = jax.random.split(key)
    bound = 1.0 / math.sqrt(fan_in)
    w = jax.random.uniform(kw, (fan_in, fan_out), jnp.float32, -bound, bound)
    b = jax.random.uniform(kb, (1, fan_out), jnp.float32, -bound, bound)
    return w, b


def prepare_params(w1, b1, w2, b2, w3, b3):
    """One-time cast/pad of decoder params to their kernel dtypes/layouts:
    bf16 weights (MXU operands), f32 biases, final projection padded to 128 lanes."""
    w3p = jnp.zeros((HIDDEN, NT_PAD), jnp.float32).at[:, :NUM_TAGS].set(w3)
    b3p = jnp.zeros((1, NT_PAD), jnp.float32).at[:, :NUM_TAGS].set(b3)
    return (
        w1.astype(jnp.bfloat16), b1.astype(jnp.float32),
        w2.astype(jnp.bfloat16), b2.astype(jnp.float32),
        w3p.astype(jnp.bfloat16), b3p.astype(jnp.float32),
    )


if __name__ == "__main__":
    key = jax.random.PRNGKey(0)
    k_x, k1, k2, k3 = jax.random.split(key, 4)

    # Small shapes: batch=2, seq=8; hidden fixed at 768 by the module.
    B, S = 2, 8
    hidden_states = jax.random.normal(k_x, (B, S, HIDDEN), jnp.float32)

    # Deterministic parameter init (decoder = the only trainable part of Net).
    w1, b1 = _torch_linear_init(k1, HIDDEN, HIDDEN)
    w2, b2 = _torch_linear_init(k2, HIDDEN, HIDDEN)
    w3, b3 = _torch_linear_init(k3, HIDDEN, NUM_TAGS)
    params = prepare_params(w1, b1, w2, b2, w3, b3)

    out = net_forward(hidden_states, params)
    out = jax.block_until_ready(out)
    assert out.shape == (B, S, NUM_TAGS)

    # Plain-JAX reference following the same quantization path
    # (bf16 matmul operands, f32 accumulate, f32 bias/ReLU).
    bf = jnp.bfloat16
    x = hidden_states.reshape(B * S, HIDDEN).astype(bf)
    h = jnp.maximum(
        jnp.dot(x, w1.astype(bf), preferred_element_type=jnp.float32) + b1, 0.0)
    h = jnp.maximum(
        jnp.dot(h.astype(bf), w2.astype(bf), preferred_element_type=jnp.float32) + b2, 0.0)
    ref = (jnp.dot(h.astype(bf), w3.astype(bf), preferred_element_type=jnp.float32)
           + b3).reshape(B, S, NUM_TAGS)

    out_f32 = out.astype(jnp.float32)
    assert jnp.allclose(out_f32, ref, atol=2e-2, rtol=2e-2), float(
        jnp.max(jnp.abs(out_f32 - ref)))

    print("KERNEL_OK")
</pallas_src>

<mosaic_0001>
module attributes {stable_mosaic.version = 11 : i64} {
  func.func @_decoder_mlp_kernel(%arg0: i32, %arg1: memref<8x768xf32, #tpu.memory_space<vmem>>, %arg2: memref<768x768xbf16, #tpu.memory_space<vmem>>, %arg3: memref<1x768xf32, #tpu.memory_space<vmem>>, %arg4: memref<768x768xbf16, #tpu.memory_space<vmem>>, %arg5: memref<1x768xf32, #tpu.memory_space<vmem>>, %arg6: memref<768x128xbf16, #tpu.memory_space<vmem>>, %arg7: memref<1x128xf32, #tpu.memory_space<vmem>>, %arg8: memref<8x128xbf16, #tpu.memory_space<vmem>>) attributes {dimension_semantics = [#tpu.dimension_semantics<parallel>], iteration_bounds = array<i64: 2>, scalar_prefetch = 0 : i64, scratch_operands = 0 : i64, tpu.core_type = #tpu.core_type<tc>, window_params = [{transform_indices = @transform_0, window_bounds = array<i64: 8, 768>}, {pipeline_mode = #tpu.pipeline_mode<synchronous>, transform_indices = @transform_1, window_bounds = array<i64: 768, 768>}, {pipeline_mode = #tpu.pipeline_mode<synchronous>, transform_indices = @transform_2, window_bounds = array<i64: 1, 768>}, {pipeline_mode = #tpu.pipeline_mode<synchronous>, transform_indices = @transform_3, window_bounds = array<i64: 768, 768>}, {pipeline_mode = #tpu.pipeline_mode<synchronous>, transform_indices = @transform_4, window_bounds = array<i64: 1, 768>}, {pipeline_mode = #tpu.pipeline_mode<synchronous>, transform_indices = @transform_5, window_bounds = array<i64: 768, 128>}, {pipeline_mode = #tpu.pipeline_mode<synchronous>, transform_indices = @transform_6, window_bounds = array<i64: 1, 128>}, {transform_indices = @transform_7, window_bounds = array<i64: 8, 128>}]} {
    %c0 = arith.constant 0 : index
    %c0_0 = arith.constant 0 : index
    %0 = vector.load %arg1[%c0, %c0_0] : memref<8x768xf32, #tpu.memory_space<vmem>>, vector<8x768xf32>
    %1 = arith.truncf %0 : vector<8x768xf32> to vector<8x768xbf16>
    %c0_1 = arith.constant 0 : index
    %c0_2 = arith.constant 0 : index
    %2 = vector.load %arg2[%c0_1, %c0_2] : memref<768x768xbf16, #tpu.memory_space<vmem>>, vector<768x768xbf16>
    %cst = arith.constant dense<0.000000e+00> : vector<8x768xf32>
    %3 = tpu.matmul %1, %2, %cst {dimension_numbers = #tpu.dot_dimension_numbers<[1], [0], [0], [1], [0, 0, 1, 1], [], []>} : vector<8x768xbf16>, vector<768x768xbf16>, vector<8x768xf32> -> vector<8x768xf32>
    %c0_3 = arith.constant 0 : index
    %c0_4 = arith.constant 0 : index
    %4 = vector.load %arg3[%c0_3, %c0_4] : memref<1x768xf32, #tpu.memory_space<vmem>>, vector<1x768xf32>
    %5 = vector.broadcast %4 : vector<1x768xf32> to vector<8x768xf32>
    %6 = arith.addf %3, %5 : vector<8x768xf32>
    %cst_5 = arith.constant 0.000000e+00 : f32
    %7 = vector.broadcast %cst_5 : f32 to vector<8x768xf32>
    %8 = arith.maximumf %6, %7 : vector<8x768xf32>
    %9 = arith.truncf %8 : vector<8x768xf32> to vector<8x768xbf16>
    %c0_6 = arith.constant 0 : index
    %c0_7 = arith.constant 0 : index
    %10 = vector.load %arg4[%c0_6, %c0_7] : memref<768x768xbf16, #tpu.memory_space<vmem>>, vector<768x768xbf16>
    %cst_8 = arith.constant dense<0.000000e+00> : vector<8x768xf32>
    %11 = tpu.matmul %9, %10, %cst_8 {dimension_numbers = #tpu.dot_dimension_numbers<[1], [0], [0], [1], [0, 0, 1, 1], [], []>} : vector<8x768xbf16>, vector<768x768xbf16>, vector<8x768xf32> -> vector<8x768xf32>
    %c0_9 = arith.constant 0 : index
    %c0_10 = arith.constant 0 : index
    %12 = vector.load %arg5[%c0_9, %c0_10] : memref<1x768xf32, #tpu.memory_space<vmem>>, vector<1x768xf32>
    %13 = vector.broadcast %12 : vector<1x768xf32> to vector<8x768xf32>
    %14 = arith.addf %11, %13 : vector<8x768xf32>
    %cst_11 = arith.constant 0.000000e+00 : f32
    %15 = vector.broadcast %cst_11 : f32 to vector<8x768xf32>
    %16 = arith.maximumf %14, %15 : vector<8x768xf32>
    %17 = arith.truncf %16 : vector<8x768xf32> to vector<8x768xbf16>
    %c0_12 = arith.constant 0 : index
    %c0_13 = arith.constant 0 : index
    %18 = vector.load %arg6[%c0_12, %c0_13] : memref<768x128xbf16, #tpu.memory_space<vmem>>, vector<768x128xbf16>
    %cst_14 = arith.constant dense<0.000000e+00> : vector<8x128xf32>
    %19 = tpu.matmul %17, %18, %cst_14 {dimension_numbers = #tpu.dot_dimension_numbers<[1], [0], [0], [1], [0, 0, 1, 1], [], []>} : vector<8x768xbf16>, vector<768x128xbf16>, vector<8x128xf32> -> vector<8x128xf32>
    %c0_15 = arith.constant 0 : index
    %c0_16 = arith.constant 0 : index
    %20 = vector.load %arg7[%c0_15, %c0_16] : memref<1x128xf32, #tpu.memory_space<vmem>>, vector<1x128xf32>
    %21 = vector.broadcast %20 : vector<1x128xf32> to vector<8x128xf32>
    %22 = arith.addf %19, %21 : vector<8x128xf32>
    %23 = arith.truncf %22 : vector<8x128xf32> to vector<8x128xbf16>
    %c0_17 = arith.constant 0 : index
    %c0_18 = arith.constant 0 : index
    %24 = vector.load %arg8[%c0_17, %c0_18] : memref<8x128xbf16, #tpu.memory_space<vmem>>, vector<8x128xbf16>
    tpu.vector_store %arg8[%c0_17, %c0_18], %23 {strides = array<i32>} : memref<8x128xbf16, #tpu.memory_space<vmem>>, vector<8x128xbf16>,
    return
  }
  func.func @transform_0(%arg0: i32) -> (i32, i32) {
    %c0_i32 = arith.constant 0 : i32
    %c0_i32_0 = arith.constant 0 : i32
    return %arg0, %c0_i32 : i32, i32
  }
  func.func @transform_1(%arg0: i32) -> (i32, i32) {
    %c0_i32 = arith.constant 0 : i32
    %c0_i32_0 = arith.constant 0 : i32
    %c0_i32_1 = arith.constant 0 : i32
    return %c0_i32, %c0_i32_0 : i32, i32
  }
  func.func @transform_2(%arg0: i32) -> (i32, i32) {
    %c0_i32 = arith.constant 0 : i32
    %c0_i32_0 = arith.constant 0 : i32
    %c0_i32_1 = arith.constant 0 : i32
    return %c0_i32, %c0_i32_0 : i32, i32
  }
  func.func @transform_3(%arg0: i32) -> (i32, i32) {
    %c0_i32 = arith.constant 0 : i32
    %c0_i32_0 = arith.constant 0 : i32
    %c0_i32_1 = arith.constant 0 : i32
    return %c0_i32, %c0_i32_0 : i32, i32
  }
  func.func @transform_4(%arg0: i32) -> (i32, i32) {
    %c0_i32 = arith.constant 0 : i32
    %c0_i32_0 = arith.constant 0 : i32
    %c0_i32_1 = arith.constant 0 : i32
    return %c0_i32, %c0_i32_0 : i32, i32
  }
  func.func @transform_5(%arg0: i32) -> (i32, i32) {
    %c0_i32 = arith.constant 0 : i32
    %c0_i32_0 = arith.constant 0 : i32
    %c0_i32_1 = arith.constant 0 : i32
    return %c0_i32, %c0_i32_0 : i32, i32
  }
  func.func @transform_6(%arg0: i32) -> (i32, i32) {
    %c0_i32 = arith.constant 0 : i32
    %c0_i32_0 = arith.constant 0 : i32
    %c0_i32_1 = arith.constant 0 : i32
    return %c0_i32, %c0_i32_0 : i32, i32
  }
  func.func @transform_7(%arg0: i32) -> (i32, i32) {
    %c0_i32 = arith.constant 0 : i32
    %c0_i32_0 = arith.constant 0 : i32
    return %arg0, %c0_i32 : i32, i32
  }
}

</mosaic_0001>

<llo_original>
// kernel: tpu_custom_call.1
$region0: #{tpu_custom_call.1}
  #allocation0 [shape = 'u32[]', space=smem, size = 0x4, offset = 0x4, fixed_abs, tag = 'smem constant byte address 0x4 - core index']
  #allocation1 [shape = 'u32[144,128]{1,0:T(1,128)}', space=vmem, size = 0x12000, scoped, tag = 'internal scratch']
  %s0 = inlined_call_operand.hbm [shape: f32[16,768], index: 0, kind: input, shape index: {}]
  %s1 = inlined_call_operand.hbm [shape: bf16[768,768], index: 1, kind: input, shape index: {}]
  %s2 = inlined_call_operand.hbm [shape: f32[1,768], index: 2, kind: input, shape index: {}]
  %s3 = inlined_call_operand.hbm [shape: bf16[768,768], index: 3, kind: input, shape index: {}]
  %s4 = inlined_call_operand.hbm [shape: f32[1,768], index: 4, kind: input, shape index: {}]
  %s5 = inlined_call_operand.hbm [shape: bf16[768,128], index: 5, kind: input, shape index: {}]
  %s6 = inlined_call_operand.hbm [shape: f32[1,128], index: 6, kind: input, shape index: {}]
  %s7 = inlined_call_operand.hbm [shape: bf16[16,128], index: 7, kind: output, shape index: {}]
  %s8 = sld [smem:[#allocation0]]
  $region89: #{tpu_custom_call.1} parent=0
    _
  %s10 = ssub.s32 1, %s8
  %s11 = scalar_select 0, %s10, %s8
  $region1: #{tpu_custom_call.1} parent=0
    #allocation2 [shape = 'u8[49152]{0}', space=vmem, size = 0xc000, scoped, tag = 'input window, operand 0']
    #allocation3 [shape = 's32[2]{0}', space=sflag, size = 0x8, scoped, tag = 'scoped memory for tpu_custom_call.1']
    #allocation4 [shape = 's32[2]{0}', space=sflag, size = 0x8, scoped, tag = 'scoped memory for tpu_custom_call.1']
    #allocation5 [shape = 'u8[1179648]{0}', space=vmem, size = 0x120000, scoped, tag = 'input window, operand 1, single buffered']
    #allocation6 [shape = 's32[1]{0}', space=sflag, size = 0x4, scoped, tag = 'scoped memory for tpu_custom_call.1']
    #allocation7 [shape = 'u8[3072]{0}', space=vmem, size = 0xc00, scoped, tag = 'input window, operand 2, single buffered']
    #allocation8 [shape = 'u8[1179648]{0}', space=vmem, size = 0x120000, scoped, tag = 'input window, operand 3, single buffered']
    #allocation9 [shape = 's32[1]{0}', space=sflag, size = 0x4, scoped, tag = 'scoped memory for tpu_custom_call.1']
    #allocation10 [shape = 'u8[3072]{0}', space=vmem, size = 0xc00, scoped, tag = 'input window, operand 4, single buffered']
    #allocation11 [shape = 'u8[196608]{0}', space=vmem, size = 0x30000, scoped, tag = 'input window, operand 5, single buffered']
    #allocation12 [shape = 's32[1]{0}', space=sflag, size = 0x4, scoped, tag = 'scoped memory for tpu_custom_call.1']
    #allocation13 [shape = 'u8[512]{0}', space=vmem, size = 0x400, scoped, tag = 'input window, operand 6, single buffered']
    #allocation14 [shape = 'u8[4096]{0}', space=vmem, size = 0x1000, scoped, tag = 'output window, operand 0']
    %12 = vsyncpa [#allocation3], 0
    %s13 = scalar_lea.sflag [#allocation3], 1
    %14 = vsyncpa %s13, 0
    %15 = vsyncpa [#allocation6], 0
    %16 = vsyncpa [#allocation9], 0
    %17 = vsyncpa [#allocation12], 0
    %18 = vsyncpa [#allocation4], 0
    %s19 = scalar_lea.sflag [#allocation4], 1
    %20 = vsyncpa %s19, 0
    loop: start=0, step=1, limit=4
    $region2: #{tpu_custom_call.1} parent=1 // loop_pre_header
      _
    $region3: #{tpu_custom_call.1} parent=1 // loop_header
      %s22 = sphi 0, %s26
      %p23 = scmp.ge.s32.totalorder %s22, 4
      %s32 = sphi 0, %s34
      %s35 = sphi 0, %s32
      %s36 = sphi 0, %s35
      %s52 = sphi 0, %s36
      %s56 = sphi 0, %s56
      %s58 = sphi 0, %s56
      %s59 = sphi 0, %s58
      %s73 = sphi 0, %s59
      %s77 = sphi 0, %s77
      %s79 = sphi 0, %s77
      %s80 = sphi 0, %s79
      %s94 = sphi 0, %s80
      %s98 = sphi 0, %s98
      %s100 = sphi 0, %s98
      %s101 = sphi 0, %s100
      %s115 = sphi 0, %s101
      %s119 = sphi 0, %s119
      %s121 = sphi 0, %s119
      %s122 = sphi 0, %s121
      %s136 = sphi 0, %s122
      %s140 = sphi 0, %s140
      %s142 = sphi 0, %s140
      %s143 = sphi 0, %s142
      %s157 = sphi 0, %s143
      %s161 = sphi 0, %s161
      %s163 = sphi 0, %s161
      %s164 = sphi 0, %s163
      %s178 = sphi 0, %s164
      %s184 = sphi 0, %s186
      %s187 = sphi 0, %s184
      %s188 = sphi 0, %s187
      %s204 = sphi 0, %s188
    $region4: #{tpu_custom_call.1} parent=1 // loop_header_branch
      %25 = sbr.rel (%p23) target = $region8
    $region5: #{tpu_custom_call.1} parent=1 // loop_body
      %s27 = ssub.s32 %s22, 1
      %s28 = ssub.s32 %s22, 2
      %s29 = sadd.s32 %s22, 1
      %s30 = ssub.s32 %s22, %s29
      %p31 = scmp.eq.s32.totalorder %s30, 0
      %s33 = sadd.s32 %s32, 1
      %s34 = scalar_select %p31, %s32, %s33
      %p37 = pneg %p31
      %p38 = scmp.eq.s32.totalorder %s22, 1
      %p39 = por %p37, %p38
      %p40 = scmp.ne.s32.totalorder %s32, %s35
      %p41 = scmp.eq.s32.totalorder %s22, 0
      %p42 = por %p40, %p41
      %p43 = scmp.ne.s32.totalorder %s32, %s35
      %p44 = scmp.eq.s32.totalorder %s27, 1
      %p45 = por %p43, %p44
      %p46 = scmp.ne.s32.totalorder %s35, %s36
      %p47 = scmp.eq.s32.totalorder %s27, 0
      %p48 = por %p46, %p47
      %p49 = scmp.ne.s32.totalorder %s35, %s36
      %p50 = scmp.eq.s32.totalorder %s28, 1
      %p51 = por %p49, %p50
      %p53 = scmp.ne.s32.totalorder %s36, %s52
      %p54 = scmp.eq.s32.totalorder %s28, 0
      %p55 = por %p53, %p54
      %s57 = sadd.s32 %s56, 1
      %p60 = scmp.eq.s32.totalorder %s22, 1
      %p61 = scmp.ne.s32.totalorder %s56, %s58
      %p62 = scmp.eq.s32.totalorder %s22, 0
      %p63 = por %p61, %p62
      %p64 = scmp.ne.s32.totalorder %s56, %s58
      %p65 = scmp.eq.s32.totalorder %s27, 1
      %p66 = por %p64, %p65
      %p67 = scmp.ne.s32.totalorder %s58, %s59
      %p68 = scmp.eq.s32.totalorder %s27, 0
      %p69 = por %p67, %p68
      %p70 = scmp.ne.s32.totalorder %s58, %s59
      %p71 = scmp.eq.s32.totalorder %s28, 1
      %p72 = por %p70, %p71
      %p74 = scmp.ne.s32.totalorder %s59, %s73
      %p75 = scmp.eq.s32.totalorder %s28, 0
      %p76 = por %p74, %p75
      %s78 = sadd.s32 %s77, 1
      %p81 = scmp.eq.s32.totalorder %s22, 1
      %p82 = scmp.ne.s32.totalorder %s77, %s79
      %p83 = scmp.eq.s32.totalorder %s22, 0
      %p84 = por %p82, %p83
      %p85 = scmp.ne.s32.totalorder %s77, %s79
      %p86 = scmp.eq.s32.totalorder %s27, 1
      %p87 = por %p85, %p86
      %p88 = scmp.ne.s32.totalorder %s79, %s80
      %p89 = scmp.eq.s32.totalorder %s27, 0
      %p90 = por %p88, %p89
      %p91 = scmp.ne.s32.totalorder %s79, %s80
      %p92 = scmp.eq.s32.totalorder %s28, 1
      %p93 = por %p91, %p92
      %p95 = scmp.ne.s32.totalorder %s80, %s94
      %p96 = scmp.eq.s32.totalorder %s28, 0
      %p97 = por %p95, %p96
      %s99 = sadd.s32 %s98, 1
      %p102 = scmp.eq.s32.totalorder %s22, 1
      %p103 = scmp.ne.s32.totalorder %s98, %s100
      %p104 = scmp.eq.s32.totalorder %s22, 0
      %p105 = por %p103, %p104
      %p106 = scmp.ne.s32.totalorder %s98, %s100
      %p107 = scmp.eq.s32.totalorder %s27, 1
      %p108 = por %p106, %p107
      %p109 = scmp.ne.s32.totalorder %s100, %s101
      %p110 = scmp.eq.s32.totalorder %s27, 0
      %p111 = por %p109, %p110
      %p112 = scmp.ne.s32.totalorder %s100, %s101
      %p113 = scmp.eq.s32.totalorder %s28, 1
      %p114 = por %p112, %p113
      %p116 = scmp.ne.s32.totalorder %s101, %s115
      %p117 = scmp.eq.s32.totalorder %s28, 0
      %p118 = por %p116, %p117
      %s120 = sadd.s32 %s119, 1
      %p123 = scmp.eq.s32.totalorder %s22, 1
      %p124 = scmp.ne.s32.totalorder %s119, %s121
      %p125 = scmp.eq.s32.totalorder %s22, 0
      %p126 = por %p124, %p125
      %p127 = scmp.ne.s32.totalorder %s119, %s121
      %p128 = scmp.eq.s32.totalorder %s27, 1
      %p129 = por %p127, %p128
      %p130 = scmp.ne.s32.totalorder %s121, %s122
      %p131 = scmp.eq.s32.totalorder %s27, 0
      %p132 = por %p130, %p131
      %p133 = scmp.ne.s32.totalorder %s121, %s122
      %p134 = scmp.eq.s32.totalorder %s28, 1
      %p135 = por %p133, %p134
      %p137 = scmp.ne.s32.totalorder %s122, %s136
      %p138 = scmp.eq.s32.totalorder %s28, 0
      %p139 = por %p137, %p138
      %s141 = sadd.s32 %s140, 1
      %p144 = scmp.eq.s32.totalorder %s22, 1
      %p145 = scmp.ne.s32.totalorder %s140, %s142
      %p146 = scmp.eq.s32.totalorder %s22, 0
      %p147 = por %p145, %p146
      %p148 = scmp.ne.s32.totalorder %s140, %s142
      %p149 = scmp.eq.s32.totalorder %s27, 1
      %p150 = por %p148, %p149
      %p151 = scmp.ne.s32.totalorder %s142, %s143
      %p152 = scmp.eq.s32.totalorder %s27, 0
      %p153 = por %p151, %p152
      %p154 = scmp.ne.s32.totalorder %s142, %s143
      %p155 = scmp.eq.s32.totalorder %s28, 1
      %p156 = por %p154, %p155
      %p158 = scmp.ne.s32.totalorder %s143, %s157
      %p159 = scmp.eq.s32.totalorder %s28, 0
      %p160 = por %p158, %p159
      %s162 = sadd.s32 %s161, 1
      %p165 = scmp.eq.s32.totalorder %s22, 1
      %p166 = scmp.ne.s32.totalorder %s161, %s163
      %p167 = scmp.eq.s32.totalorder %s22, 0
      %p168 = por %p166, %p167
      %p169 = scmp.ne.s32.totalorder %s161, %s163
      %p170 = scmp.eq.s32.totalorder %s27, 1
      %p171 = por %p169, %p170
      %p172 = scmp.ne.s32.totalorder %s163, %s164
      %p173 = scmp.eq.s32.totalorder %s27, 0
      %p174 = por %p172, %p173
      %p175 = scmp.ne.s32.totalorder %s163, %s164
      %p176 = scmp.eq.s32.totalorder %s28, 1
      %p177 = por %p175, %p176
      %p179 = scmp.ne.s32.totalorder %s164, %s178
      %p180 = scmp.eq.s32.totalorder %s28, 0
      %p181 = por %p179, %p180
      %s182 = ssub.s32 %s22, %s29
      %p183 = scmp.eq.s32.totalorder %s182, 0
      %s185 = sadd.s32 %s184, 1
      %s186 = scalar_select %p183, %s184, %s185
      %p189 = pneg %p183
      %p190 = scmp.eq.s32.totalorder %s22, 1
      %p191 = por %p189, %p190
      %p192 = scmp.ne.s32.totalorder %s184, %s187
      %p193 = scmp.eq.s32.totalorder %s22, 0
      %p194 = por %p192, %p193
      %p195 = scmp.ne.s32.totalorder %s184, %s187
      %p196 = scmp.eq.s32.totalorder %s27, 1
      %p197 = por %p195, %p196
      %p198 = scmp.ne.s32.totalorder %s187, %s188
      %p199 = scmp.eq.s32.totalorder %s27, 0
      %p200 = por %p198, %p199
      %p201 = scmp.ne.s32.totalorder %s187, %s188
      %p202 = scmp.eq.s32.totalorder %s28, 1
      %p203 = por %p201, %p202
      %p205 = scmp.ne.s32.totalorder %s188, %s204
      %p206 = scmp.eq.s32.totalorder %s28, 0
      %p207 = por %p205, %p206
      %p208 = scmp.le.s32.totalorder 1, %s22
      %p209 = scmp.lt.s32.totalorder %s22, 3
      %p210 = pnand %p208, %p209
      %p211 = pneg %p210
      // Predicated region
      $region9: #{tpu_custom_call.1} parent=5 // pred_check
        _
      $region10: #{tpu_custom_call.1} parent=5 // pred_check_branch
        %213 = sbr.rel (%p210) target = $region12
      $region11: #{tpu_custom_call.1} parent=5 // pred_region
        %s214 = ssub.s32 %s22, 1
        // Predicated region
        $region13: #{tpu_custom_call.1} parent=11 // pred_check
          %p215 = pneg %p69
        $region14: #{tpu_custom_call.1} parent=11 // pred_check_branch
          %217 = sbr.rel (%p215) target = $region16
        $region15: #{tpu_custom_call.1} parent=11 // pred_region
          %s219 = ssub.s32 36864, 36864
          %220 = vsyncadd [#allocation6], %s219
          %s221 = sshll.u32 [#allocation5], 4
          %s222 = int_to_ptr.vmem [resolvable:$true] %s221
          %227 = dma.hbm_to_vmem [thread:$0]  %s1, 36864, %s222, [#allocation6], 384, 384, 24
        $region16: #{tpu_custom_call.1} parent=11 // pred_fallthru
          _
        // Predicated region
        $region17: #{tpu_custom_call.1} parent=11 // pred_check
          %p228 = pneg %p90
        $region18: #{tpu_custom_call.1} parent=11 // pred_check_branch
          %230 = sbr.rel (%p228) target = $region20
        $region19: #{tpu_custom_call.1} parent=11 // pred_region
          %s232 = ssub.s32 96, 96
          %233 = vsyncadd [#allocation6], %s232
          %s235 = sshll.u32 [#allocation7], 4
          %s236 = int_to_ptr.vmem [resolvable:$true] %s235
          %238 = dma.hbm_to_vmem [thread:$0]  %s2, 96, %s236, [#allocation6]
        $region20: #{tpu_custom_call.1} parent=11 // pred_fallthru
          _
        // Predicated region
        $region21: #{tpu_custom_call.1} parent=11 // pred_check
          %p239 = pneg %p111
        $region22: #{tpu_custom_call.1} parent=11 // pred_check_branch
          %241 = sbr.rel (%p239) target = $region24
        $region23: #{tpu_custom_call.1} parent=11 // pred_region
          %s243 = ssub.s32 36864, 36864
          %244 = vsyncadd [#allocation9], %s243
          %s245 = sshll.u32 [#allocation8], 4
          %s246 = int_to_ptr.vmem [resolvable:$true] %s245
          %251 = dma.hbm_to_vmem [thread:$0]  %s3, 36864, %s246, [#allocation9], 384, 384, 24
        $region24: #{tpu_custom_call.1} parent=11 // pred_fallthru
          _
        // Predicated region
        $region25: #{tpu_custom_call.1} parent=11 // pred_check
          %p252 = pneg %p132
        $region26: #{tpu_custom_call.1} parent=11 // pred_check_branch
          %254 = sbr.rel (%p252) target = $region28
        $region27: #{tpu_custom_call.1} parent=11 // pred_region
          %s256 = ssub.s32 96, 96
          %257 = vsyncadd [#allocation9], %s256
          %s259 = sshll.u32 [#allocation10], 4
          %s260 = int_to_ptr.vmem [resolvable:$true] %s259
          %262 = dma.hbm_to_vmem [thread:$0]  %s4, 96, %s260, [#allocation9]
        $region28: #{tpu_custom_call.1} parent=11 // pred_fallthru
          _
        // Predicated region
        $region29: #{tpu_custom_call.1} parent=11 // pred_check
          %p263 = pneg %p153
        $region30: #{tpu_custom_call.1} parent=11 // pred_check_branch
          %265 = sbr.rel (%p263) target = $region32
        $region31: #{tpu_custom_call.1} parent=11 // pred_region
          %s267 = ssub.s32 6144, 6144
          %268 = vsyncadd [#allocation12], %s267
          %s269 = sshll.u32 [#allocation11], 4
          %s270 = int_to_ptr.vmem [resolvable:$true] %s269
          %275 = dma.hbm_to_vmem [thread:$0]  %s5, 6144, %s270, [#allocation12], 64, 64, 4
        $region32: #{tpu_custom_call.1} parent=11 // pred_fallthru
          _
        // Predicated region
        $region33: #{tpu_custom_call.1} parent=11 // pred_check
          %p276 = pneg %p174
        $region34: #{tpu_custom_call.1} parent=11 // pred_check_branch
          %278 = sbr.rel (%p276) target = $region36
        $region35: #{tpu_custom_call.1} parent=11 // pred_region
          %s280 = ssub.s32 16, 16
          %281 = vsyncadd [#allocation12], %s280
          %s283 = sshll.u32 [#allocation13], 4
          %s284 = int_to_ptr.vmem [resolvable:$true] %s283
          %286 = dma.hbm_to_vmem [thread:$0]  %s6, 16, %s284, [#allocation12]
        $region36: #{tpu_custom_call.1} parent=11 // pred_fallthru
          _
      $region12: #{tpu_custom_call.1} parent=5 // pred_fallthru
        _
      %p287 = scmp.lt.s32.totalorder %s22, 2
      // Predicated region
      $region37: #{tpu_custom_call.1} parent=5 // pred_check
        %p288 = pneg %p287
      $region38: #{tpu_custom_call.1} parent=5 // pred_check_branch
        %290 = sbr.rel (%p288) target = $region40
      $region39: #{tpu_custom_call.1} parent=5 // pred_region
        // Predicated region
        $region41: #{tpu_custom_call.1} parent=39 // pred_check
          %p291 = pneg %p42
        $region42: #{tpu_custom_call.1} parent=39 // pred_check_branch
          %293 = sbr.rel (%p291) target = $region44
        $region43: #{tpu_custom_call.1} parent=39 // pred_region
          %s294 = sand.u32 %s32, 1
          %s295 = scalar_lea.sflag [#allocation3], %s294
          %s296 = sand.u32 %s32, 1
          %s297 = smul.addr %s296, 48
          %s298 = scalar_lea.vmem [#allocation2], %s297
          %s300 = ssub.s32 768, 768
          %301 = vsyncadd %s295, %s300
          %s302 = smul.addr %s22, 6
          %s303 = smul.addr %s302, 128
          %s304 = scalar_lea.hbm %s0, %s303
          %s306 = sshll.u32 %s298, 4
          %s307 = int_to_ptr.vmem [resolvable:$true] %s306
          %309 = dma.hbm_to_vmem [thread:$0]  %s304, 768, %s307, %s295
        $region44: #{tpu_custom_call.1} parent=39 // pred_fallthru
          _
      $region40: #{tpu_custom_call.1} parent=5 // pred_fallthru
        _
      %p310 = scmp.le.s32.totalorder 1, %s22
      %p311 = scmp.lt.s32.totalorder %s22, 3
      %p312 = pnand %p310, %p311
      %p313 = pneg %p312
      // Predicated region
      $region45: #{tpu_custom_call.1} parent=5 // pred_check
        _
      $region46: #{tpu_custom_call.1} parent=5 // pred_check_branch
        %315 = sbr.rel (%p312) target = $region48
      $region47: #{tpu_custom_call.1} parent=5 // pred_region
        %s316 = ssub.s32 %s22, 1
        %s317 = sand.u32 %s35, 1
        %s318 = scalar_lea.sflag [#allocation3], %s317
        %s319 = sand.u32 %s35, 1
        %s320 = smul.addr %s319, 48
        %s321 = scalar_lea.vmem [#allocation2], %s320
        // Predicated region
        $region49: #{tpu_custom_call.1} parent=47 // pred_check
          %p322 = pneg %p48
        $region50: #{tpu_custom_call.1} parent=47 // pred_check_branch
          %324 = sbr.rel (%p322) target = $region52
        $region51: #{tpu_custom_call.1} parent=47 // pred_region
          %325 = dma.done %s318, 768
        $region52: #{tpu_custom_call.1} parent=47 // pred_fallthru
          _
        // Predicated region
        $region53: #{tpu_custom_call.1} parent=47 // pred_check
          %p326 = pneg %p69
        $region54: #{tpu_custom_call.1} parent=47 // pred_check_branch
          %328 = sbr.rel (%p326) target = $region56
        $region55: #{tpu_custom_call.1} parent=47 // pred_region
          %329 = dma.done [#allocation6], 36864
        $region56: #{tpu_custom_call.1} parent=47 // pred_fallthru
          _
        // Predicated region
        $region57: #{tpu_custom_call.1} parent=47 // pred_check
          %p330 = pneg %p90
        $region58: #{tpu_custom_call.1} parent=47 // pred_check_branch
          %332 = sbr.rel (%p330) target = $region60
        $region59: #{tpu_custom_call.1} parent=47 // pred_region
          %333 = dma.done [#allocation6], 96
        $region60: #{tpu_custom_call.1} parent=47 // pred_fallthru
          _
        // Predicated region
        $region61: #{tpu_custom_call.1} parent=47 // pred_check
          %p334 = pneg %p111
        $region62: #{tpu_custom_call.1} parent=47 // pred_check_branch
          %336 = sbr.rel (%p334) target = $region64
        $region63: #{tpu_custom_call.1} parent=47 // pred_region
          %337 = dma.done [#allocation9], 36864
        $region64: #{tpu_custom_call.1} parent=47 // pred_fallthru
          _
        // Predicated region
        $region65: #{tpu_custom_call.1} parent=47 // pred_check
          %p338 = pneg %p132
        $region66: #{tpu_custom_call.1} parent=47 // pred_check_branch
          %340 = sbr.rel (%p338) target = $region68
        $region67: #{tpu_custom_call.1} parent=47 // pred_region
          %341 = dma.done [#allocation9], 96
        $region68: #{tpu_custom_call.1} parent=47 // pred_fallthru
          _
        // Predicated region
        $region69: #{tpu_custom_call.1} parent=47 // pred_check
          %p342 = pneg %p153
        $region70: #{tpu_custom_call.1} parent=47 // pred_check_branch
          %344 = sbr.rel (%p342) target = $region72
        $region71: #{tpu_custom_call.1} parent=47 // pred_region
          %345 = dma.done [#allocation12], 6144
        $region72: #{tpu_custom_call.1} parent=47 // pred_fallthru
          _
        // Predicated region
        $region73: #{tpu_custom_call.1} parent=47 // pred_check
          %p346 = pneg %p174
        $region74: #{tpu_custom_call.1} parent=47 // pred_check_branch
          %348 = sbr.rel (%p346) target = $region76
        $region75: #{tpu_custom_call.1} parent=47 // pred_region
          %349 = dma.done [#allocation12], 16
        $region76: #{tpu_custom_call.1} parent=47 // pred_fallthru
          _
        %s350 = sand.u32 %s35, 1
        %s351 = scalar_lea.sflag [#allocation3], %s350
        %s352 = sand.u32 %s35, 1
        %s353 = smul.addr %s352, 48
        %s354 = scalar_lea.vmem [#allocation2], %s353
        %p355 = pneg %p48
        %p356 = pneg %p45
        %p357 = pneg %p69
        %p358 = pneg %p66
        %p359 = pneg %p90
        %p360 = pneg %p87
        %p361 = pneg %p111
        %p362 = pneg %p108
        %p363 = pneg %p132
        %p364 = pneg %p129
        %p365 = pneg %p153
        %p366 = pneg %p150
        %p367 = pneg %p174
        %p368 = pneg %p171
        %p369 = pneg %p200
        %p370 = pneg %p197
        %s371 = sand.u32 %s187, 1
        %s372 = scalar_lea.sflag [#allocation4], %s371
        %s373 = sand.u32 %s187, 1
        %s374 = smul.addr %s373, 4
        %s375 = scalar_lea.vmem [#allocation14], %s374
        %v377 = vld [vmem:[%s321] sm:$0xff]
        %v378 = vld [vmem:[%s321 + $0x8] sm:$0xff]
        %v379 = vld [vmem:[%s321 + $0x10] sm:$0xff]
        %v380 = vld [vmem:[%s321 + $0x18] sm:$0xff]
        %v381 = vld [vmem:[%s321 + $0x20] sm:$0xff]
        %v382 = vld [vmem:[%s321 + $0x28] sm:$0xff]
        %v383 = vpack.c.bf16 %v377, %v377
        %v384 = vpack.c.bf16 %v378, %v378
        %v385 = vpack.c.bf16 %v379, %v379
        %v386 = vpack.c.bf16 %v380, %v380
        %v387 = vpack.c.bf16 %v381, %v381
        %v388 = vpack.c.bf16 %v382, %v382
        %v389 = vld [vmem:[#allocation5] sm:$0xff]
        %v390 = vld [vmem:[#allocation5 + $0x8] sm:$0xff]
        %v391 = vld [vmem:[#allocation5 + $0x10] sm:$0xff]
        %v392 = vld [vmem:[#allocation5 + $0x18] sm:$0xff]
        %v393 = vld [vmem:[#allocation5 + $0x20] sm:$0xff]
        %v394 = vld [vmem:[#allocation5 + $0x28] sm:$0xff]
        %v395 = vld [vmem:[#allocation5 + $0x30] sm:$0xff]
        %v396 = vld [vmem:[#allocation5 + $0x38] sm:$0xff]
        %v397 = vld [vmem:[#allocation5 + $0x40] sm:$0xff]
        %v398 = vld [vmem:[#allocation5 + $0x48] sm:$0xff]
        %v399 = vld [vmem:[#allocation5 + $0x50] sm:$0xff]
        %v400 = vld [vmem:[#allocation5 + $0x58] sm:$0xff]
        %v401 = vld [vmem:[#allocation5 + $0x60] sm:$0xff]
        %v402 = vld [vmem:[#allocation5 + $0x68] sm:$0xff]
        %v403 = vld [vmem:[#allocation5 + $0x70] sm:$0xff]
        %v404 = vld [vmem:[#allocation5 + $0x78] sm:$0xff]
        %v405 = vld [vmem:[#allocation5 + $0x80] sm:$0xff]
        %v406 = vld [vmem:[#allocation5 + $0x88] sm:$0xff]
        %v407 = vld [vmem:[#allocation5 + $0x90] sm:$0xff]
        %v408 = vld [vmem:[#allocation5 + $0x98] sm:$0xff]
        %v409 = vld [vmem:[#allocation5 + $0xa0] sm:$0xff]
        %v410 = vld [vmem:[#allocation5 + $0xa8] sm:$0xff]
        %v411 = vld [vmem:[#allocation5 + $0xb0] sm:$0xff]
        %v412 = vld [vmem:[#allocation5 + $0xb8] sm:$0xff]
        %v413 = vld [vmem:[#allocation5 + $0xc0] sm:$0xff]
        %v414 = vld [vmem:[#allocation5 + $0xc8] sm:$0xff]
        %v415 = vld [vmem:[#allocation5 + $0xd0] sm:$0xff]
        %v416 = vld [vmem:[#allocation5 + $0xd8] sm:$0xff]
        %v417 = vld [vmem:[#allocation5 + $0xe0] sm:$0xff]
        %v418 = vld [vmem:[#allocation5 + $0xe8] sm:$0xff]
        %v419 = vld [vmem:[#allocation5 + $0xf0] sm:$0xff]
        %v420 = vld [vmem:[#allocation5 + $0xf8] sm:$0xff]
        %v421 = vld [vmem:[#allocation5 + $0x100] sm:$0xff]
        %v422 = vld [vmem:[#allocation5 + $0x108] sm:$0xff]
        %v423 = vld [vmem:[#allocation5 + $0x110] sm:$0xff]
        %v424 = vld [vmem:[#allocation5 + $0x118] sm:$0xff]
        %v425 = vld [vmem:[#allocation5 + $0x120] sm:$0xff]
        %v426 = vld [vmem:[#allocation5 + $0x128] sm:$0xff]
        %v427 = vld [vmem:[#allocation5 + $0x130] sm:$0xff]
        %v428 = vld [vmem:[#allocation5 + $0x138] sm:$0xff]
        %v429 = vld [vmem:[#allocation5 + $0x140] sm:$0xff]
        %v430 = vld [vmem:[#allocation5 + $0x148] sm:$0xff]
        %v431 = vld [vmem:[#allocation5 + $0x150] sm:$0xff]
        %v432 = vld [vmem:[#allocation5 + $0x158] sm:$0xff]
        %v433 = vld [vmem:[#allocation5 + $0x160] sm:$0xff]
        %v434 = vld [vmem:[#allocation5 + $0x168] sm:$0xff]
        %v435 = vld [vmem:[#allocation5 + $0x170] sm:$0xff]
        %v436 = vld [vmem:[#allocation5 + $0x178] sm:$0xff]
        %v437 = vld [vmem:[#allocation5 + $0x180] sm:$0xff]
        %v438 = vld [vmem:[#allocation5 + $0x188] sm:$0xff]
        %v439 = vld [vmem:[#allocation5 + $0x190] sm:$0xff]
        %v440 = vld [vmem:[#allocation5 + $0x198] sm:$0xff]
        %v441 = vld [vmem:[#allocation5 + $0x1a0] sm:$0xff]
        %v442 = vld [vmem:[#allocation5 + $0x1a8] sm:$0xff]
        %v443 = vld [vmem:[#allocation5 + $0x1b0] sm:$0xff]
        %v444 = vld [vmem:[#allocation5 + $0x1b8] sm:$0xff]
        %v445 = vld [vmem:[#allocation5 + $0x1c0] sm:$0xff]
        %v446 = vld [vmem:[#allocation5 + $0x1c8] sm:$0xff]
        %v447 = vld [vmem:[#allocation5 + $0x1d0] sm:$0xff]
        %v448 = vld [vmem:[#allocation5 + $0x1d8] sm:$0xff]
        %v449 = vld [vmem:[#allocation5 + $0x1e0] sm:$0xff]
        %v450 = vld [vmem:[#allocation5 + $0x1e8] sm:$0xff]
        %v451 = vld [vmem:[#allocation5 + $0x1f0] sm:$0xff]
        %v452 = vld [vmem:[#allocation5 + $0x1f8] sm:$0xff]
        %v453 = vld [vmem:[#allocation5 + $0x200] sm:$0xff]
        %v454 = vld [vmem:[#allocation5 + $0x208] sm:$0xff]
        %v455 = vld [vmem:[#allocation5 + $0x210] sm:$0xff]
        %v456 = vld [vmem:[#allocation5 + $0x218] sm:$0xff]
        %v457 = vld [vmem:[#allocation5 + $0x220] sm:$0xff]
        %v458 = vld [vmem:[#allocation5 + $0x228] sm:$0xff]
        %v459 = vld [vmem:[#allocation5 + $0x230] sm:$0xff]
        %v460 = vld [vmem:[#allocation5 + $0x238] sm:$0xff]
        %v461 = vld [vmem:[#allocation5 + $0x240] sm:$0xff]
        %v462 = vld [vmem:[#allocation5 + $0x248] sm:$0xff]
        %v463 = vld [vmem:[#allocation5 + $0x250] sm:$0xff]
        %v464 = vld [vmem:[#allocation5 + $0x258] sm:$0xff]
        %v465 = vld [vmem:[#allocation5 + $0x260] sm:$0xff]
        %v466 = vld [vmem:[#allocation5 + $0x268] sm:$0xff]
        %v467 = vld [vmem:[#allocation5 + $0x270] sm:$0xff]
        %v468 = vld [vmem:[#allocation5 + $0x278] sm:$0xff]
        %v469 = vld [vmem:[#allocation5 + $0x280] sm:$0xff]
        %v470 = vld [vmem:[#allocation5 + $0x288] sm:$0xff]
        %v471 = vld [vmem:[#allocation5 + $0x290] sm:$0xff]
        %v472 = vld [vmem:[#allocation5 + $0x298] sm:$0xff]
        %v473 = vld [vmem:[#allocation5 + $0x2a0] sm:$0xff]
        %v474 = vld [vmem:[#allocation5 + $0x2a8] sm:$0xff]
        %v475 = vld [vmem:[#allocation5 + $0x2b0] sm:$0xff]
        %v476 = vld [vmem:[#allocation5 + $0x2b8] sm:$0xff]
        %v477 = vld [vmem:[#allocation5 + $0x2c0] sm:$0xff]
        %v478 = vld [vmem:[#allocation5 + $0x2c8] sm:$0xff]
        %v479 = vld [vmem:[#allocation5 + $0x2d0] sm:$0xff]
        %v480 = vld [vmem:[#allocation5 + $0x2d8] sm:$0xff]
        %v481 = vld [vmem:[#allocation5 + $0x2e0] sm:$0xff]
        %v482 = vld [vmem:[#allocation5 + $0x2e8] sm:$0xff]
        %v483 = vld [vmem:[#allocation5 + $0x2f0] sm:$0xff]
        %v484 = vld [vmem:[#allocation5 + $0x2f8] sm:$0xff]
        %v485 = vld [vmem:[#allocation5 + $0x300] sm:$0xff]
        %v486 = vld [vmem:[#allocation5 + $0x308] sm:$0xff]
        %v487 = vld [vmem:[#allocation5 + $0x310] sm:$0xff]
        %v488 = vld [vmem:[#allocation5 + $0x318] sm:$0xff]
        %v489 = vld [vmem:[#allocation5 + $0x320] sm:$0xff]
        %v490 = vld [vmem:[#allocation5 + $0x328] sm:$0xff]
        %v491 = vld [vmem:[#allocation5 + $0x330] sm:$0xff]
        %v492 = vld [vmem:[#allocation5 + $0x338] sm:$0xff]
        %v493 = vld [vmem:[#allocation5 + $0x340] sm:$0xff]
        %v494 = vld [vmem:[#allocation5 + $0x348] sm:$0xff]
        %v495 = vld [vmem:[#allocation5 + $0x350] sm:$0xff]
        %v496 = vld [vmem:[#allocation5 + $0x358] sm:$0xff]
        %v497 = vld [vmem:[#allocation5 + $0x360] sm:$0xff]
        %v498 = vld [vmem:[#allocation5 + $0x368] sm:$0xff]
        %v499 = vld [vmem:[#allocation5 + $0x370] sm:$0xff]
        %v500 = vld [vmem:[#allocation5 + $0x378] sm:$0xff]
        %v501 = vld [vmem:[#allocation5 + $0x380] sm:$0xff]
        %v502 = vld [vmem:[#allocation5 + $0x388] sm:$0xff]
        %v503 = vld [vmem:[#allocation5 + $0x390] sm:$0xff]
        %v504 = vld [vmem:[#allocation5 + $0x398] sm:$0xff]
        %v505 = vld [vmem:[#allocation5 + $0x3a0] sm:$0xff]
        %v506 = vld [vmem:[#allocation5 + $0x3a8] sm:$0xff]
        %v507 = vld [vmem:[#allocation5 + $0x3b0] sm:$0xff]
        %v508 = vld [vmem:[#allocation5 + $0x3b8] sm:$0xff]
        %v509 = vld [vmem:[#allocation5 + $0x3c0] sm:$0xff]
        %v510 = vld [vmem:[#allocation5 + $0x3c8] sm:$0xff]
        %v511 = vld [vmem:[#allocation5 + $0x3d0] sm:$0xff]
        %v512 = vld [vmem:[#allocation5 + $0x3d8] sm:$0xff]
        %v513 = vld [vmem:[#allocation5 + $0x3e0] sm:$0xff]
        %v514 = vld [vmem:[#allocation5 + $0x3e8] sm:$0xff]
        %v515 = vld [vmem:[#allocation5 + $0x3f0] sm:$0xff]
        %v516 = vld [vmem:[#allocation5 + $0x3f8] sm:$0xff]
        %v517 = vld [vmem:[#allocation5 + $0x400] sm:$0xff]
        %v518 = vld [vmem:[#allocation5 + $0x408] sm:$0xff]
        %v519 = vld [vmem:[#allocation5 + $0x410] sm:$0xff]
        %v520 = vld [vmem:[#allocation5 + $0x418] sm:$0xff]
        %v521 = vld [vmem:[#allocation5 + $0x420] sm:$0xff]
        %v522 = vld [vmem:[#allocation5 + $0x428] sm:$0xff]
        %v523 = vld [vmem:[#allocation5 + $0x430] sm:$0xff]
        %v524 = vld [vmem:[#allocation5 + $0x438] sm:$0xff]
        %v525 = vld [vmem:[#allocation5 + $0x440] sm:$0xff]
        %v526 = vld [vmem:[#allocation5 + $0x448] sm:$0xff]
        %v527 = vld [vmem:[#allocation5 + $0x450] sm:$0xff]
        %v528 = vld [vmem:[#allocation5 + $0x458] sm:$0xff]
        %v529 = vld [vmem:[#allocation5 + $0x460] sm:$0xff]
        %v530 = vld [vmem:[#allocation5 + $0x468] sm:$0xff]
        %v531 = vld [vmem:[#allocation5 + $0x470] sm:$0xff]
        %v532 = vld [vmem:[#allocation5 + $0x478] sm:$0xff]
        %v533 = vld [vmem:[#allocation5 + $0x480] sm:$0xff]
        %v534 = vld [vmem:[#allocation5 + $0x488] sm:$0xff]
        %v535 = vld [vmem:[#allocation5 + $0x490] sm:$0xff]
        %v536 = vld [vmem:[#allocation5 + $0x498] sm:$0xff]
        %v537 = vld [vmem:[#allocation5 + $0x4a0] sm:$0xff]
        %v538 = vld [vmem:[#allocation5 + $0x4a8] sm:$0xff]
        %v539 = vld [vmem:[#allocation5 + $0x4b0] sm:$0xff]
        %v540 = vld [vmem:[#allocation5 + $0x4b8] sm:$0xff]
        %v541 = vld [vmem:[#allocation5 + $0x4c0] sm:$0xff]
        %v542 = vld [vmem:[#allocation5 + $0x4c8] sm:$0xff]
        %v543 = vld [vmem:[#allocation5 + $0x4d0] sm:$0xff]
        %v544 = vld [vmem:[#allocation5 + $0x4d8] sm:$0xff]
        %v545 = vld [vmem:[#allocation5 + $0x4e0] sm:$0xff]
        %v546 = vld [vmem:[#allocation5 + $0x4e8] sm:$0xff]
        %v547 = vld [vmem:[#allocation5 + $0x4f0] sm:$0xff]
        %v548 = vld [vmem:[#allocation5 + $0x4f8] sm:$0xff]
        %v549 = vld [vmem:[#allocation5 + $0x500] sm:$0xff]
        %v550 = vld [vmem:[#allocation5 + $0x508] sm:$0xff]
        %v551 = vld [vmem:[#allocation5 + $0x510] sm:$0xff]
        %v552 = vld [vmem:[#allocation5 + $0x518] sm:$0xff]
        %v553 = vld [vmem:[#allocation5 + $0x520] sm:$0xff]
        %v554 = vld [vmem:[#allocation5 + $0x528] sm:$0xff]
        %v555 = vld [vmem:[#allocation5 + $0x530] sm:$0xff]
        %v556 = vld [vmem:[#allocation5 + $0x538] sm:$0xff]
        %v557 = vld [vmem:[#allocation5 + $0x540] sm:$0xff]
        %v558 = vld [vmem:[#allocation5 + $0x548] sm:$0xff]
        %v559 = vld [vmem:[#allocation5 + $0x550] sm:$0xff]
        %v560 = vld [vmem:[#allocation5 + $0x558] sm:$0xff]
        %v561 = vld [vmem:[#allocation5 + $0x560] sm:$0xff]
        %v562 = vld [vmem:[#allocation5 + $0x568] sm:$0xff]
        %v563 = vld [vmem:[#allocation5 + $0x570] sm:$0xff]
        %v564 = vld [vmem:[#allocation5 + $0x578] sm:$0xff]
        %v565 = vld [vmem:[#allocation5 + $0x580] sm:$0xff]
        %v566 = vld [vmem:[#allocation5 + $0x588] sm:$0xff]
        %v567 = vld [vmem:[#allocation5 + $0x590] sm:$0xff]
        %v568 = vld [vmem:[#allocation5 + $0x598] sm:$0xff]
        %v569 = vld [vmem:[#allocation5 + $0x5a0] sm:$0xff]
        %v570 = vld [vmem:[#allocation5 + $0x5a8] sm:$0xff]
        %v571 = vld [vmem:[#allocation5 + $0x5b0] sm:$0xff]
        %v572 = vld [vmem:[#allocation5 + $0x5b8] sm:$0xff]
        %v573 = vld [vmem:[#allocation5 + $0x5c0] sm:$0xff]
        %v574 = vld [vmem:[#allocation5 + $0x5c8] sm:$0xff]
        %v575 = vld [vmem:[#allocation5 + $0x5d0] sm:$0xff]
        %v576 = vld [vmem:[#allocation5 + $0x5d8] sm:$0xff]
        %v577 = vld [vmem:[#allocation5 + $0x5e0] sm:$0xff]
        %v578 = vld [vmem:[#allocation5 + $0x5e8] sm:$0xff]
        %v579 = vld [vmem:[#allocation5 + $0x5f0] sm:$0xff]
        %v580 = vld [vmem:[#allocation5 + $0x5f8] sm:$0xff]
        %v581 = vld [vmem:[#allocation5 + $0x600] sm:$0xff]
        %v582 = vld [vmem:[#allocation5 + $0x608] sm:$0xff]
        %v583 = vld [vmem:[#allocation5 + $0x610] sm:$0xff]
        %v584 = vld [vmem:[#allocation5 + $0x618] sm:$0xff]
        %v585 = vld [vmem:[#allocation5 + $0x620] sm:$0xff]
        %v586 = vld [vmem:[#allocation5 + $0x628] sm:$0xff]
        %v587 = vld [vmem:[#allocation5 + $0x630] sm:$0xff]
        %v588 = vld [vmem:[#allocation5 + $0x638] sm:$0xff]
        %v589 = vld [vmem:[#allocation5 + $0x640] sm:$0xff]
        %v590 = vld [vmem:[#allocation5 + $0x648] sm:$0xff]
        %v591 = vld [vmem:[#allocation5 + $0x650] sm:$0xff]
        %v592 = vld [vmem:[#allocation5 + $0x658] sm:$0xff]
        %v593 = vld [vmem:[#allocation5 + $0x660] sm:$0xff]
        %v594 = vld [vmem:[#allocation5 + $0x668] sm:$0xff]
        %v595 = vld [vmem:[#allocation5 + $0x670] sm:$0xff]
        %v596 = vld [vmem:[#allocation5 + $0x678] sm:$0xff]
        %v597 = vld [vmem:[#allocation5 + $0x680] sm:$0xff]
        %v598 = vld [vmem:[#allocation5 + $0x688] sm:$0xff]
        %v599 = vld [vmem:[#allocation5 + $0x690] sm:$0xff]
        %v600 = vld [vmem:[#allocation5 + $0x698] sm:$0xff]
        %v601 = vld [vmem:[#allocation5 + $0x6a0] sm:$0xff]
        %v602 = vld [vmem:[#allocation5 + $0x6a8] sm:$0xff]
        %v603 = vld [vmem:[#allocation5 + $0x6b0] sm:$0xff]
        %v604 = vld [vmem:[#allocation5 + $0x6b8] sm:$0xff]
        %v605 = vld [vmem:[#allocation5 + $0x6c0] sm:$0xff]
        %v606 = vld [vmem:[#allocation5 + $0x6c8] sm:$0xff]
        %v607 = vld [vmem:[#allocation5 + $0x6d0] sm:$0xff]
        %v608 = vld [vmem:[#allocation5 + $0x6d8] sm:$0xff]
        %v609 = vld [vmem:[#allocation5 + $0x6e0] sm:$0xff]
        %v610 = vld [vmem:[#allocation5 + $0x6e8] sm:$0xff]
        %v611 = vld [vmem:[#allocation5 + $0x6f0] sm:$0xff]
        %v612 = vld [vmem:[#allocation5 + $0x6f8] sm:$0xff]
        %v613 = vld [vmem:[#allocation5 + $0x700] sm:$0xff]
        %v614 = vld [vmem:[#allocation5 + $0x708] sm:$0xff]
        %v615 = vld [vmem:[#allocation5 + $0x710] sm:$0xff]
        %v616 = vld [vmem:[#allocation5 + $0x718] sm:$0xff]
        %v617 = vld [vmem:[#allocation5 + $0x720] sm:$0xff]
        %v618 = vld [vmem:[#allocation5 + $0x728] sm:$0xff]
        %v619 = vld [vmem:[#allocation5 + $0x730] sm:$0xff]
        %v620 = vld [vmem:[#allocation5 + $0x738] sm:$0xff]
        %v621 = vld [vmem:[#allocation5 + $0x740] sm:$0xff]
        %v622 = vld [vmem:[#allocation5 + $0x748] sm:$0xff]
        %v623 = vld [vmem:[#allocation5 + $0x750] sm:$0xff]
        %v624 = vld [vmem:[#allocation5 + $0x758] sm:$0xff]
        %v625 = vld [vmem:[#allocation5 + $0x760] sm:$0xff]
        %v626 = vld [vmem:[#allocation5 + $0x768] sm:$0xff]
        %v627 = vld [vmem:[#allocation5 + $0x770] sm:$0xff]
        %v628 = vld [vmem:[#allocation5 + $0x778] sm:$0xff]
        %v629 = vld [vmem:[#allocation5 + $0x780] sm:$0xff]
        %v630 = vld [vmem:[#allocation5 + $0x788] sm:$0xff]
        %v631 = vld [vmem:[#allocation5 + $0x790] sm:$0xff]
        %v632 = vld [vmem:[#allocation5 + $0x798] sm:$0xff]
        %v633 = vld [vmem:[#allocation5 + $0x7a0] sm:$0xff]
        %v634 = vld [vmem:[#allocation5 + $0x7a8] sm:$0xff]
        %v635 = vld [vmem:[#allocation5 + $0x7b0] sm:$0xff]
        %v636 = vld [vmem:[#allocation5 + $0x7b8] sm:$0xff]
        %v637 = vld [vmem:[#allocation5 + $0x7c0] sm:$0xff]
        %v638 = vld [vmem:[#allocation5 + $0x7c8] sm:$0xff]
        %v639 = vld [vmem:[#allocation5 + $0x7d0] sm:$0xff]
        %v640 = vld [vmem:[#allocation5 + $0x7d8] sm:$0xff]
        %v641 = vld [vmem:[#allocation5 + $0x7e0] sm:$0xff]
        %v642 = vld [vmem:[#allocation5 + $0x7e8] sm:$0xff]
        %v643 = vld [vmem:[#allocation5 + $0x7f0] sm:$0xff]
        %v644 = vld [vmem:[#allocation5 + $0x7f8] sm:$0xff]
        %v645 = vld [vmem:[#allocation5 + $0x800] sm:$0xff]
        %v646 = vld [vmem:[#allocation5 + $0x808] sm:$0xff]
        %v647 = vld [vmem:[#allocation5 + $0x810] sm:$0xff]
        %v648 = vld [vmem:[#allocation5 + $0x818] sm:$0xff]
        %v649 = vld [vmem:[#allocation5 + $0x820] sm:$0xff]
        %v650 = vld [vmem:[#allocation5 + $0x828] sm:$0xff]
        %v651 = vld [vmem:[#allocation5 + $0x830] sm:$0xff]
        %v652 = vld [vmem:[#allocation5 + $0x838] sm:$0xff]
        %v653 = vld [vmem:[#allocation5 + $0x840] sm:$0xff]
        %v654 = vld [vmem:[#allocation5 + $0x848] sm:$0xff]
        %v655 = vld [vmem:[#allocation5 + $0x850] sm:$0xff]
        %v656 = vld [vmem:[#allocation5 + $0x858] sm:$0xff]
        %v657 = vld [vmem:[#allocation5 + $0x860] sm:$0xff]
        %v658 = vld [vmem:[#allocation5 + $0x868] sm:$0xff]
        %v659 = vld [vmem:[#allocation5 + $0x870] sm:$0xff]
        %v660 = vld [vmem:[#allocation5 + $0x878] sm:$0xff]
        %v661 = vld [vmem:[#allocation5 + $0x880] sm:$0xff]
        %v662 = vld [vmem:[#allocation5 + $0x888] sm:$0xff]
        %v663 = vld [vmem:[#allocation5 + $0x890] sm:$0xff]
        %v664 = vld [vmem:[#allocation5 + $0x898] sm:$0xff]
        %v665 = vld [vmem:[#allocation5 + $0x8a0] sm:$0xff]
        %v666 = vld [vmem:[#allocation5 + $0x8a8] sm:$0xff]
        %v667 = vld [vmem:[#allocation5 + $0x8b0] sm:$0xff]
        %v668 = vld [vmem:[#allocation5 + $0x8b8] sm:$0xff]
        %v669 = vld [vmem:[#allocation5 + $0x8c0] sm:$0xff]
        %v670 = vld [vmem:[#allocation5 + $0x8c8] sm:$0xff]
        %v671 = vld [vmem:[#allocation5 + $0x8d0] sm:$0xff]
        %v672 = vld [vmem:[#allocation5 + $0x8d8] sm:$0xff]
        %v673 = vld [vmem:[#allocation5 + $0x8e0] sm:$0xff]
        %v674 = vld [vmem:[#allocation5 + $0x8e8] sm:$0xff]
        %v675 = vld [vmem:[#allocation5 + $0x8f0] sm:$0xff]
        %v676 = vld [vmem:[#allocation5 + $0x8f8] sm:$0xff]
        %v677 = vld [vmem:[#allocation7] sm:$0x3f]
        %v679 = vlaneseq
        %v680 = vshrl.u32 %v679, 7
        %v681 = vsub.s32 0, %v680
        %v682 = vrot.slane %v677, %v681
        %v683 = vlaneseq
        %v684 = vshrl.u32 %v683, 7
        %v685 = vsub.s32 1, %v684
        %v686 = vrot.slane %v677, %v685
        %v687 = vlaneseq
        %v688 = vshrl.u32 %v687, 7
        %v689 = vsub.s32 2, %v688
        %v690 = vrot.slane %v677, %v689
        %v691 = vlaneseq
        %v692 = vshrl.u32 %v691, 7
        %v693 = vsub.s32 3, %v692
        %v694 = vrot.slane %v677, %v693
        %v695 = vlaneseq
        %v696 = vshrl.u32 %v695, 7
        %v697 = vsub.s32 4, %v696
        %v698 = vrot.slane %v677, %v697
        %v699 = vlaneseq
        %v700 = vshrl.u32 %v699, 7
        %v701 = vsub.s32 5, %v700
        %v702 = vrot.slane %v677, %v701
        %v997 = vunpack.c.l.b16 %v389
        %v998 = vunpack.c.h.b16 %v389
        %v999 = vunpack.c.l.b16 %v390
        %v1000 = vunpack.c.h.b16 %v390
        %v1001 = vunpack.c.l.b16 %v391
        %v1002 = vunpack.c.h.b16 %v391
        %v1003 = vunpack.c.l.b16 %v392
        %v1004 = vunpack.c.h.b16 %v392
        %v1005 = vunpack.c.l.b16 %v393
        %v1006 = vunpack.c.h.b16 %v393
        %v1007 = vunpack.c.l.b16 %v394
        %v1008 = vunpack.c.h.b16 %v394
        %v1009 = vunpack.c.l.b16 %v395
        %v1010 = vunpack.c.h.b16 %v395
        %v1011 = vunpack.c.l.b16 %v396
        %v1012 = vunpack.c.h.b16 %v396
        %v1013 = vunpack.c.l.b16 %v397
        %v1014 = vunpack.c.h.b16 %v397
        %v1015 = vunpack.c.l.b16 %v398
        %v1016 = vunpack.c.h.b16 %v398
        %v1017 = vunpack.c.l.b16 %v399
        %v1018 = vunpack.c.h.b16 %v399
        %v1019 = vunpack.c.l.b16 %v400
        %v1020 = vunpack.c.h.b16 %v400
        %v1021 = vunpack.c.l.b16 %v401
        %v1022 = vunpack.c.h.b16 %v401
        %v1023 = vunpack.c.l.b16 %v402
        %v1024 = vunpack.c.h.b16 %v402
        %v1025 = vunpack.c.l.b16 %v403
        %v1026 = vunpack.c.h.b16 %v403
        %v1027 = vunpack.c.l.b16 %v404
        %v1028 = vunpack.c.h.b16 %v404
        %v1029 = vunpack.c.l.b16 %v405
        %v1030 = vunpack.c.h.b16 %v405
        %v1031 = vunpack.c.l.b16 %v406
        %v1032 = vunpack.c.h.b16 %v406
        %v1033 = vunpack.c.l.b16 %v407
        %v1034 = vunpack.c.h.b16 %v407
        %v1035 = vunpack.c.l.b16 %v408
        %v1036 = vunpack.c.h.b16 %v408
        %v1037 = vunpack.c.l.b16 %v409
        %v1038 = vunpack.c.h.b16 %v409
        %v1039 = vunpack.c.l.b16 %v410
        %v1040 = vunpack.c.h.b16 %v410
        %v1041 = vunpack.c.l.b16 %v411
        %v1042 = vunpack.c.h.b16 %v411
        %v1043 = vunpack.c.l.b16 %v412
        %v1044 = vunpack.c.h.b16 %v412
        %v1045 = vunpack.c.l.b16 %v413
        %v1046 = vunpack.c.h.b16 %v413
        %v1047 = vunpack.c.l.b16 %v414
        %v1048 = vunpack.c.h.b16 %v414
        %v1049 = vunpack.c.l.b16 %v415
        %v1050 = vunpack.c.h.b16 %v415
        %v1051 = vunpack.c.l.b16 %v416
        %v1052 = vunpack.c.h.b16 %v416
        %v1053 = vunpack.c.l.b16 %v417
        %v1054 = vunpack.c.h.b16 %v417
        %v1055 = vunpack.c.l.b16 %v418
        %v1056 = vunpack.c.h.b16 %v418
        %v1057 = vunpack.c.l.b16 %v419
        %v1058 = vunpack.c.h.b16 %v419
        %v1059 = vunpack.c.l.b16 %v420
        %v1060 = vunpack.c.h.b16 %v420
        %v1061 = vunpack.c.l.b16 %v421
        %v1062 = vunpack.c.h.b16 %v421
        %v1063 = vunpack.c.l.b16 %v422
        %v1064 = vunpack.c.h.b16 %v422
        %v1065 = vunpack.c.l.b16 %v423
        %v1066 = vunpack.c.h.b16 %v423
        %v1067 = vunpack.c.l.b16 %v424
        %v1068 = vunpack.c.h.b16 %v424
        %v1069 = vunpack.c.l.b16 %v425
        %v1070 = vunpack.c.h.b16 %v425
        %v1071 = vunpack.c.l.b16 %v426
        %v1072 = vunpack.c.h.b16 %v426
        %v1073 = vunpack.c.l.b16 %v427
        %v1074 = vunpack.c.h.b16 %v427
        %v1075 = vunpack.c.l.b16 %v428
        %v1076 = vunpack.c.h.b16 %v428
        %v1077 = vunpack.c.l.b16 %v429
        %v1078 = vunpack.c.h.b16 %v429
        %v1079 = vunpack.c.l.b16 %v430
        %v1080 = vunpack.c.h.b16 %v430
        %v1081 = vunpack.c.l.b16 %v431
        %v1082 = vunpack.c.h.b16 %v431
        %v1083 = vunpack.c.l.b16 %v432
        %v1084 = vunpack.c.h.b16 %v432
        %v1085 = vunpack.c.l.b16 %v433
        %v1086 = vunpack.c.h.b16 %v433
        %v1087 = vunpack.c.l.b16 %v434
        %v1088 = vunpack.c.h.b16 %v434
        %v1089 = vunpack.c.l.b16 %v435
        %v1090 = vunpack.c.h.b16 %v435
        %v1091 = vunpack.c.l.b16 %v436
        %v1092 = vunpack.c.h.b16 %v436
        %v1093 = vunpack.c.l.b16 %v437
        %v1094 = vunpack.c.h.b16 %v437
        %v1095 = vunpack.c.l.b16 %v438
        %v1096 = vunpack.c.h.b16 %v438
        %v1097 = vunpack.c.l.b16 %v439
        %v1098 = vunpack.c.h.b16 %v439
        %v1099 = vunpack.c.l.b16 %v440
        %v1100 = vunpack.c.h.b16 %v440
        %v1101 = vunpack.c.l.b16 %v441
        %v1102 = vunpack.c.h.b16 %v441
        %v1103 = vunpack.c.l.b16 %v442
        %v1104 = vunpack.c.h.b16 %v442
        %v1105 = vunpack.c.l.b16 %v443
        %v1106 = vunpack.c.h.b16 %v443
        %v1107 = vunpack.c.l.b16 %v444
        %v1108 = vunpack.c.h.b16 %v444
        %v1109 = vunpack.c.l.b16 %v445
        %v1110 = vunpack.c.h.b16 %v445
        %v1111 = vunpack.c.l.b16 %v446
        %v1112 = vunpack.c.h.b16 %v446
        %v1113 = vunpack.c.l.b16 %v447
        %v1114 = vunpack.c.h.b16 %v447
        %v1115 = vunpack.c.l.b16 %v448
        %v1116 = vunpack.c.h.b16 %v448
        %v1117 = vunpack.c.l.b16 %v449
        %v1118 = vunpack.c.h.b16 %v449
        %v1119 = vunpack.c.l.b16 %v450
        %v1120 = vunpack.c.h.b16 %v450
        %v1121 = vunpack.c.l.b16 %v451
        %v1122 = vunpack.c.h.b16 %v451
        %v1123 = vunpack.c.l.b16 %v452
        %v1124 = vunpack.c.h.b16 %v452
        %v1125 = vunpack.c.l.b16 %v453
        %v1126 = vunpack.c.h.b16 %v453
        %v1127 = vunpack.c.l.b16 %v454
        %v1128 = vunpack.c.h.b16 %v454
        %v1129 = vunpack.c.l.b16 %v455
        %v1130 = vunpack.c.h.b16 %v455
        %v1131 = vunpack.c.l.b16 %v456
        %v1132 = vunpack.c.h.b16 %v456
        %v1133 = vunpack.c.l.b16 %v457
        %v1134 = vunpack.c.h.b16 %v457
        %v1135 = vunpack.c.l.b16 %v458
        %v1136 = vunpack.c.h.b16 %v458
        %v1137 = vunpack.c.l.b16 %v459
        %v1138 = vunpack.c.h.b16 %v459
        %v1139 = vunpack.c.l.b16 %v460
        %v1140 = vunpack.c.h.b16 %v460
        %v1141 = vunpack.c.l.b16 %v461
        %v1142 = vunpack.c.h.b16 %v461
        %v1143 = vunpack.c.l.b16 %v462
        %v1144 = vunpack.c.h.b16 %v462
        %v1145 = vunpack.c.l.b16 %v463
        %v1146 = vunpack.c.h.b16 %v463
        %v1147 = vunpack.c.l.b16 %v464
        %v1148 = vunpack.c.h.b16 %v464
        %v1149 = vunpack.c.l.b16 %v465
        %v1150 = vunpack.c.h.b16 %v465
        %v1151 = vunpack.c.l.b16 %v466
        %v1152 = vunpack.c.h.b16 %v466
        %v1153 = vunpack.c.l.b16 %v467
        %v1154 = vunpack.c.h.b16 %v467
        %v1155 = vunpack.c.l.b16 %v468
        %v1156 = vunpack.c.h.b16 %v468
        %v1157 = vunpack.c.l.b16 %v469
        %v1158 = vunpack.c.h.b16 %v469
        %v1159 = vunpack.c.l.b16 %v470
        %v1160 = vunpack.c.h.b16 %v470
        %v1161 = vunpack.c.l.b16 %v471
        %v1162 = vunpack.c.h.b16 %v471
        %v1163 = vunpack.c.l.b16 %v472
        %v1164 = vunpack.c.h.b16 %v472
        %v1165 = vunpack.c.l.b16 %v473
        %v1166 = vunpack.c.h.b16 %v473
        %v1167 = vunpack.c.l.b16 %v474
        %v1168 = vunpack.c.h.b16 %v474
        %v1169 = vunpack.c.l.b16 %v475
        %v1170 = vunpack.c.h.b16 %v475
        %v1171 = vunpack.c.l.b16 %v476
        %v1172 = vunpack.c.h.b16 %v476
        %v1173 = vunpack.c.l.b16 %v477
        %v1174 = vunpack.c.h.b16 %v477
        %v1175 = vunpack.c.l.b16 %v478
        %v1176 = vunpack.c.h.b16 %v478
        %v1177 = vunpack.c.l.b16 %v479
        %v1178 = vunpack.c.h.b16 %v479
        %v1179 = vunpack.c.l.b16 %v480
        %v1180 = vunpack.c.h.b16 %v480
        %v1181 = vunpack.c.l.b16 %v481
        %v1182 = vunpack.c.h.b16 %v481
        %v1183 = vunpack.c.l.b16 %v482
        %v1184 = vunpack.c.h.b16 %v482
        %v1185 = vunpack.c.l.b16 %v483
        %v1186 = vunpack.c.h.b16 %v483
        %v1187 = vunpack.c.l.b16 %v484
        %v1188 = vunpack.c.h.b16 %v484
        %v1189 = vunpack.c.l.b16 %v485
        %v1190 = vunpack.c.h.b16 %v485
        %v1191 = vunpack.c.l.b16 %v486
        %v1192 = vunpack.c.h.b16 %v486
        %v1193 = vunpack.c.l.b16 %v487
        %v1194 = vunpack.c.h.b16 %v487
        %v1195 = vunpack.c.l.b16 %v488
        %v1196 = vunpack.c.h.b16 %v488
        %v1197 = vunpack.c.l.b16 %v489
        %v1198 = vunpack.c.h.b16 %v489
        %v1199 = vunpack.c.l.b16 %v490
        %v1200 = vunpack.c.h.b16 %v490
        %v1201 = vunpack.c.l.b16 %v491
        %v1202 = vunpack.c.h.b16 %v491
        %v1203 = vunpack.c.l.b16 %v492
        %v1204 = vunpack.c.h.b16 %v492
        %v1205 = vunpack.c.l.b16 %v493
        %v1206 = vunpack.c.h.b16 %v493
        %v1207 = vunpack.c.l.b16 %v494
        %v1208 = vunpack.c.h.b16 %v494
        %v1209 = vunpack.c.l.b16 %v495
        %v1210 = vunpack.c.h.b16 %v495
        %v1211 = vunpack.c.l.b16 %v496
        %v1212 = vunpack.c.h.b16 %v496
        %v1213 = vunpack.c.l.b16 %v497
        %v1214 = vunpack.c.h.b16 %v497
        %v1215 = vunpack.c.l.b16 %v498
        %v1216 = vunpack.c.h.b16 %v498
        %v1217 = vunpack.c.l.b16 %v499
        %v1218 = vunpack.c.h.b16 %v499
        %v1219 = vunpack.c.l.b16 %v500
        %v1220 = vunpack.c.h.b16 %v500
        %v1221 = vunpack.c.l.b16 %v501
        %v1222 = vunpack.c.h.b16 %v501
        %v1223 = vunpack.c.l.b16 %v502
        %v1224 = vunpack.c.h.b16 %v502
        %v1225 = vunpack.c.l.b16 %v503
        %v1226 = vunpack.c.h.b16 %v503
        %v1227 = vunpack.c.l.b16 %v504
        %v1228 = vunpack.c.h.b16 %v504
        %v1229 = vunpack.c.l.b16 %v505
        %v1230 = vunpack.c.h.b16 %v505
        %v1231 = vunpack.c.l.b16 %v506
        %v1232 = vunpack.c.h.b16 %v506
        %v1233 = vunpack.c.l.b16 %v507
        %v1234 = vunpack.c.h.b16 %v507
        %v1235 = vunpack.c.l.b16 %v508
        %v1236 = vunpack.c.h.b16 %v508
        %v1237 = vunpack.c.l.b16 %v509
        %v1238 = vunpack.c.h.b16 %v509
        %v1239 = vunpack.c.l.b16 %v510
        %v1240 = vunpack.c.h.b16 %v510
        %v1241 = vunpack.c.l.b16 %v511
        %v1242 = vunpack.c.h.b16 %v511
        %v1243 = vunpack.c.l.b16 %v512
        %v1244 = vunpack.c.h.b16 %v512
        %v1245 = vunpack.c.l.b16 %v513
        %v1246 = vunpack.c.h.b16 %v513
        %v1247 = vunpack.c.l.b16 %v514
        %v1248 = vunpack.c.h.b16 %v514
        %v1249 = vunpack.c.l.b16 %v515
        %v1250 = vunpack.c.h.b16 %v515
        %v1251 = vunpack.c.l.b16 %v516
        %v1252 = vunpack.c.h.b16 %v516
        %v1253 = vunpack.c.l.b16 %v517
        %v1254 = vunpack.c.h.b16 %v517
        %v1255 = vunpack.c.l.b16 %v518
        %v1256 = vunpack.c.h.b16 %v518
        %v1257 = vunpack.c.l.b16 %v519
        %v1258 = vunpack.c.h.b16 %v519
        %v1259 = vunpack.c.l.b16 %v520
        %v1260 = vunpack.c.h.b16 %v520
        %v1261 = vunpack.c.l.b16 %v521
        %v1262 = vunpack.c.h.b16 %v521
        %v1263 = vunpack.c.l.b16 %v522
        %v1264 = vunpack.c.h.b16 %v522
        %v1265 = vunpack.c.l.b16 %v523
        %v1266 = vunpack.c.h.b16 %v523
        %v1267 = vunpack.c.l.b16 %v524
        %v1268 = vunpack.c.h.b16 %v524
        %v1269 = vunpack.c.l.b16 %v525
        %v1270 = vunpack.c.h.b16 %v525
        %v1271 = vunpack.c.l.b16 %v526
        %v1272 = vunpack.c.h.b16 %v526
        %v1273 = vunpack.c.l.b16 %v527
        %v1274 = vunpack.c.h.b16 %v527
        %v1275 = vunpack.c.l.b16 %v528
        %v1276 = vunpack.c.h.b16 %v528
        %v1277 = vunpack.c.l.b16 %v529
        %v1278 = vunpack.c.h.b16 %v529
        %v1279 = vunpack.c.l.b16 %v530
        %v1280 = vunpack.c.h.b16 %v530
        %v1281 = vunpack.c.l.b16 %v531
        %v1282 = vunpack.c.h.b16 %v531
        %v1283 = vunpack.c.l.b16 %v532
        %v1284 = vunpack.c.h.b16 %v532
        %v1285 = vunpack.c.l.b16 %v533
        %v1286 = vunpack.c.h.b16 %v533
        %v1287 = vunpack.c.l.b16 %v534
        %v1288 = vunpack.c.h.b16 %v534
        %v1289 = vunpack.c.l.b16 %v535
        %v1290 = vunpack.c.h.b16 %v535
        %v1291 = vunpack.c.l.b16 %v536
        %v1292 = vunpack.c.h.b16 %v536
        %v1293 = vunpack.c.l.b16 %v537
        %v1294 = vunpack.c.h.b16 %v537
        %v1295 = vunpack.c.l.b16 %v538
        %v1296 = vunpack.c.h.b16 %v538
        %v1297 = vunpack.c.l.b16 %v539
        %v1298 = vunpack.c.h.b16 %v539
        %v1299 = vunpack.c.l.b16 %v540
        %v1300 = vunpack.c.h.b16 %v540
        %v1301 = vunpack.c.l.b16 %v541
        %v1302 = vunpack.c.h.b16 %v541
        %v1303 = vunpack.c.l.b16 %v542
        %v1304 = vunpack.c.h.b16 %v542
        %v1305 = vunpack.c.l.b16 %v543
        %v1306 = vunpack.c.h.b16 %v543
        %v1307 = vunpack.c.l.b16 %v544
        %v1308 = vunpack.c.h.b16 %v544
        %v1309 = vunpack.c.l.b16 %v545
        %v1310 = vunpack.c.h.b16 %v545
        %v1311 = vunpack.c.l.b16 %v546
        %v1312 = vunpack.c.h.b16 %v546
        %v1313 = vunpack.c.l.b16 %v547
        %v1314 = vunpack.c.h.b16 %v547
        %v1315 = vunpack.c.l.b16 %v548
        %v1316 = vunpack.c.h.b16 %v548
        %v1317 = vunpack.c.l.b16 %v549
        %v1318 = vunpack.c.h.b16 %v549
        %v1319 = vunpack.c.l.b16 %v550
        %v1320 = vunpack.c.h.b16 %v550
        %v1321 = vunpack.c.l.b16 %v551
        %v1322 = vunpack.c.h.b16 %v551
        %v1323 = vunpack.c.l.b16 %v552
        %v1324 = vunpack.c.h.b16 %v552
        %v1325 = vunpack.c.l.b16 %v553
        %v1326 = vunpack.c.h.b16 %v553
        %v1327 = vunpack.c.l.b16 %v554
        %v1328 = vunpack.c.h.b16 %v554
        %v1329 = vunpack.c.l.b16 %v555
        %v1330 = vunpack.c.h.b16 %v555
        %v1331 = vunpack.c.l.b16 %v556
        %v1332 = vunpack.c.h.b16 %v556
        %v1333 = vunpack.c.l.b16 %v557
        %v1334 = vunpack.c.h.b16 %v557
        %v1335 = vunpack.c.l.b16 %v558
        %v1336 = vunpack.c.h.b16 %v558
        %v1337 = vunpack.c.l.b16 %v559
        %v1338 = vunpack.c.h.b16 %v559
        %v1339 = vunpack.c.l.b16 %v560
        %v1340 = vunpack.c.h.b16 %v560
        %v1341 = vunpack.c.l.b16 %v561
        %v1342 = vunpack.c.h.b16 %v561
        %v1343 = vunpack.c.l.b16 %v562
        %v1344 = vunpack.c.h.b16 %v562
        %v1345 = vunpack.c.l.b16 %v563
        %v1346 = vunpack.c.h.b16 %v563
        %v1347 = vunpack.c.l.b16 %v564
        %v1348 = vunpack.c.h.b16 %v564
        %v1349 = vunpack.c.l.b16 %v565
        %v1350 = vunpack.c.h.b16 %v565
        %v1351 = vunpack.c.l.b16 %v566
        %v1352 = vunpack.c.h.b16 %v566
        %v1353 = vunpack.c.l.b16 %v567
        %v1354 = vunpack.c.h.b16 %v567
        %v1355 = vunpack.c.l.b16 %v568
        %v1356 = vunpack.c.h.b16 %v568
        %v1357 = vunpack.c.l.b16 %v569
        %v1358 = vunpack.c.h.b16 %v569
        %v1359 = vunpack.c.l.b16 %v570
        %v1360 = vunpack.c.h.b16 %v570
        %v1361 = vunpack.c.l.b16 %v571
        %v1362 = vunpack.c.h.b16 %v571
        %v1363 = vunpack.c.l.b16 %v572
        %v1364 = vunpack.c.h.b16 %v572
        %v1365 = vunpack.c.l.b16 %v573
        %v1366 = vunpack.c.h.b16 %v573
        %v1367 = vunpack.c.l.b16 %v574
        %v1368 = vunpack.c.h.b16 %v574
        %v1369 = vunpack.c.l.b16 %v575
        %v1370 = vunpack.c.h.b16 %v575
        %v1371 = vunpack.c.l.b16 %v576
        %v1372 = vunpack.c.h.b16 %v576
        %v1373 = vunpack.c.l.b16 %v577
        %v1374 = vunpack.c.h.b16 %v577
        %v1375 = vunpack.c.l.b16 %v578
        %v1376 = vunpack.c.h.b16 %v578
        %v1377 = vunpack.c.l.b16 %v579
        %v1378 = vunpack.c.h.b16 %v579
        %v1379 = vunpack.c.l.b16 %v580
        %v1380 = vunpack.c.h.b16 %v580
        %v1381 = vunpack.c.l.b16 %v581
        %v1382 = vunpack.c.h.b16 %v581
        %v1383 = vunpack.c.l.b16 %v582
        %v1384 = vunpack.c.h.b16 %v582
        %v1385 = vunpack.c.l.b16 %v583
        %v1386 = vunpack.c.h.b16 %v583
        %v1387 = vunpack.c.l.b16 %v584
        %v1388 = vunpack.c.h.b16 %v584
        %v1389 = vunpack.c.l.b16 %v585
        %v1390 = vunpack.c.h.b16 %v585
        %v1391 = vunpack.c.l.b16 %v586
        %v1392 = vunpack.c.h.b16 %v586
        %v1393 = vunpack.c.l.b16 %v587
        %v1394 = vunpack.c.h.b16 %v587
        %v1395 = vunpack.c.l.b16 %v588
        %v1396 = vunpack.c.h.b16 %v588
        %v1397 = vunpack.c.l.b16 %v589
        %v1398 = vunpack.c.h.b16 %v589
        %v1399 = vunpack.c.l.b16 %v590
        %v1400 = vunpack.c.h.b16 %v590
        %v1401 = vunpack.c.l.b16 %v591
        %v1402 = vunpack.c.h.b16 %v591
        %v1403 = vunpack.c.l.b16 %v592
        %v1404 = vunpack.c.h.b16 %v592
        %v1405 = vunpack.c.l.b16 %v593
        %v1406 = vunpack.c.h.b16 %v593
        %v1407 = vunpack.c.l.b16 %v594
        %v1408 = vunpack.c.h.b16 %v594
        %v1409 = vunpack.c.l.b16 %v595
        %v1410 = vunpack.c.h.b16 %v595
        %v1411 = vunpack.c.l.b16 %v596
        %v1412 = vunpack.c.h.b16 %v596
        %v1413 = vunpack.c.l.b16 %v597
        %v1414 = vunpack.c.h.b16 %v597
        %v1415 = vunpack.c.l.b16 %v598
        %v1416 = vunpack.c.h.b16 %v598
        %v1417 = vunpack.c.l.b16 %v599
        %v1418 = vunpack.c.h.b16 %v599
        %v1419 = vunpack.c.l.b16 %v600
        %v1420 = vunpack.c.h.b16 %v600
        %v1421 = vunpack.c.l.b16 %v601
        %v1422 = vunpack.c.h.b16 %v601
        %v1423 = vunpack.c.l.b16 %v602
        %v1424 = vunpack.c.h.b16 %v602
        %v1425 = vunpack.c.l.b16 %v603
        %v1426 = vunpack.c.h.b16 %v603
        %v1427 = vunpack.c.l.b16 %v604
        %v1428 = vunpack.c.h.b16 %v604
        %v1429 = vunpack.c.l.b16 %v605
        %v1430 = vunpack.c.h.b16 %v605
        %v1431 = vunpack.c.l.b16 %v606
        %v1432 = vunpack.c.h.b16 %v606
        %v1433 = vunpack.c.l.b16 %v607
        %v1434 = vunpack.c.h.b16 %v607
        %v1435 = vunpack.c.l.b16 %v608
        %v1436 = vunpack.c.h.b16 %v608
        %v1437 = vunpack.c.l.b16 %v609
        %v1438 = vunpack.c.h.b16 %v609
        %v1439 = vunpack.c.l.b16 %v610
        %v1440 = vunpack.c.h.b16 %v610
        %v1441 = vunpack.c.l.b16 %v611
        %v1442 = vunpack.c.h.b16 %v611
        %v1443 = vunpack.c.l.b16 %v612
        %v1444 = vunpack.c.h.b16 %v612
        %v1445 = vunpack.c.l.b16 %v613
        %v1446 = vunpack.c.h.b16 %v613
        %v1447 = vunpack.c.l.b16 %v614
        %v1448 = vunpack.c.h.b16 %v614
        %v1449 = vunpack.c.l.b16 %v615
        %v1450 = vunpack.c.h.b16 %v615
        %v1451 = vunpack.c.l.b16 %v616
        %v1452 = vunpack.c.h.b16 %v616
        %v1453 = vunpack.c.l.b16 %v617
        %v1454 = vunpack.c.h.b16 %v617
        %v1455 = vunpack.c.l.b16 %v618
        %v1456 = vunpack.c.h.b16 %v618
        %v1457 = vunpack.c.l.b16 %v619
        %v1458 = vunpack.c.h.b16 %v619
        %v1459 = vunpack.c.l.b16 %v620
        %v1460 = vunpack.c.h.b16 %v620
        %v1461 = vunpack.c.l.b16 %v621
        %v1462 = vunpack.c.h.b16 %v621
        %v1463 = vunpack.c.l.b16 %v622
        %v1464 = vunpack.c.h.b16 %v622
        %v1465 = vunpack.c.l.b16 %v623
        %v1466 = vunpack.c.h.b16 %v623
        %v1467 = vunpack.c.l.b16 %v624
        %v1468 = vunpack.c.h.b16 %v624
        %v1469 = vunpack.c.l.b16 %v625
        %v1470 = vunpack.c.h.b16 %v625
        %v1471 = vunpack.c.l.b16 %v626
        %v1472 = vunpack.c.h.b16 %v626
        %v1473 = vunpack.c.l.b16 %v627
        %v1474 = vunpack.c.h.b16 %v627
        %v1475 = vunpack.c.l.b16 %v628
        %v1476 = vunpack.c.h.b16 %v628
        %v1477 = vunpack.c.l.b16 %v629
        %v1478 = vunpack.c.h.b16 %v629
        %v1479 = vunpack.c.l.b16 %v630
        %v1480 = vunpack.c.h.b16 %v630
        %v1481 = vunpack.c.l.b16 %v631
        %v1482 = vunpack.c.h.b16 %v631
        %v1483 = vunpack.c.l.b16 %v632
        %v1484 = vunpack.c.h.b16 %v632
        %v1485 = vunpack.c.l.b16 %v633
        %v1486 = vunpack.c.h.b16 %v633
        %v1487 = vunpack.c.l.b16 %v634
        %v1488 = vunpack.c.h.b16 %v634
        %v1489 = vunpack.c.l.b16 %v635
        %v1490 = vunpack.c.h.b16 %v635
        %v1491 = vunpack.c.l.b16 %v636
        %v1492 = vunpack.c.h.b16 %v636
        %v1493 = vunpack.c.l.b16 %v637
        %v1494 = vunpack.c.h.b16 %v637
        %v1495 = vunpack.c.l.b16 %v638
        %v1496 = vunpack.c.h.b16 %v638
        %v1497 = vunpack.c.l.b16 %v639
        %v1498 = vunpack.c.h.b16 %v639
        %v1499 = vunpack.c.l.b16 %v640
        %v1500 = vunpack.c.h.b16 %v640
        %v1501 = vunpack.c.l.b16 %v641
        %v1502 = vunpack.c.h.b16 %v641
        %v1503 = vunpack.c.l.b16 %v642
        %v1504 = vunpack.c.h.b16 %v642
        %v1505 = vunpack.c.l.b16 %v643
        %v1506 = vunpack.c.h.b16 %v643
        %v1507 = vunpack.c.l.b16 %v644
        %v1508 = vunpack.c.h.b16 %v644
        %v1509 = vunpack.c.l.b16 %v645
        %v1510 = vunpack.c.h.b16 %v645
        %v1511 = vunpack.c.l.b16 %v646
        %v1512 = vunpack.c.h.b16 %v646
        %v1513 = vunpack.c.l.b16 %v647
        %v1514 = vunpack.c.h.b16 %v647
        %v1515 = vunpack.c.l.b16 %v648
        %v1516 = vunpack.c.h.b16 %v648
        %v1517 = vunpack.c.l.b16 %v649
        %v1518 = vunpack.c.h.b16 %v649
        %v1519 = vunpack.c.l.b16 %v650
        %v1520 = vunpack.c.h.b16 %v650
        %v1521 = vunpack.c.l.b16 %v651
        %v1522 = vunpack.c.h.b16 %v651
        %v1523 = vunpack.c.l.b16 %v652
        %v1524 = vunpack.c.h.b16 %v652
        %v1525 = vunpack.c.l.b16 %v653
        %v1526 = vunpack.c.h.b16 %v653
        %v1527 = vunpack.c.l.b16 %v654
        %v1528 = vunpack.c.h.b16 %v654
        %v1529 = vunpack.c.l.b16 %v655
        %v1530 = vunpack.c.h.b16 %v655
        %v1531 = vunpack.c.l.b16 %v656
        %v1532 = vunpack.c.h.b16 %v656
        %v1533 = vunpack.c.l.b16 %v657
        %v1534 = vunpack.c.h.b16 %v657
        %v1535 = vunpack.c.l.b16 %v658
        %v1536 = vunpack.c.h.b16 %v658
        %v1537 = vunpack.c.l.b16 %v659
        %v1538 = vunpack.c.h.b16 %v659
        %v1539 = vunpack.c.l.b16 %v660
        %v1540 = vunpack.c.h.b16 %v660
        %v1541 = vunpack.c.l.b16 %v661
        %v1542 = vunpack.c.h.b16 %v661
        %v1543 = vunpack.c.l.b16 %v662
        %v1544 = vunpack.c.h.b16 %v662
        %v1545 = vunpack.c.l.b16 %v663
        %v1546 = vunpack.c.h.b16 %v663
        %v1547 = vunpack.c.l.b16 %v664
        %v1548 = vunpack.c.h.b16 %v664
        %v1549 = vunpack.c.l.b16 %v665
        %v1550 = vunpack.c.h.b16 %v665
        %v1551 = vunpack.c.l.b16 %v666
        %v1552 = vunpack.c.h.b16 %v666
        %v1553 = vunpack.c.l.b16 %v667
        %v1554 = vunpack.c.h.b16 %v667
        %v1555 = vunpack.c.l.b16 %v668
        %v1556 = vunpack.c.h.b16 %v668
        %v1557 = vunpack.c.l.b16 %v669
        %v1558 = vunpack.c.h.b16 %v669
        %v1559 = vunpack.c.l.b16 %v670
        %v1560 = vunpack.c.h.b16 %v670
        %v1561 = vunpack.c.l.b16 %v671
        %v1562 = vunpack.c.h.b16 %v671
        %v1563 = vunpack.c.l.b16 %v672
        %v1564 = vunpack.c.h.b16 %v672
        %v1565 = vunpack.c.l.b16 %v673
        %v1566 = vunpack.c.h.b16 %v673
        %v1567 = vunpack.c.l.b16 %v674
        %v1568 = vunpack.c.h.b16 %v674
        %v1569 = vunpack.c.l.b16 %v675
        %v1570 = vunpack.c.h.b16 %v675
        %v1571 = vunpack.c.l.b16 %v676
        %v1572 = vunpack.c.h.b16 %v676
        %v1573 = vpack.c.b16 %v1003, %v997
        %v1574 = vpack.c.b16 %v1004, %v998
        %v1575 = vpack.c.b16 %v1005, %v999
        %v1576 = vpack.c.b16 %v1006, %v1000
        %v1577 = vpack.c.b16 %v1007, %v1001
        %v1578 = vpack.c.b16 %v1008, %v1002
        %v1579 = vpack.c.b16 %v1015, %v1009
        %v1580 = vpack.c.b16 %v1016, %v1010
        %v1581 = vpack.c.b16 %v1017, %v1011
        %v1582 = vpack.c.b16 %v1018, %v1012
        %v1583 = vpack.c.b16 %v1019, %v1013
        %v1584 = vpack.c.b16 %v1020, %v1014
        %v1585 = vpack.c.b16 %v1027, %v1021
        %v1586 = vpack.c.b16 %v1028, %v1022
        %v1587 = vpack.c.b16 %v1029, %v1023
        %v1588 = vpack.c.b16 %v1030, %v1024
        %v1589 = vpack.c.b16 %v1031, %v1025
        %v1590 = vpack.c.b16 %v1032, %v1026
        %v1591 = vpack.c.b16 %v1039, %v1033
        %v1592 = vpack.c.b16 %v1040, %v1034
        %v1593 = vpack.c.b16 %v1041, %v1035
        %v1594 = vpack.c.b16 %v1042, %v1036
        %v1595 = vpack.c.b16 %v1043, %v1037
        %v1596 = vpack.c.b16 %v1044, %v1038
        %v1597 = vpack.c.b16 %v1051, %v1045
        %v1598 = vpack.c.b16 %v1052, %v1046
        %v1599 = vpack.c.b16 %v1053, %v1047
        %v1600 = vpack.c.b16 %v1054, %v1048
        %v1601 = vpack.c.b16 %v1055, %v1049
        %v1602 = vpack.c.b16 %v1056, %v1050
        %v1603 = vpack.c.b16 %v1063, %v1057
        %v1604 = vpack.c.b16 %v1064, %v1058
        %v1605 = vpack.c.b16 %v1065, %v1059
        %v1606 = vpack.c.b16 %v1066, %v1060
        %v1607 = vpack.c.b16 %v1067, %v1061
        %v1608 = vpack.c.b16 %v1068, %v1062
        %v1609 = vpack.c.b16 %v1075, %v1069
        %v1610 = vpack.c.b16 %v1076, %v1070
        %v1611 = vpack.c.b16 %v1077, %v1071
        %v1612 = vpack.c.b16 %v1078, %v1072
        %v1613 = vpack.c.b16 %v1079, %v1073
        %v1614 = vpack.c.b16 %v1080, %v1074
        %v1615 = vpack.c.b16 %v1087, %v1081
        %v1616 = vpack.c.b16 %v1088, %v1082
        %v1617 = vpack.c.b16 %v1089, %v1083
        %v1618 = vpack.c.b16 %v1090, %v1084
        %v1619 = vpack.c.b16 %v1091, %v1085
        %v1620 = vpack.c.b16 %v1092, %v1086
        %v1621 = vpack.c.b16 %v1099, %v1093
        %v1622 = vpack.c.b16 %v1100, %v1094
        %v1623 = vpack.c.b16 %v1101, %v1095
        %v1624 = vpack.c.b16 %v1102, %v1096
        %v1625 = vpack.c.b16 %v1103, %v1097
        %v1626 = vpack.c.b16 %v1104, %v1098
        %v1627 = vpack.c.b16 %v1111, %v1105
        %v1628 = vpack.c.b16 %v1112, %v1106
        %v1629 = vpack.c.b16 %v1113, %v1107
        %v1630 = vpack.c.b16 %v1114, %v1108
        %v1631 = vpack.c.b16 %v1115, %v1109
        %v1632 = vpack.c.b16 %v1116, %v1110
        %v1633 = vpack.c.b16 %v1123, %v1117
        %v1634 = vpack.c.b16 %v1124, %v1118
        %v1635 = vpack.c.b16 %v1125, %v1119
        %v1636 = vpack.c.b16 %v1126, %v1120
        %v1637 = vpack.c.b16 %v1127, %v1121
        %v1638 = vpack.c.b16 %v1128, %v1122
        %v1639 = vpack.c.b16 %v1135, %v1129
        %v1640 = vpack.c.b16 %v1136, %v1130
        %v1641 = vpack.c.b16 %v1137, %v1131
        %v1642 = vpack.c.b16 %v1138, %v1132
        %v1643 = vpack.c.b16 %v1139, %v1133
        %v1644 = vpack.c.b16 %v1140, %v1134
        %v1645 = vpack.c.b16 %v1147, %v1141
        %v1646 = vpack.c.b16 %v1148, %v1142
        %v1647 = vpack.c.b16 %v1149, %v1143
        %v1648 = vpack.c.b16 %v1150, %v1144
        %v1649 = vpack.c.b16 %v1151, %v1145
        %v1650 = vpack.c.b16 %v1152, %v1146
        %v1651 = vpack.c.b16 %v1159, %v1153
        %v1652 = vpack.c.b16 %v1160, %v1154
        %v1653 = vpack.c.b16 %v1161, %v1155
        %v1654 = vpack.c.b16 %v1162, %v1156
        %v1655 = vpack.c.b16 %v1163, %v1157
        %v1656 = vpack.c.b16 %v1164, %v1158
        %v1657 = vpack.c.b16 %v1171, %v1165
        %v1658 = vpack.c.b16 %v1172, %v1166
        %v1659 = vpack.c.b16 %v1173, %v1167
        %v1660 = vpack.c.b16 %v1174, %v1168
        %v1661 = vpack.c.b16 %v1175, %v1169
        %v1662 = vpack.c.b16 %v1176, %v1170
        %v1663 = vpack.c.b16 %v1183, %v1177
        %v1664 = vpack.c.b16 %v1184, %v1178
        %v1665 = vpack.c.b16 %v1185, %v1179
        %v1666 = vpack.c.b16 %v1186, %v1180
        %v1667 = vpack.c.b16 %v1187, %v1181
        %v1668 = vpack.c.b16 %v1188, %v1182
        %v1669 = vpack.c.b16 %v1195, %v1189
        %v1670 = vpack.c.b16 %v1196, %v1190
        %v1671 = vpack.c.b16 %v1197, %v1191
        %v1672 = vpack.c.b16 %v1198, %v1192
        %v1673 = vpack.c.b16 %v1199, %v1193
        %v1674 = vpack.c.b16 %v1200, %v1194
        %v1675 = vpack.c.b16 %v1207, %v1201
        %v1676 = vpack.c.b16 %v1208, %v1202
        %v1677 = vpack.c.b16 %v1209, %v1203
        %v1678 = vpack.c.b16 %v1210, %v1204
        %v1679 = vpack.c.b16 %v1211, %v1205
        %v1680 = vpack.c.b16 %v1212, %v1206
        %v1681 = vpack.c.b16 %v1219, %v1213
        %v1682 = vpack.c.b16 %v1220, %v1214
        %v1683 = vpack.c.b16 %v1221, %v1215
        %v1684 = vpack.c.b16 %v1222, %v1216
        %v1685 = vpack.c.b16 %v1223, %v1217
        %v1686 = vpack.c.b16 %v1224, %v1218
        %v1687 = vpack.c.b16 %v1231, %v1225
        %v1688 = vpack.c.b16 %v1232, %v1226
        %v1689 = vpack.c.b16 %v1233, %v1227
        %v1690 = vpack.c.b16 %v1234, %v1228
        %v1691 = vpack.c.b16 %v1235, %v1229
        %v1692 = vpack.c.b16 %v1236, %v1230
        %v1693 = vpack.c.b16 %v1243, %v1237
        %v1694 = vpack.c.b16 %v1244, %v1238
        %v1695 = vpack.c.b16 %v1245, %v1239
        %v1696 = vpack.c.b16 %v1246, %v1240
        %v1697 = vpack.c.b16 %v1247, %v1241
        %v1698 = vpack.c.b16 %v1248, %v1242
        %v1699 = vpack.c.b16 %v1255, %v1249
        %v1700 = vpack.c.b16 %v1256, %v1250
        %v1701 = vpack.c.b16 %v1257, %v1251
        %v1702 = vpack.c.b16 %v1258, %v1252
        %v1703 = vpack.c.b16 %v1259, %v1253
        %v1704 = vpack.c.b16 %v1260, %v1254
        %v1705 = vpack.c.b16 %v1267, %v1261
        %v1706 = vpack.c.b16 %v1268, %v1262
        %v1707 = vpack.c.b16 %v1269, %v1263
        %v1708 = vpack.c.b16 %v1270, %v1264
        %v1709 = vpack.c.b16 %v1271, %v1265
        %v1710 = vpack.c.b16 %v1272, %v1266
        %v1711 = vpack.c.b16 %v1279, %v1273
        %v1712 = vpack.c.b16 %v1280, %v1274
        %v1713 = vpack.c.b16 %v1281, %v1275
        %v1714 = vpack.c.b16 %v1282, %v1276
        %v1715 = vpack.c.b16 %v1283, %v1277
        %v1716 = vpack.c.b16 %v1284, %v1278
        %v1717 = vpack.c.b16 %v1291, %v1285
        %v1718 = vpack.c.b16 %v1292, %v1286
        %v1719 = vpack.c.b16 %v1293, %v1287
        %v1720 = vpack.c.b16 %v1294, %v1288
        %v1721 = vpack.c.b16 %v1295, %v1289
        %v1722 = vpack.c.b16 %v1296, %v1290
        %v1723 = vpack.c.b16 %v1303, %v1297
        %v1724 = vpack.c.b16 %v1304, %v1298
        %v1725 = vpack.c.b16 %v1305, %v1299
        %v1726 = vpack.c.b16 %v1306, %v1300
        %v1727 = vpack.c.b16 %v1307, %v1301
        %v1728 = vpack.c.b16 %v1308, %v1302
        %v1729 = vpack.c.b16 %v1315, %v1309
        %v1730 = vpack.c.b16 %v1316, %v1310
        %v1731 = vpack.c.b16 %v1317, %v1311
        %v1732 = vpack.c.b16 %v1318, %v1312
        %v1733 = vpack.c.b16 %v1319, %v1313
        %v1734 = vpack.c.b16 %v1320, %v1314
        %v1735 = vpack.c.b16 %v1327, %v1321
        %v1736 = vpack.c.b16 %v1328, %v1322
        %v1737 = vpack.c.b16 %v1329, %v1323
        %v1738 = vpack.c.b16 %v1330, %v1324
        %v1739 = vpack.c.b16 %v1331, %v1325
        %v1740 = vpack.c.b16 %v1332, %v1326
        %v1741 = vpack.c.b16 %v1339, %v1333
        %v1742 = vpack.c.b16 %v1340, %v1334
        %v1743 = vpack.c.b16 %v1341, %v1335
        %v1744 = vpack.c.b16 %v1342, %v1336
        %v1745 = vpack.c.b16 %v1343, %v1337
        %v1746 = vpack.c.b16 %v1344, %v1338
        %v1747 = vpack.c.b16 %v1351, %v1345
        %v1748 = vpack.c.b16 %v1352, %v1346
        %v1749 = vpack.c.b16 %v1353, %v1347
        %v1750 = vpack.c.b16 %v1354, %v1348
        %v1751 = vpack.c.b16 %v1355, %v1349
        %v1752 = vpack.c.b16 %v1356, %v1350
        %v1753 = vpack.c.b16 %v1363, %v1357
        %v1754 = vpack.c.b16 %v1364, %v1358
        %v1755 = vpack.c.b16 %v1365, %v1359
        %v1756 = vpack.c.b16 %v1366, %v1360
        %v1757 = vpack.c.b16 %v1367, %v1361
        %v1758 = vpack.c.b16 %v1368, %v1362
        %v1759 = vpack.c.b16 %v1375, %v1369
        %v1760 = vpack.c.b16 %v1376, %v1370
        %v1761 = vpack.c.b16 %v1377, %v1371
        %v1762 = vpack.c.b16 %v1378, %v1372
        %v1763 = vpack.c.b16 %v1379, %v1373
        %v1764 = vpack.c.b16 %v1380, %v1374
        %v1765 = vpack.c.b16 %v1387, %v1381
        %v1766 = vpack.c.b16 %v1388, %v1382
        %v1767 = vpack.c.b16 %v1389, %v1383
        %v1768 = vpack.c.b16 %v1390, %v1384
        %v1769 = vpack.c.b16 %v1391, %v1385
        %v1770 = vpack.c.b16 %v1392, %v1386
        %v1771 = vpack.c.b16 %v1399, %v1393
        %v1772 = vpack.c.b16 %v1400, %v1394
        %v1773 = vpack.c.b16 %v1401, %v1395
        %v1774 = vpack.c.b16 %v1402, %v1396
        %v1775 = vpack.c.b16 %v1403, %v1397
        %v1776 = vpack.c.b16 %v1404, %v1398
        %v1777 = vpack.c.b16 %v1411, %v1405
        %v1778 = vpack.c.b16 %v1412, %v1406
        %v1779 = vpack.c.b16 %v1413, %v1407
        %v1780 = vpack.c.b16 %v1414, %v1408
        %v1781 = vpack.c.b16 %v1415, %v1409
        %v1782 = vpack.c.b16 %v1416, %v1410
        %v1783 = vpack.c.b16 %v1423, %v1417
        %v1784 = vpack.c.b16 %v1424, %v1418
        %v1785 = vpack.c.b16 %v1425, %v1419
        %v1786 = vpack.c.b16 %v1426, %v1420
        %v1787 = vpack.c.b16 %v1427, %v1421
        %v1788 = vpack.c.b16 %v1428, %v1422
        %v1789 = vpack.c.b16 %v1435, %v1429
        %v1790 = vpack.c.b16 %v1436, %v1430
        %v1791 = vpack.c.b16 %v1437, %v1431
        %v1792 = vpack.c.b16 %v1438, %v1432
        %v1793 = vpack.c.b16 %v1439, %v1433
        %v1794 = vpack.c.b16 %v1440, %v1434
        %v1795 = vpack.c.b16 %v1447, %v1441
        %v1796 = vpack.c.b16 %v1448, %v1442
        %v1797 = vpack.c.b16 %v1449, %v1443
        %v1798 = vpack.c.b16 %v1450, %v1444
        %v1799 = vpack.c.b16 %v1451, %v1445
        %v1800 = vpack.c.b16 %v1452, %v1446
        %v1801 = vpack.c.b16 %v1459, %v1453
        %v1802 = vpack.c.b16 %v1460, %v1454
        %v1803 = vpack.c.b16 %v1461, %v1455
        %v1804 = vpack.c.b16 %v1462, %v1456
        %v1805 = vpack.c.b16 %v1463, %v1457
        %v1806 = vpack.c.b16 %v1464, %v1458
        %v1807 = vpack.c.b16 %v1471, %v1465
        %v1808 = vpack.c.b16 %v1472, %v1466
        %v1809 = vpack.c.b16 %v1473, %v1467
        %v1810 = vpack.c.b16 %v1474, %v1468
        %v1811 = vpack.c.b16 %v1475, %v1469
        %v1812 = vpack.c.b16 %v1476, %v1470
        %v1813 = vpack.c.b16 %v1483, %v1477
        %v1814 = vpack.c.b16 %v1484, %v1478
        %v1815 = vpack.c.b16 %v1485, %v1479
        %v1816 = vpack.c.b16 %v1486, %v1480
        %v1817 = vpack.c.b16 %v1487, %v1481
        %v1818 = vpack.c.b16 %v1488, %v1482
        %v1819 = vpack.c.b16 %v1495, %v1489
        %v1820 = vpack.c.b16 %v1496, %v1490
        %v1821 = vpack.c.b16 %v1497, %v1491
        %v1822 = vpack.c.b16 %v1498, %v1492
        %v1823 = vpack.c.b16 %v1499, %v1493
        %v1824 = vpack.c.b16 %v1500, %v1494
        %v1825 = vpack.c.b16 %v1507, %v1501
        %v1826 = vpack.c.b16 %v1508, %v1502
        %v1827 = vpack.c.b16 %v1509, %v1503
        %v1828 = vpack.c.b16 %v1510, %v1504
        %v1829 = vpack.c.b16 %v1511, %v1505
        %v1830 = vpack.c.b16 %v1512, %v1506
        %v1831 = vpack.c.b16 %v1519, %v1513
        %v1832 = vpack.c.b16 %v1520, %v1514
        %v1833 = vpack.c.b16 %v1521, %v1515
        %v1834 = vpack.c.b16 %v1522, %v1516
        %v1835 = vpack.c.b16 %v1523, %v1517
        %v1836 = vpack.c.b16 %v1524, %v1518
        %v1837 = vpack.c.b16 %v1531, %v1525
        %v1838 = vpack.c.b16 %v1532, %v1526
        %v1839 = vpack.c.b16 %v1533, %v1527
        %v1840 = vpack.c.b16 %v1534, %v1528
        %v1841 = vpack.c.b16 %v1535, %v1529
        %v1842 = vpack.c.b16 %v1536, %v1530
        %v1843 = vpack.c.b16 %v1543, %v1537
        %v1844 = vpack.c.b16 %v1544, %v1538
        %v1845 = vpack.c.b16 %v1545, %v1539
        %v1846 = vpack.c.b16 %v1546, %v1540
        %v1847 = vpack.c.b16 %v1547, %v1541
        %v1848 = vpack.c.b16 %v1548, %v1542
        %v1849 = vpack.c.b16 %v1555, %v1549
        %v1850 = vpack.c.b16 %v1556, %v1550
        %v1851 = vpack.c.b16 %v1557, %v1551
        %v1852 = vpack.c.b16 %v1558, %v1552
        %v1853 = vpack.c.b16 %v1559, %v1553
        %v1854 = vpack.c.b16 %v1560, %v1554
        %v1855 = vpack.c.b16 %v1567, %v1561
        %v1856 = vpack.c.b16 %v1568, %v1562
        %v1857 = vpack.c.b16 %v1569, %v1563
        %v1858 = vpack.c.b16 %v1570, %v1564
        %v1859 = vpack.c.b16 %v1571, %v1565
        %v1860 = vpack.c.b16 %v1572, %v1566
        %2149 = vmatprep.subr.bf16.mxu0 %v1616
        %2150 = vmatpush1.bf16.msra.mxu0 %v1615
        %2151 = vmatprep.subr.bf16.mxu0 %v1610
        %2152 = vmatpush1.bf16.msra.mxu0 %v1609
        %2153 = vmatprep.subr.bf16.mxu0 %v1604
        %2154 = vmatpush1.bf16.msra.mxu0 %v1603
        %2155 = vmatprep.subr.bf16.mxu0 %v1598
        %2156 = vmatpush1.bf16.msra.mxu0 %v1597
        %2157 = vmatprep.subr.bf16.mxu0 %v1592
        %2158 = vmatpush1.bf16.msra.mxu0 %v1591
        %2159 = vmatprep.subr.bf16.mxu0 %v1586
        %2160 = vmatpush1.bf16.msra.mxu0 %v1585
        %2161 = vmatprep.subr.bf16.mxu0 %v1580
        %2162 = vmatpush1.bf16.msra.mxu0 %v1579
        %2163 = vmatprep.subr.bf16.mxu0 %v1574
        %2164 = vmatpush1.bf16.msra.mxu0 %v1573
        %2165 = vmatprep.subr.bf16.mxu0 %v1664
        %2166 = vmatpush2.bf16.msra.mxu0 %v1663
        %2167 = vmatprep.subr.bf16.mxu0 %v1658
        %2168 = vmatpush2.bf16.msra.mxu0 %v1657
        %2169 = vmatprep.subr.bf16.mxu0 %v1652
        %2170 = vmatpush2.bf16.msra.mxu0 %v1651
        %2171 = vmatprep.subr.bf16.mxu0 %v1646
        %2172 = vmatpush2.bf16.msra.mxu0 %v1645
        %2173 = vmatprep.subr.bf16.mxu0 %v1640
        %2174 = vmatpush2.bf16.msra.mxu0 %v1639
        %2175 = vmatprep.subr.bf16.mxu0 %v1634
        %2176 = vmatpush2.bf16.msra.mxu0 %v1633
        %2177 = vmatprep.subr.bf16.mxu0 %v1628
        %2178 = vmatpush2.bf16.msra.mxu0 %v1627
        %2179 = vmatprep.subr.bf16.mxu0 %v1622
        %2180 = vmatpush2.bf16.msra.mxu0 %v1621
        %2181 = vmatprep.mubr.bf16.mxu0 %v384
        %2182 = vmatmul.mubr.bf16.gmra.mxu0 %v383
        %v2183 = vpop.f32.mrf.mxu0
        %v2184 = vadd.f32 %v682, %v2183
        %v2185 = vpop.f32.mrf.mxu0
        %v2186 = vadd.f32 %v686, %v2185
        %v2187 = vpop.f32.mrf.mxu0
        %v2188 = vpop.f32.mrf.mxu0
        %2189 = vdwg.mxu0
        %2190 = vmatprep.subr.bf16.mxu0 %v1712
        %2191 = vmatpush1.bf16.msra.mxu0 %v1711
        %2192 = vmatprep.subr.bf16.mxu0 %v1706
        %2193 = vmatpush1.bf16.msra.mxu0 %v1705
        %2194 = vmatprep.subr.bf16.mxu0 %v1700
        %2195 = vmatpush1.bf16.msra.mxu0 %v1699
        %2196 = vmatprep.subr.bf16.mxu0 %v1694
        %2197 = vmatpush1.bf16.msra.mxu0 %v1693
        %2198 = vmatprep.subr.bf16.mxu0 %v1688
        %2199 = vmatpush1.bf16.msra.mxu0 %v1687
        %2200 = vmatprep.subr.bf16.mxu0 %v1682
        %2201 = vmatpush1.bf16.msra.mxu0 %v1681
        %2202 = vmatprep.subr.bf16.mxu0 %v1676
        %2203 = vmatpush1.bf16.msra.mxu0 %v1675
        %2204 = vmatprep.subr.bf16.mxu0 %v1670
        %2205 = vmatpush1.bf16.msra.mxu0 %v1669
        %2206 = vmatprep.subr.bf16.mxu0 %v1760
        %2207 = vmatpush2.bf16.msra.mxu0 %v1759
        %2208 = vmatprep.subr.bf16.mxu0 %v1754
        %2209 = vmatpush2.bf16.msra.mxu0 %v1753
        %2210 = vmatprep.subr.bf16.mxu0 %v1748
        %2211 = vmatpush2.bf16.msra.mxu0 %v1747
        %2212 = vmatprep.subr.bf16.mxu0 %v1742
        %2213 = vmatpush2.bf16.msra.mxu0 %v1741
        %2214 = vmatprep.subr.bf16.mxu0 %v1736
        %2215 = vmatpush2.bf16.msra.mxu0 %v1735
        %2216 = vmatprep.subr.bf16.mxu0 %v1730
        %2217 = vmatpush2.bf16.msra.mxu0 %v1729
        %2218 = vmatprep.subr.bf16.mxu0 %v1724
        %2219 = vmatpush2.bf16.msra.mxu0 %v1723
        %2220 = vmatprep.subr.bf16.mxu0 %v1718
        %2221 = vmatpush2.bf16.msra.mxu0 %v1717
        %2222 = vmatprep.mubr.bf16.mxu0 %v386
        %2223 = vmatmul.mubr.bf16.gmra.mxu0 %v385
        %v2224 = vpop.f32.mrf.mxu0
        %v2225 = vadd.f32 %v2184, %v2224
        %v2226 = vpop.f32.mrf.mxu0
        %v2227 = vadd.f32 %v2186, %v2226
        %v2228 = vpop.f32.mrf.mxu0
        %v2229 = vpop.f32.mrf.mxu0
        %2230 = vdwg.mxu0
        %2231 = vmatprep.subr.bf16.mxu0 %v1808
        %2232 = vmatpush1.bf16.msra.mxu0 %v1807
        %2233 = vmatprep.subr.bf16.mxu0 %v1802
        %2234 = vmatpush1.bf16.msra.mxu0 %v1801
        %2235 = vmatprep.subr.bf16.mxu0 %v1796
        %2236 = vmatpush1.bf16.msra.mxu0 %v1795
        %2237 = vmatprep.subr.bf16.mxu0 %v1790
        %2238 = vmatpush1.bf16.msra.mxu0 %v1789
        %2239 = vmatprep.subr.bf16.mxu0 %v1784
        %2240 = vmatpush1.bf16.msra.mxu0 %v1783
        %2241 = vmatprep.subr.bf16.mxu0 %v1778
        %2242 = vmatpush1.bf16.msra.mxu0 %v1777
        %2243 = vmatprep.subr.bf16.mxu0 %v1772
        %2244 = vmatpush1.bf16.msra.mxu0 %v1771
        %2245 = vmatprep.subr.bf16.mxu0 %v1766
        %2246 = vmatpush1.bf16.msra.mxu0 %v1765
        %2247 = vmatprep.subr.bf16.mxu0 %v1856
        %2248 = vmatpush2.bf16.msra.mxu0 %v1855
        %2249 = vmatprep.subr.bf16.mxu0 %v1850
        %2250 = vmatpush2.bf16.msra.mxu0 %v1849
        %2251 = vmatprep.subr.bf16.mxu0 %v1844
        %2252 = vmatpush2.bf16.msra.mxu0 %v1843
        %2253 = vmatprep.subr.bf16.mxu0 %v1838
        %2254 = vmatpush2.bf16.msra.mxu0 %v1837
        %2255 = vmatprep.subr.bf16.mxu0 %v1832
        %2256 = vmatpush2.bf16.msra.mxu0 %v1831
        %2257 = vmatprep.subr.bf16.mxu0 %v1826
        %2258 = vmatpush2.bf16.msra.mxu0 %v1825
        %2259 = vmatprep.subr.bf16.mxu0 %v1820
        %2260 = vmatpush2.bf16.msra.mxu0 %v1819
        %2261 = vmatprep.subr.bf16.mxu0 %v1814
        %2262 = vmatpush2.bf16.msra.mxu0 %v1813
        %2263 = vmatprep.mubr.bf16.mxu0 %v388
        %2264 = vmatmul.mubr.bf16.gmra.mxu0 %v387
        %v2265 = vpop.f32.mrf.mxu0
        %v2266 = vadd.f32 %v2225, %v2265
        %v2267 = vpop.f32.mrf.mxu0
        %v2268 = vadd.f32 %v2227, %v2267
        %v2269 = vpop.f32.mrf.mxu0
        %v2270 = vpop.f32.mrf.mxu0
        %2271 = vdwg.mxu0
        %2272 = vmatprep.subr.bf16.mxu0 %v1618
        %2273 = vmatpush1.bf16.msra.mxu0 %v1617
        %2274 = vmatprep.subr.bf16.mxu0 %v1612
        %2275 = vmatpush1.bf16.msra.mxu0 %v1611
        %2276 = vmatprep.subr.bf16.mxu0 %v1606
        %2277 = vmatpush1.bf16.msra.mxu0 %v1605
        %2278 = vmatprep.subr.bf16.mxu0 %v1600
        %2279 = vmatpush1.bf16.msra.mxu0 %v1599
        %2280 = vmatprep.subr.bf16.mxu0 %v1594
        %2281 = vmatpush1.bf16.msra.mxu0 %v1593
        %2282 = vmatprep.subr.bf16.mxu0 %v1588
        %2283 = vmatpush1.bf16.msra.mxu0 %v1587
        %2284 = vmatprep.subr.bf16.mxu0 %v1582
        %2285 = vmatpush1.bf16.msra.mxu0 %v1581
        %2286 = vmatprep.subr.bf16.mxu0 %v1576
        %2287 = vmatpush1.bf16.msra.mxu0 %v1575
        %2288 = vmatprep.subr.bf16.mxu0 %v1666
        %2289 = vmatpush2.bf16.msra.mxu0 %v1665
        %2290 = vmatprep.subr.bf16.mxu0 %v1660
        %2291 = vmatpush2.bf16.msra.mxu0 %v1659
        %2292 = vmatprep.subr.bf16.mxu0 %v1654
        %2293 = vmatpush2.bf16.msra.mxu0 %v1653
        %2294 = vmatprep.subr.bf16.mxu0 %v1648
        %2295 = vmatpush2.bf16.msra.mxu0 %v1647
        %2296 = vmatprep.subr.bf16.mxu0 %v1642
        %2297 = vmatpush2.bf16.msra.mxu0 %v1641
        %2298 = vmatprep.subr.bf16.mxu0 %v1636
        %2299 = vmatpush2.bf16.msra.mxu0 %v1635
        %2300 = vmatprep.subr.bf16.mxu0 %v1630
        %2301 = vmatpush2.bf16.msra.mxu0 %v1629
        %2302 = vmatprep.subr.bf16.mxu0 %v1624
        %2303 = vmatpush2.bf16.msra.mxu0 %v1623
        %2304 = vmatprep.mubr.bf16.mxu0 %v384
        %2305 = vmatmul.mubr.bf16.gmra.mxu0 %v383
        %v2306 = vpop.f32.mrf.mxu0
        %v2307 = vadd.f32 %v690, %v2306
        %v2308 = vpop.f32.mrf.mxu0
        %v2309 = vadd.f32 %v694, %v2308
        %v2310 = vpop.f32.mrf.mxu0
        %v2311 = vpop.f32.mrf.mxu0
        %2312 = vdwg.mxu0
        %2313 = vmatprep.subr.bf16.mxu0 %v1714
        %2314 = vmatpush1.bf16.msra.mxu0 %v1713
        %2315 = vmatprep.subr.bf16.mxu0 %v1708
        %2316 = vmatpush1.bf16.msra.mxu0 %v1707
        %2317 = vmatprep.subr.bf16.mxu0 %v1702
        %2318 = vmatpush1.bf16.msra.mxu0 %v1701
        %2319 = vmatprep.subr.bf16.mxu0 %v1696
        %2320 = vmatpush1.bf16.msra.mxu0 %v1695
        %2321 = vmatprep.subr.bf16.mxu0 %v1690
        %2322 = vmatpush1.bf16.msra.mxu0 %v1689
        %2323 = vmatprep.subr.bf16.mxu0 %v1684
        %2324 = vmatpush1.bf16.msra.mxu0 %v1683
        %2325 = vmatprep.subr.bf16.mxu0 %v1678
        %2326 = vmatpush1.bf16.msra.mxu0 %v1677
        %2327 = vmatprep.subr.bf16.mxu0 %v1672
        %2328 = vmatpush1.bf16.msra.mxu0 %v1671
        %2329 = vmatprep.subr.bf16.mxu0 %v1762
        %2330 = vmatpush2.bf16.msra.mxu0 %v1761
        %2331 = vmatprep.subr.bf16.mxu0 %v1756
        %2332 = vmatpush2.bf16.msra.mxu0 %v1755
        %2333 = vmatprep.subr.bf16.mxu0 %v1750
        %2334 = vmatpush2.bf16.msra.mxu0 %v1749
        %2335 = vmatprep.subr.bf16.mxu0 %v1744
        %2336 = vmatpush2.bf16.msra.mxu0 %v1743
        %2337 = vmatprep.subr.bf16.mxu0 %v1738
        %2338 = vmatpush2.bf16.msra.mxu0 %v1737
        %2339 = vmatprep.subr.bf16.mxu0 %v1732
        %2340 = vmatpush2.bf16.msra.mxu0 %v1731
        %2341 = vmatprep.subr.bf16.mxu0 %v1726
        %2342 = vmatpush2.bf16.msra.mxu0 %v1725
        %2343 = vmatprep.subr.bf16.mxu0 %v1720
        %2344 = vmatpush2.bf16.msra.mxu0 %v1719
        %2345 = vmatprep.mubr.bf16.mxu0 %v386
        %2346 = vmatmul.mubr.bf16.gmra.mxu0 %v385
        %v2347 = vpop.f32.mrf.mxu0
        %v2348 = vadd.f32 %v2307, %v2347
        %v2349 = vpop.f32.mrf.mxu0
        %v2350 = vadd.f32 %v2309, %v2349
        %v2351 = vpop.f32.mrf.mxu0
        %v2352 = vpop.f32.mrf.mxu0
        %2353 = vdwg.mxu0
        %2354 = vmatprep.subr.bf16.mxu0 %v1810
        %2355 = vmatpush1.bf16.msra.mxu0 %v1809
        %2356 = vmatprep.subr.bf16.mxu0 %v1804
        %2357 = vmatpush1.bf16.msra.mxu0 %v1803
        %2358 = vmatprep.subr.bf16.mxu0 %v1798
        %2359 = vmatpush1.bf16.msra.mxu0 %v1797
        %2360 = vmatprep.subr.bf16.mxu0 %v1792
        %2361 = vmatpush1.bf16.msra.mxu0 %v1791
        %2362 = vmatprep.subr.bf16.mxu0 %v1786
        %2363 = vmatpush1.bf16.msra.mxu0 %v1785
        %2364 = vmatprep.subr.bf16.mxu0 %v1780
        %2365 = vmatpush1.bf16.msra.mxu0 %v1779
        %2366 = vmatprep.subr.bf16.mxu0 %v1774
        %2367 = vmatpush1.bf16.msra.mxu0 %v1773
        %2368 = vmatprep.subr.bf16.mxu0 %v1768
        %2369 = vmatpush1.bf16.msra.mxu0 %v1767
        %2370 = vmatprep.subr.bf16.mxu0 %v1858
        %2371 = vmatpush2.bf16.msra.mxu0 %v1857
        %2372 = vmatprep.subr.bf16.mxu0 %v1852
        %2373 = vmatpush2.bf16.msra.mxu0 %v1851
        %2374 = vmatprep.subr.bf16.mxu0 %v1846
        %2375 = vmatpush2.bf16.msra.mxu0 %v1845
        %2376 = vmatprep.subr.bf16.mxu0 %v1840
        %2377 = vmatpush2.bf16.msra.mxu0 %v1839
        %2378 = vmatprep.subr.bf16.mxu0 %v1834
        %2379 = vmatpush2.bf16.msra.mxu0 %v1833
        %2380 = vmatprep.subr.bf16.mxu0 %v1828
        %2381 = vmatpush2.bf16.msra.mxu0 %v1827
        %2382 = vmatprep.subr.bf16.mxu0 %v1822
        %2383 = vmatpush2.bf16.msra.mxu0 %v1821
        %2384 = vmatprep.subr.bf16.mxu0 %v1816
        %2385 = vmatpush2.bf16.msra.mxu0 %v1815
        %2386 = vmatprep.mubr.bf16.mxu0 %v388
        %2387 = vmatmul.mubr.bf16.gmra.mxu0 %v387
        %v2388 = vpop.f32.mrf.mxu0
        %v2389 = vadd.f32 %v2348, %v2388
        %v2390 = vpop.f32.mrf.mxu0
        %v2391 = vadd.f32 %v2350, %v2390
        %v2392 = vpop.f32.mrf.mxu0
        %v2393 = vpop.f32.mrf.mxu0
        %2394 = vdwg.mxu0
        %2395 = vmatprep.subr.bf16.mxu0 %v1620
        %2396 = vmatpush1.bf16.msra.mxu0 %v1619
        %2397 = vmatprep.subr.bf16.mxu0 %v1614
        %2398 = vmatpush1.bf16.msra.mxu0 %v1613
        %2399 = vmatprep.subr.bf16.mxu0 %v1608
        %2400 = vmatpush1.bf16.msra.mxu0 %v1607
        %2401 = vmatprep.subr.bf16.mxu0 %v1602
        %2402 = vmatpush1.bf16.msra.mxu0 %v1601
        %2403 = vmatprep.subr.bf16.mxu0 %v1596
        %2404 = vmatpush1.bf16.msra.mxu0 %v1595
        %2405 = vmatprep.subr.bf16.mxu0 %v1590
        %2406 = vmatpush1.bf16.msra.mxu0 %v1589
        %2407 = vmatprep.subr.bf16.mxu0 %v1584
        %2408 = vmatpush1.bf16.msra.mxu0 %v1583
        %2409 = vmatprep.subr.bf16.mxu0 %v1578
        %2410 = vmatpush1.bf16.msra.mxu0 %v1577
        %2411 = vmatprep.subr.bf16.mxu0 %v1668
        %2412 = vmatpush2.bf16.msra.mxu0 %v1667
        %2413 = vmatprep.subr.bf16.mxu0 %v1662
        %2414 = vmatpush2.bf16.msra.mxu0 %v1661
        %2415 = vmatprep.subr.bf16.mxu0 %v1656
        %2416 = vmatpush2.bf16.msra.mxu0 %v1655
        %2417 = vmatprep.subr.bf16.mxu0 %v1650
        %2418 = vmatpush2.bf16.msra.mxu0 %v1649
        %2419 = vmatprep.subr.bf16.mxu0 %v1644
        %2420 = vmatpush2.bf16.msra.mxu0 %v1643
        %2421 = vmatprep.subr.bf16.mxu0 %v1638
        %2422 = vmatpush2.bf16.msra.mxu0 %v1637
        %2423 = vmatprep.subr.bf16.mxu0 %v1632
        %2424 = vmatpush2.bf16.msra.mxu0 %v1631
        %2425 = vmatprep.subr.bf16.mxu0 %v1626
        %2426 = vmatpush2.bf16.msra.mxu0 %v1625
        %2427 = vmatprep.mubr.bf16.mxu0 %v384
        %2428 = vmatmul.mubr.bf16.gmra.mxu0 %v383
        %v2429 = vpop.f32.mrf.mxu0
        %v2430 = vadd.f32 %v698, %v2429
        %v2431 = vpop.f32.mrf.mxu0
        %v2432 = vadd.f32 %v702, %v2431
        %v2433 = vpop.f32.mrf.mxu0
        %v2434 = vpop.f32.mrf.mxu0
        %2435 = vdwg.mxu0
        %2436 = vmatprep.subr.bf16.mxu0 %v1716
        %2437 = vmatpush1.bf16.msra.mxu0 %v1715
        %2438 = vmatprep.subr.bf16.mxu0 %v1710
        %2439 = vmatpush1.bf16.msra.mxu0 %v1709
        %2440 = vmatprep.subr.bf16.mxu0 %v1704
        %2441 = vmatpush1.bf16.msra.mxu0 %v1703
        %2442 = vmatprep.subr.bf16.mxu0 %v1698
        %2443 = vmatpush1.bf16.msra.mxu0 %v1697
        %2444 = vmatprep.subr.bf16.mxu0 %v1692
        %2445 = vmatpush1.bf16.msra.mxu0 %v1691
        %2446 = vmatprep.subr.bf16.mxu0 %v1686
        %2447 = vmatpush1.bf16.msra.mxu0 %v1685
        %2448 = vmatprep.subr.bf16.mxu0 %v1680
        %2449 = vmatpush1.bf16.msra.mxu0 %v1679
        %2450 = vmatprep.subr.bf16.mxu0 %v1674
        %2451 = vmatpush1.bf16.msra.mxu0 %v1673
        %2452 = vmatprep.subr.bf16.mxu0 %v1764
        %2453 = vmatpush2.bf16.msra.mxu0 %v1763
        %2454 = vmatprep.subr.bf16.mxu0 %v1758
        %2455 = vmatpush2.bf16.msra.mxu0 %v1757
        %2456 = vmatprep.subr.bf16.mxu0 %v1752
        %2457 = vmatpush2.bf16.msra.mxu0 %v1751
        %2458 = vmatprep.subr.bf16.mxu0 %v1746
        %2459 = vmatpush2.bf16.msra.mxu0 %v1745
        %2460 = vmatprep.subr.bf16.mxu0 %v1740
        %2461 = vmatpush2.bf16.msra.mxu0 %v1739
        %2462 = vmatprep.subr.bf16.mxu0 %v1734
        %2463 = vmatpush2.bf16.msra.mxu0 %v1733
        %2464 = vmatprep.subr.bf16.mxu0 %v1728
        %2465 = vmatpush2.bf16.msra.mxu0 %v1727
        %2466 = vmatprep.subr.bf16.mxu0 %v1722
        %2467 = vmatpush2.bf16.msra.mxu0 %v1721
        %2468 = vmatprep.mubr.bf16.mxu0 %v386
        %2469 = vmatmul.mubr.bf16.gmra.mxu0 %v385
        %v2470 = vpop.f32.mrf.mxu0
        %v2471 = vadd.f32 %v2430, %v2470
        %v2472 = vpop.f32.mrf.mxu0
        %v2473 = vadd.f32 %v2432, %v2472
        %v2474 = vpop.f32.mrf.mxu0
        %v2475 = vpop.f32.mrf.mxu0
        %2476 = vdwg.mxu0
        %2477 = vmatprep.subr.bf16.mxu0 %v1812
        %2478 = vmatpush1.bf16.msra.mxu0 %v1811
        %2479 = vmatprep.subr.bf16.mxu0 %v1806
        %2480 = vmatpush1.bf16.msra.mxu0 %v1805
        %2481 = vmatprep.subr.bf16.mxu0 %v1800
        %2482 = vmatpush1.bf16.msra.mxu0 %v1799
        %2483 = vmatprep.subr.bf16.mxu0 %v1794
        %2484 = vmatpush1.bf16.msra.mxu0 %v1793
        %2485 = vmatprep.subr.bf16.mxu0 %v1788
        %2486 = vmatpush1.bf16.msra.mxu0 %v1787
        %2487 = vmatprep.subr.bf16.mxu0 %v1782
        %2488 = vmatpush1.bf16.msra.mxu0 %v1781
        %2489 = vmatprep.subr.bf16.mxu0 %v1776
        %2490 = vmatpush1.bf16.msra.mxu0 %v1775
        %2491 = vmatprep.subr.bf16.mxu0 %v1770
        %2492 = vmatpush1.bf16.msra.mxu0 %v1769
        %2493 = vmatprep.subr.bf16.mxu0 %v1860
        %2494 = vmatpush2.bf16.msra.mxu0 %v1859
        %2495 = vmatprep.subr.bf16.mxu0 %v1854
        %2496 = vmatpush2.bf16.msra.mxu0 %v1853
        %2497 = vmatprep.subr.bf16.mxu0 %v1848
        %2498 = vmatpush2.bf16.msra.mxu0 %v1847
        %2499 = vmatprep.subr.bf16.mxu0 %v1842
        %2500 = vmatpush2.bf16.msra.mxu0 %v1841
        %2501 = vmatprep.subr.bf16.mxu0 %v1836
        %2502 = vmatpush2.bf16.msra.mxu0 %v1835
        %2503 = vmatprep.subr.bf16.mxu0 %v1830
        %2504 = vmatpush2.bf16.msra.mxu0 %v1829
        %2505 = vmatprep.subr.bf16.mxu0 %v1824
        %2506 = vmatpush2.bf16.msra.mxu0 %v1823
        %2507 = vmatprep.subr.bf16.mxu0 %v1818
        %2508 = vmatpush2.bf16.msra.mxu0 %v1817
        %2509 = vmatprep.mubr.bf16.mxu0 %v388
        %2510 = vmatmul.mubr.bf16.gmra.mxu0 %v387
        %v2511 = vpop.f32.mrf.mxu0
        %v2512 = vadd.f32 %v2471, %v2511
        %v2513 = vpop.f32.mrf.mxu0
        %v2514 = vadd.f32 %v2473, %v2513
        %v2515 = vpop.f32.mrf.mxu0
        %v2516 = vpop.f32.mrf.mxu0
        %2517 = vdwg.mxu0
        %v2518 = vmax.f32 %v2266, 0.0
        %v2519 = vmax.f32 %v2268, 0.0
        %v2520 = vmax.f32 %v2389, 0.0
        %v2521 = vmax.f32 %v2391, 0.0
        %v2522 = vmax.f32 %v2512, 0.0
        %v2523 = vmax.f32 %v2514, 0.0
        %v2524 = vpack.c.bf16 %v2518, %v2518
        %v2525 = vpack.c.bf16 %v2519, %v2519
        %v2526 = vpack.c.bf16 %v2520, %v2520
        %v2527 = vpack.c.bf16 %v2521, %v2521
        %v2528 = vpack.c.bf16 %v2522, %v2522
        %v2529 = vpack.c.bf16 %v2523, %v2523
        %v2530 = vld [vmem:[#allocation8] sm:$0xff]
        %v2531 = vld [vmem:[#allocation8 + $0x8] sm:$0xff]
        %v2532 = vld [vmem:[#allocation8 + $0x10] sm:$0xff]
        %v2533 = vld [vmem:[#allocation8 + $0x18] sm:$0xff]
        %v2534 = vld [vmem:[#allocation8 + $0x20] sm:$0xff]
        %v2535 = vld [vmem:[#allocation8 + $0x28] sm:$0xff]
        %v2536 = vld [vmem:[#allocation8 + $0x30] sm:$0xff]
        %v2537 = vld [vmem:[#allocation8 + $0x38] sm:$0xff]
        %v2538 = vld [vmem:[#allocation8 + $0x40] sm:$0xff]
        %v2539 = vld [vmem:[#allocation8 + $0x48] sm:$0xff]
        %v2540 = vld [vmem:[#allocation8 + $0x50] sm:$0xff]
        %v2541 = vld [vmem:[#allocation8 + $0x58] sm:$0xff]
        %v2542 = vld [vmem:[#allocation8 + $0x60] sm:$0xff]
        %v2543 = vld [vmem:[#allocation8 + $0x68] sm:$0xff]
        %v2544 = vld [vmem:[#allocation8 + $0x70] sm:$0xff]
        %v2545 = vld [vmem:[#allocation8 + $0x78] sm:$0xff]
        %v2546 = vld [vmem:[#allocation8 + $0x80] sm:$0xff]
        %v2547 = vld [vmem:[#allocation8 + $0x88] sm:$0xff]
        %v2548 = vld [vmem:[#allocation8 + $0x90] sm:$0xff]
        %v2549 = vld [vmem:[#allocation8 + $0x98] sm:$0xff]
        %v2550 = vld [vmem:[#allocation8 + $0xa0] sm:$0xff]
        %v2551 = vld [vmem:[#allocation8 + $0xa8] sm:$0xff]
        %v2552 = vld [vmem:[#allocation8 + $0xb0] sm:$0xff]
        %v2553 = vld [vmem:[#allocation8 + $0xb8] sm:$0xff]
        %v2554 = vld [vmem:[#allocation8 + $0xc0] sm:$0xff]
        %v2555 = vld [vmem:[#allocation8 + $0xc8] sm:$0xff]
        %v2556 = vld [vmem:[#allocation8 + $0xd0] sm:$0xff]
        %v2557 = vld [vmem:[#allocation8 + $0xd8] sm:$0xff]
        %v2558 = vld [vmem:[#allocation8 + $0xe0] sm:$0xff]
        %v2559 = vld [vmem:[#allocation8 + $0xe8] sm:$0xff]
        %v2560 = vld [vmem:[#allocation8 + $0xf0] sm:$0xff]
        %v2561 = vld [vmem:[#allocation8 + $0xf8] sm:$0xff]
        %v2562 = vld [vmem:[#allocation8 + $0x100] sm:$0xff]
        %v2563 = vld [vmem:[#allocation8 + $0x108] sm:$0xff]
        %v2564 = vld [vmem:[#allocation8 + $0x110] sm:$0xff]
        %v2565 = vld [vmem:[#allocation8 + $0x118] sm:$0xff]
        %v2566 = vld [vmem:[#allocation8 + $0x120] sm:$0xff]
        %v2567 = vld [vmem:[#allocation8 + $0x128] sm:$0xff]
        %v2568 = vld [vmem:[#allocation8 + $0x130] sm:$0xff]
        %v2569 = vld [vmem:[#allocation8 + $0x138] sm:$0xff]
        %v2570 = vld [vmem:[#allocation8 + $0x140] sm:$0xff]
        %v2571 = vld [vmem:[#allocation8 + $0x148] sm:$0xff]
        %v2572 = vld [vmem:[#allocation8 + $0x150] sm:$0xff]
        %v2573 = vld [vmem:[#allocation8 + $0x158] sm:$0xff]
        %v2574 = vld [vmem:[#allocation8 + $0x160] sm:$0xff]
        %v2575 = vld [vmem:[#allocation8 + $0x168] sm:$0xff]
        %v2576 = vld [vmem:[#allocation8 + $0x170] sm:$0xff]
        %v2577 = vld [vmem:[#allocation8 + $0x178] sm:$0xff]
        %v2578 = vld [vmem:[#allocation8 + $0x180] sm:$0xff]
        %v2579 = vld [vmem:[#allocation8 + $0x188] sm:$0xff]
        %v2580 = vld [vmem:[#allocation8 + $0x190] sm:$0xff]
        %v2581 = vld [vmem:[#allocation8 + $0x198] sm:$0xff]
        %v2582 = vld [vmem:[#allocation8 + $0x1a0] sm:$0xff]
        %v2583 = vld [vmem:[#allocation8 + $0x1a8] sm:$0xff]
        %v2584 = vld [vmem:[#allocation8 + $0x1b0] sm:$0xff]
        %v2585 = vld [vmem:[#allocation8 + $0x1b8] sm:$0xff]
        %v2586 = vld [vmem:[#allocation8 + $0x1c0] sm:$0xff]
        %v2587 = vld [vmem:[#allocation8 + $0x1c8] sm:$0xff]
        %v2588 = vld [vmem:[#allocation8 + $0x1d0] sm:$0xff]
        %v2589 = vld [vmem:[#allocation8 + $0x1d8] sm:$0xff]
        %v2590 = vld [vmem:[#allocation8 + $0x1e0] sm:$0xff]
        %v2591 = vld [vmem:[#allocation8 + $0x1e8] sm:$0xff]
        %v2592 = vld [vmem:[#allocation8 + $0x1f0] sm:$0xff]
        %v2593 = vld [vmem:[#allocation8 + $0x1f8] sm:$0xff]
        %v2594 = vld [vmem:[#allocation8 + $0x200] sm:$0xff]
        %v2595 = vld [vmem:[#allocation8 + $0x208] sm:$0xff]
        %v2596 = vld [vmem:[#allocation8 + $0x210] sm:$0xff]
        %v2597 = vld [vmem:[#allocation8 + $0x218] sm:$0xff]
        %v2598 = vld [vmem:[#allocation8 + $0x220] sm:$0xff]
        %v2599 = vld [vmem:[#allocation8 + $0x228] sm:$0xff]
        %v2600 = vld [vmem:[#allocation8 + $0x230] sm:$0xff]
        %v2601 = vld [vmem:[#allocation8 + $0x238] sm:$0xff]
        %v2602 = vld [vmem:[#allocation8 + $0x240] sm:$0xff]
        %v2603 = vld [vmem:[#allocation8 + $0x248] sm:$0xff]
        %v2604 = vld [vmem:[#allocation8 + $0x250] sm:$0xff]
        %v2605 = vld [vmem:[#allocation8 + $0x258] sm:$0xff]
        %v2606 = vld [vmem:[#allocation8 + $0x260] sm:$0xff]
        %v2607 = vld [vmem:[#allocation8 + $0x268] sm:$0xff]
        %v2608 = vld [vmem:[#allocation8 + $0x270] sm:$0xff]
        %v2609 = vld [vmem:[#allocation8 + $0x278] sm:$0xff]
        %v2610 = vld [vmem:[#allocation8 + $0x280] sm:$0xff]
        %v2611 = vld [vmem:[#allocation8 + $0x288] sm:$0xff]
        %v2612 = vld [vmem:[#allocation8 + $0x290] sm:$0xff]
        %v2613 = vld [vmem:[#allocation8 + $0x298] sm:$0xff]
        %v2614 = vld [vmem:[#allocation8 + $0x2a0] sm:$0xff]
        %v2615 = vld [vmem:[#allocation8 + $0x2a8] sm:$0xff]
        %v2616 = vld [vmem:[#allocation8 + $0x2b0] sm:$0xff]
        %v2617 = vld [vmem:[#allocation8 + $0x2b8] sm:$0xff]
        %v2618 = vld [vmem:[#allocation8 + $0x2c0] sm:$0xff]
        %v2619 = vld [vmem:[#allocation8 + $0x2c8] sm:$0xff]
        %v2620 = vld [vmem:[#allocation8 + $0x2d0] sm:$0xff]
        %v2621 = vld [vmem:[#allocation8 + $0x2d8] sm:$0xff]
        %v2622 = vld [vmem:[#allocation8 + $0x2e0] sm:$0xff]
        %v2623 = vld [vmem:[#allocation8 + $0x2e8] sm:$0xff]
        %v2624 = vld [vmem:[#allocation8 + $0x2f0] sm:$0xff]
        %v2625 = vld [vmem:[#allocation8 + $0x2f8] sm:$0xff]
        %v2626 = vld [vmem:[#allocation8 + $0x300] sm:$0xff]
        %v2627 = vld [vmem:[#allocation8 + $0x308] sm:$0xff]
        %v2628 = vld [vmem:[#allocation8 + $0x310] sm:$0xff]
        %v2629 = vld [vmem:[#allocation8 + $0x318] sm:$0xff]
        %v2630 = vld [vmem:[#allocation8 + $0x320] sm:$0xff]
        %v2631 = vld [vmem:[#allocation8 + $0x328] sm:$0xff]
        %v2632 = vld [vmem:[#allocation8 + $0x330] sm:$0xff]
        %v2633 = vld [vmem:[#allocation8 + $0x338] sm:$0xff]
        %v2634 = vld [vmem:[#allocation8 + $0x340] sm:$0xff]
        %v2635 = vld [vmem:[#allocation8 + $0x348] sm:$0xff]
        %v2636 = vld [vmem:[#allocation8 + $0x350] sm:$0xff]
        %v2637 = vld [vmem:[#allocation8 + $0x358] sm:$0xff]
        %v2638 = vld [vmem:[#allocation8 + $0x360] sm:$0xff]
        %v2639 = vld [vmem:[#allocation8 + $0x368] sm:$0xff]
        %v2640 = vld [vmem:[#allocation8 + $0x370] sm:$0xff]
        %v2641 = vld [vmem:[#allocation8 + $0x378] sm:$0xff]
        %v2642 = vld [vmem:[#allocation8 + $0x380] sm:$0xff]
        %v2643 = vld [vmem:[#allocation8 + $0x388] sm:$0xff]
        %v2644 = vld [vmem:[#allocation8 + $0x390] sm:$0xff]
        %v2645 = vld [vmem:[#allocation8 + $0x398] sm:$0xff]
        %v2646 = vld [vmem:[#allocation8 + $0x3a0] sm:$0xff]
        %v2647 = vld [vmem:[#allocation8 + $0x3a8] sm:$0xff]
        %v2648 = vld [vmem:[#allocation8 + $0x3b0] sm:$0xff]
        %v2649 = vld [vmem:[#allocation8 + $0x3b8] sm:$0xff]
        %v2650 = vld [vmem:[#allocation8 + $0x3c0] sm:$0xff]
        %v2651 = vld [vmem:[#allocation8 + $0x3c8] sm:$0xff]
        %v2652 = vld [vmem:[#allocation8 + $0x3d0] sm:$0xff]
        %v2653 = vld [vmem:[#allocation8 + $0x3d8] sm:$0xff]
        %v2654 = vld [vmem:[#allocation8 + $0x3e0] sm:$0xff]
        %v2655 = vld [vmem:[#allocation8 + $0x3e8] sm:$0xff]
        %v2656 = vld [vmem:[#allocation8 + $0x3f0] sm:$0xff]
        %v2657 = vld [vmem:[#allocation8 + $0x3f8] sm:$0xff]
        %v2658 = vld [vmem:[#allocation8 + $0x400] sm:$0xff]
        %v2659 = vld [vmem:[#allocation8 + $0x408] sm:$0xff]
        %v2660 = vld [vmem:[#allocation8 + $0x410] sm:$0xff]
        %v2661 = vld [vmem:[#allocation8 + $0x418] sm:$0xff]
        %v2662 = vld [vmem:[#allocation8 + $0x420] sm:$0xff]
        %v2663 = vld [vmem:[#allocation8 + $0x428] sm:$0xff]
        %v2664 = vld [vmem:[#allocation8 + $0x430] sm:$0xff]
        %v2665 = vld [vmem:[#allocation8 + $0x438] sm:$0xff]
        %v2666 = vld [vmem:[#allocation8 + $0x440] sm:$0xff]
        %v2667 = vld [vmem:[#allocation8 + $0x448] sm:$0xff]
        %v2668 = vld [vmem:[#allocation8 + $0x450] sm:$0xff]
        %v2669 = vld [vmem:[#allocation8 + $0x458] sm:$0xff]
        %v2670 = vld [vmem:[#allocation8 + $0x460] sm:$0xff]
        %v2671 = vld [vmem:[#allocation8 + $0x468] sm:$0xff]
        %v2672 = vld [vmem:[#allocation8 + $0x470] sm:$0xff]
        %v2673 = vld [vmem:[#allocation8 + $0x478] sm:$0xff]
        %v2674 = vld [vmem:[#allocation8 + $0x480] sm:$0xff]
        %v2675 = vld [vmem:[#allocation8 + $0x488] sm:$0xff]
        %v2676 = vld [vmem:[#allocation8 + $0x490] sm:$0xff]
        %v2677 = vld [vmem:[#allocation8 + $0x498] sm:$0xff]
        %v2678 = vld [vmem:[#allocation8 + $0x4a0] sm:$0xff]
        %v2679 = vld [vmem:[#allocation8 + $0x4a8] sm:$0xff]
        %v2680 = vld [vmem:[#allocation8 + $0x4b0] sm:$0xff]
        %v2681 = vld [vmem:[#allocation8 + $0x4b8] sm:$0xff]
        %v2682 = vld [vmem:[#allocation8 + $0x4c0] sm:$0xff]
        %v2683 = vld [vmem:[#allocation8 + $0x4c8] sm:$0xff]
        %v2684 = vld [vmem:[#allocation8 + $0x4d0] sm:$0xff]
        %v2685 = vld [vmem:[#allocation8 + $0x4d8] sm:$0xff]
        %v2686 = vld [vmem:[#allocation8 + $0x4e0] sm:$0xff]
        %v2687 = vld [vmem:[#allocation8 + $0x4e8] sm:$0xff]
        %v2688 = vld [vmem:[#allocation8 + $0x4f0] sm:$0xff]
        %v2689 = vld [vmem:[#allocation8 + $0x4f8] sm:$0xff]
        %v2690 = vld [vmem:[#allocation8 + $0x500] sm:$0xff]
        %v2691 = vld [vmem:[#allocation8 + $0x508] sm:$0xff]
        %v2692 = vld [vmem:[#allocation8 + $0x510] sm:$0xff]
        %v2693 = vld [vmem:[#allocation8 + $0x518] sm:$0xff]
        %v2694 = vld [vmem:[#allocation8 + $0x520] sm:$0xff]
        %v2695 = vld [vmem:[#allocation8 + $0x528] sm:$0xff]
        %v2696 = vld [vmem:[#allocation8 + $0x530] sm:$0xff]
        %v2697 = vld [vmem:[#allocation8 + $0x538] sm:$0xff]
        %v2698 = vld [vmem:[#allocation8 + $0x540] sm:$0xff]
        %v2699 = vld [vmem:[#allocation8 + $0x548] sm:$0xff]
        %v2700 = vld [vmem:[#allocation8 + $0x550] sm:$0xff]
        %v2701 = vld [vmem:[#allocation8 + $0x558] sm:$0xff]
        %v2702 = vld [vmem:[#allocation8 + $0x560] sm:$0xff]
        %v2703 = vld [vmem:[#allocation8 + $0x568] sm:$0xff]
        %v2704 = vld [vmem:[#allocation8 + $0x570] sm:$0xff]
        %v2705 = vld [vmem:[#allocation8 + $0x578] sm:$0xff]
        %v2706 = vld [vmem:[#allocation8 + $0x580] sm:$0xff]
        %v2707 = vld [vmem:[#allocation8 + $0x588] sm:$0xff]
        %v2708 = vld [vmem:[#allocation8 + $0x590] sm:$0xff]
        %v2709 = vld [vmem:[#allocation8 + $0x598] sm:$0xff]
        %v2710 = vld [vmem:[#allocation8 + $0x5a0] sm:$0xff]
        %v2711 = vld [vmem:[#allocation8 + $0x5a8] sm:$0xff]
        %v2712 = vld [vmem:[#allocation8 + $0x5b0] sm:$0xff]
        %v2713 = vld [vmem:[#allocation8 + $0x5b8] sm:$0xff]
        %v2714 = vld [vmem:[#allocation8 + $0x5c0] sm:$0xff]
        %v2715 = vld [vmem:[#allocation8 + $0x5c8] sm:$0xff]
        %v2716 = vld [vmem:[#allocation8 + $0x5d0] sm:$0xff]
        %v2717 = vld [vmem:[#allocation8 + $0x5d8] sm:$0xff]
        %v2718 = vld [vmem:[#allocation8 + $0x5e0] sm:$0xff]
        %v2719 = vld [vmem:[#allocation8 + $0x5e8] sm:$0xff]
        %v2720 = vld [vmem:[#allocation8 + $0x5f0] sm:$0xff]
        %v2721 = vld [vmem:[#allocation8 + $0x5f8] sm:$0xff]
        %v2722 = vld [vmem:[#allocation8 + $0x600] sm:$0xff]
        %v2723 = vld [vmem:[#allocation8 + $0x608] sm:$0xff]
        %v2724 = vld [vmem:[#allocation8 + $0x610] sm:$0xff]
        %v2725 = vld [vmem:[#allocation8 + $0x618] sm:$0xff]
        %v2726 = vld [vmem:[#allocation8 + $0x620] sm:$0xff]
        %v2727 = vld [vmem:[#allocation8 + $0x628] sm:$0xff]
        %v2728 = vld [vmem:[#allocation8 + $0x630] sm:$0xff]
        %v2729 = vld [vmem:[#allocation8 + $0x638] sm:$0xff]
        %v2730 = vld [vmem:[#allocation8 + $0x640] sm:$0xff]
        %v2731 = vld [vmem:[#allocation8 + $0x648] sm:$0xff]
        %v2732 = vld [vmem:[#allocation8 + $0x650] sm:$0xff]
        %v2733 = vld [vmem:[#allocation8 + $0x658] sm:$0xff]
        %v2734 = vld [vmem:[#allocation8 + $0x660] sm:$0xff]
        %v2735 = vld [vmem:[#allocation8 + $0x668] sm:$0xff]
        %v2736 = vld [vmem:[#allocation8 + $0x670] sm:$0xff]
        %v2737 = vld [vmem:[#allocation8 + $0x678] sm:$0xff]
        %v2738 = vld [vmem:[#allocation8 + $0x680] sm:$0xff]
        %v2739 = vld [vmem:[#allocation8 + $0x688] sm:$0xff]
        %v2740 = vld [vmem:[#allocation8 + $0x690] sm:$0xff]
        %v2741 = vld [vmem:[#allocation8 + $0x698] sm:$0xff]
        %v2742 = vld [vmem:[#allocation8 + $0x6a0] sm:$0xff]
        %v2743 = vld [vmem:[#allocation8 + $0x6a8] sm:$0xff]
        %v2744 = vld [vmem:[#allocation8 + $0x6b0] sm:$0xff]
        %v2745 = vld [vmem:[#allocation8 + $0x6b8] sm:$0xff]
        %v2746 = vld [vmem:[#allocation8 + $0x6c0] sm:$0xff]
        %v2747 = vld [vmem:[#allocation8 + $0x6c8] sm:$0xff]
        %v2748 = vld [vmem:[#allocation8 + $0x6d0] sm:$0xff]
        %v2749 = vld [vmem:[#allocation8 + $0x6d8] sm:$0xff]
        %v2750 = vld [vmem:[#allocation8 + $0x6e0] sm:$0xff]
        %v2751 = vld [vmem:[#allocation8 + $0x6e8] sm:$0xff]
        %v2752 = vld [vmem:[#allocation8 + $0x6f0] sm:$0xff]
        %v2753 = vld [vmem:[#allocation8 + $0x6f8] sm:$0xff]
        %v2754 = vld [vmem:[#allocation8 + $0x700] sm:$0xff]
        %v2755 = vld [vmem:[#allocation8 + $0x708] sm:$0xff]
        %v2756 = vld [vmem:[#allocation8 + $0x710] sm:$0xff]
        %v2757 = vld [vmem:[#allocation8 + $0x718] sm:$0xff]
        %v2758 = vld [vmem:[#allocation8 + $0x720] sm:$0xff]
        %v2759 = vld [vmem:[#allocation8 + $0x728] sm:$0xff]
        %v2760 = vld [vmem:[#allocation8 + $0x730] sm:$0xff]
        %v2761 = vld [vmem:[#allocation8 + $0x738] sm:$0xff]
        %v2762 = vld [vmem:[#allocation8 + $0x740] sm:$0xff]
        %v2763 = vld [vmem:[#allocation8 + $0x748] sm:$0xff]
        %v2764 = vld [vmem:[#allocation8 + $0x750] sm:$0xff]
        %v2765 = vld [vmem:[#allocation8 + $0x758] sm:$0xff]
        %v2766 = vld [vmem:[#allocation8 + $0x760] sm:$0xff]
        %v2767 = vld [vmem:[#allocation8 + $0x768] sm:$0xff]
        %v2768 = vld [vmem:[#allocation8 + $0x770] sm:$0xff]
        %v2769 = vld [vmem:[#allocation8 + $0x778] sm:$0xff]
        %v2770 = vld [vmem:[#allocation8 + $0x780] sm:$0xff]
        %v2771 = vld [vmem:[#allocation8 + $0x788] sm:$0xff]
        %v2772 = vld [vmem:[#allocation8 + $0x790] sm:$0xff]
        %v2773 = vld [vmem:[#allocation8 + $0x798] sm:$0xff]
        %v2774 = vld [vmem:[#allocation8 + $0x7a0] sm:$0xff]
        %v2775 = vld [vmem:[#allocation8 + $0x7a8] sm:$0xff]
        %v2776 = vld [vmem:[#allocation8 + $0x7b0] sm:$0xff]
        %v2777 = vld [vmem:[#allocation8 + $0x7b8] sm:$0xff]
        %v2778 = vld [vmem:[#allocation8 + $0x7c0] sm:$0xff]
        %v2779 = vld [vmem:[#allocation8 + $0x7c8] sm:$0xff]
        %v2780 = vld [vmem:[#allocation8 + $0x7d0] sm:$0xff]
        %v2781 = vld [vmem:[#allocation8 + $0x7d8] sm:$0xff]
        %v2782 = vld [vmem:[#allocation8 + $0x7e0] sm:$0xff]
        %v2783 = vld [vmem:[#allocation8 + $0x7e8] sm:$0xff]
        %v2784 = vld [vmem:[#allocation8 + $0x7f0] sm:$0xff]
        %v2785 = vld [vmem:[#allocation8 + $0x7f8] sm:$0xff]
        %v2786 = vld [vmem:[#allocation8 + $0x800] sm:$0xff]
        %v2787 = vld [vmem:[#allocation8 + $0x808] sm:$0xff]
        %v2788 = vld [vmem:[#allocation8 + $0x810] sm:$0xff]
        %v2789 = vld [vmem:[#allocation8 + $0x818] sm:$0xff]
        %v2790 = vld [vmem:[#allocation8 + $0x820] sm:$0xff]
        %v2791 = vld [vmem:[#allocation8 + $0x828] sm:$0xff]
        %v2792 = vld [vmem:[#allocation8 + $0x830] sm:$0xff]
        %v2793 = vld [vmem:[#allocation8 + $0x838] sm:$0xff]
        %v2794 = vld [vmem:[#allocation8 + $0x840] sm:$0xff]
        %v2795 = vld [vmem:[#allocation8 + $0x848] sm:$0xff]
        %v2796 = vld [vmem:[#allocation8 + $0x850] sm:$0xff]
        %v2797 = vld [vmem:[#allocation8 + $0x858] sm:$0xff]
        %v2798 = vld [vmem:[#allocation8 + $0x860] sm:$0xff]
        %v2799 = vld [vmem:[#allocation8 + $0x868] sm:$0xff]
        %v2800 = vld [vmem:[#allocation8 + $0x870] sm:$0xff]
        %v2801 = vld [vmem:[#allocation8 + $0x878] sm:$0xff]
        %v2802 = vld [vmem:[#allocation8 + $0x880] sm:$0xff]
        %v2803 = vld [vmem:[#allocation8 + $0x888] sm:$0xff]
        %v2804 = vld [vmem:[#allocation8 + $0x890] sm:$0xff]
        %v2805 = vld [vmem:[#allocation8 + $0x898] sm:$0xff]
        %v2806 = vld [vmem:[#allocation8 + $0x8a0] sm:$0xff]
        %v2807 = vld [vmem:[#allocation8 + $0x8a8] sm:$0xff]
        %v2808 = vld [vmem:[#allocation8 + $0x8b0] sm:$0xff]
        %v2809 = vld [vmem:[#allocation8 + $0x8b8] sm:$0xff]
        %v2810 = vld [vmem:[#allocation8 + $0x8c0] sm:$0xff]
        %v2811 = vld [vmem:[#allocation8 + $0x8c8] sm:$0xff]
        %v2812 = vld [vmem:[#allocation8 + $0x8d0] sm:$0xff]
        %v2813 = vld [vmem:[#allocation8 + $0x8d8] sm:$0xff]
        %v2814 = vld [vmem:[#allocation8 + $0x8e0] sm:$0xff]
        %v2815 = vld [vmem:[#allocation8 + $0x8e8] sm:$0xff]
        %v2816 = vld [vmem:[#allocation8 + $0x8f0] sm:$0xff]
        %v2817 = vld [vmem:[#allocation8 + $0x8f8] sm:$0xff]
        %v2818 = vld [vmem:[#allocation10] sm:$0x3f]
        %v2820 = vlaneseq
        %v2821 = vshrl.u32 %v2820, 7
        %v2822 = vsub.s32 0, %v2821
        %v2823 = vrot.slane %v2818, %v2822
        %v2824 = vlaneseq
        %v2825 = vshrl.u32 %v2824, 7
        %v2826 = vsub.s32 1, %v2825
        %v2827 = vrot.slane %v2818, %v2826
        %v2828 = vlaneseq
        %v2829 = vshrl.u32 %v2828, 7
        %v2830 = vsub.s32 2, %v2829
        %v2831 = vrot.slane %v2818, %v2830
        %v2832 = vlaneseq
        %v2833 = vshrl.u32 %v2832, 7
        %v2834 = vsub.s32 3, %v2833
        %v2835 = vrot.slane %v2818, %v2834
        %v2836 = vlaneseq
        %v2837 = vshrl.u32 %v2836, 7
        %v2838 = vsub.s32 4, %v2837
        %v2839 = vrot.slane %v2818, %v2838
        %v2840 = vlaneseq
        %v2841 = vshrl.u32 %v2840, 7
        %v2842 = vsub.s32 5, %v2841
        %v2843 = vrot.slane %v2818, %v2842
        %v3138 = vunpack.c.l.b16 %v2530
        %v3139 = vunpack.c.h.b16 %v2530
        %v3140 = vunpack.c.l.b16 %v2531
        %v3141 = vunpack.c.h.b16 %v2531
        %v3142 = vunpack.c.l.b16 %v2532
        %v3143 = vunpack.c.h.b16 %v2532
        %v3144 = vunpack.c.l.b16 %v2533
        %v3145 = vunpack.c.h.b16 %v2533
        %v3146 = vunpack.c.l.b16 %v2534
        %v3147 = vunpack.c.h.b16 %v2534
        %v3148 = vunpack.c.l.b16 %v2535
        %v3149 = vunpack.c.h.b16 %v2535
        %v3150 = vunpack.c.l.b16 %v2536
        %v3151 = vunpack.c.h.b16 %v2536
        %v3152 = vunpack.c.l.b16 %v2537
        %v3153 = vunpack.c.h.b16 %v2537
        %v3154 = vunpack.c.l.b16 %v2538
        %v3155 = vunpack.c.h.b16 %v2538
        %v3156 = vunpack.c.l.b16 %v2539
        %v3157 = vunpack.c.h.b16 %v2539
        %v3158 = vunpack.c.l.b16 %v2540
        %v3159 = vunpack.c.h.b16 %v2540
        %v3160 = vunpack.c.l.b16 %v2541
        %v3161 = vunpack.c.h.b16 %v2541
        %v3162 = vunpack.c.l.b16 %v2542
        %v3163 = vunpack.c.h.b16 %v2542
        %v3164 = vunpack.c.l.b16 %v2543
        %v3165 = vunpack.c.h.b16 %v2543
        %v3166 = vunpack.c.l.b16 %v2544
        %v3167 = vunpack.c.h.b16 %v2544
        %v3168 = vunpack.c.l.b16 %v2545
        %v3169 = vunpack.c.h.b16 %v2545
        %v3170 = vunpack.c.l.b16 %v2546
        %v3171 = vunpack.c.h.b16 %v2546
        %v3172 = vunpack.c.l.b16 %v2547
        %v3173 = vunpack.c.h.b16 %v2547
        %v3174 = vunpack.c.l.b16 %v2548
        %v3175 = vunpack.c.h.b16 %v2548
        %v3176 = vunpack.c.l.b16 %v2549
        %v3177 = vunpack.c.h.b16 %v2549
        %v3178 = vunpack.c.l.b16 %v2550
        %v3179 = vunpack.c.h.b16 %v2550
        %v3180 = vunpack.c.l.b16 %v2551
        %v3181 = vunpack.c.h.b16 %v2551
        %v3182 = vunpack.c.l.b16 %v2552
        %v3183 = vunpack.c.h.b16 %v2552
        %v3184 = vunpack.c.l.b16 %v2553
        %v3185 = vunpack.c.h.b16 %v2553
        %v3186 = vunpack.c.l.b16 %v2554
        %v3187 = vunpack.c.h.b16 %v2554
        %v3188 = vunpack.c.l.b16 %v2555
        %v3189 = vunpack.c.h.b16 %v2555
        %v3190 = vunpack.c.l.b16 %v2556
        %v3191 = vunpack.c.h.b16 %v2556
        %v3192 = vunpack.c.l.b16 %v2557
        %v3193 = vunpack.c.h.b16 %v2557
        %v3194 = vunpack.c.l.b16 %v2558
        %v3195 = vunpack.c.h.b16 %v2558
        %v3196 = vunpack.c.l.b16 %v2559
        %v3197 = vunpack.c.h.b16 %v2559
        %v3198 = vunpack.c.l.b16 %v2560
        %v3199 = vunpack.c.h.b16 %v2560
        %v3200 = vunpack.c.l.b16 %v2561
        %v3201 = vunpack.c.h.b16 %v2561
        %v3202 = vunpack.c.l.b16 %v2562
        %v3203 = vunpack.c.h.b16 %v2562
        %v3204 = vunpack.c.l.b16 %v2563
        %v3205 = vunpack.c.h.b16 %v2563
        %v3206 = vunpack.c.l.b16 %v2564
        %v3207 = vunpack.c.h.b16 %v2564
        %v3208 = vunpack.c.l.b16 %v2565
        %v3209 = vunpack.c.h.b16 %v2565
        %v3210 = vunpack.c.l.b16 %v2566
        %v3211 = vunpack.c.h.b16 %v2566
        %v3212 = vunpack.c.l.b16 %v2567
        %v3213 = vunpack.c.h.b16 %v2567
        %v3214 = vunpack.c.l.b16 %v2568
        %v3215 = vunpack.c.h.b16 %v2568
        %v3216 = vunpack.c.l.b16 %v2569
        %v3217 = vunpack.c.h.b16 %v2569
        %v3218 = vunpack.c.l.b16 %v2570
        %v3219 = vunpack.c.h.b16 %v2570
        %v3220 = vunpack.c.l.b16 %v2571
        %v3221 = vunpack.c.h.b16 %v2571
        %v3222 = vunpack.c.l.b16 %v2572
        %v3223 = vunpack.c.h.b16 %v2572
        %v3224 = vunpack.c.l.b16 %v2573
        %v3225 = vunpack.c.h.b16 %v2573
        %v3226 = vunpack.c.l.b16 %v2574
        %v3227 = vunpack.c.h.b16 %v2574
        %v3228 = vunpack.c.l.b16 %v2575
        %v3229 = vunpack.c.h.b16 %v2575
        %v3230 = vunpack.c.l.b16 %v2576
        %v3231 = vunpack.c.h.b16 %v2576
        %v3232 = vunpack.c.l.b16 %v2577
        %v3233 = vunpack.c.h.b16 %v2577
        %v3234 = vunpack.c.l.b16 %v2578
        %v3235 = vunpack.c.h.b16 %v2578
        %v3236 = vunpack.c.l.b16 %v2579
        %v3237 = vunpack.c.h.b16 %v2579
        %v3238 = vunpack.c.l.b16 %v2580
        %v3239 = vunpack.c.h.b16 %v2580
        %v3240 = vunpack.c.l.b16 %v2581
        %v3241 = vunpack.c.h.b16 %v2581
        %v3242 = vunpack.c.l.b16 %v2582
        %v3243 = vunpack.c.h.b16 %v2582
        %v3244 = vunpack.c.l.b16 %v2583
        %v3245 = vunpack.c.h.b16 %v2583
        %v3246 = vunpack.c.l.b16 %v2584
        %v3247 = vunpack.c.h.b16 %v2584
        %v3248 = vunpack.c.l.b16 %v2585
        %v3249 = vunpack.c.h.b16 %v2585
        %v3250 = vunpack.c.l.b16 %v2586
        %v3251 = vunpack.c.h.b16 %v2586
        %v3252 = vunpack.c.l.b16 %v2587
        %v3253 = vunpack.c.h.b16 %v2587
        %v3254 = vunpack.c.l.b16 %v2588
        %v3255 = vunpack.c.h.b16 %v2588
        %v3256 = vunpack.c.l.b16 %v2589
        %v3257 = vunpack.c.h.b16 %v2589
        %v3258 = vunpack.c.l.b16 %v2590
        %v3259 = vunpack.c.h.b16 %v2590
        %v3260 = vunpack.c.l.b16 %v2591
        %v3261 = vunpack.c.h.b16 %v2591
        %v3262 = vunpack.c.l.b16 %v2592
        %v3263 = vunpack.c.h.b16 %v2592
        %v3264 = vunpack.c.l.b16 %v2593
        %v3265 = vunpack.c.h.b16 %v2593
        %v3266 = vunpack.c.l.b16 %v2594
        %v3267 = vunpack.c.h.b16 %v2594
        %v3268 = vunpack.c.l.b16 %v2595
        %v3269 = vunpack.c.h.b16 %v2595
        %v3270 = vunpack.c.l.b16 %v2596
        %v3271 = vunpack.c.h.b16 %v2596
        %v3272 = vunpack.c.l.b16 %v2597
        %v3273 = vunpack.c.h.b16 %v2597
        %v3274 = vunpack.c.l.b16 %v2598
        %v3275 = vunpack.c.h.b16 %v2598
        %v3276 = vunpack.c.l.b16 %v2599
        %v3277 = vunpack.c.h.b16 %v2599
        %v3278 = vunpack.c.l.b16 %v2600
        %v3279 = vunpack.c.h.b16 %v2600
        %v3280 = vunpack.c.l.b16 %v2601
        %v3281 = vunpack.c.h.b16 %v2601
        %v3282 = vunpack.c.l.b16 %v2602
        %v3283 = vunpack.c.h.b16 %v2602
        %v3284 = vunpack.c.l.b16 %v2603
        %v3285 = vunpack.c.h.b16 %v2603
        %v3286 = vunpack.c.l.b16 %v2604
        %v3287 = vunpack.c.h.b16 %v2604
        %v3288 = vunpack.c.l.b16 %v2605
        %v3289 = vunpack.c.h.b16 %v2605
        %v3290 = vunpack.c.l.b16 %v2606
        %v3291 = vunpack.c.h.b16 %v2606
        %v3292 = vunpack.c.l.b16 %v2607
        %v3293 = vunpack.c.h.b16 %v2607
        %v3294 = vunpack.c.l.b16 %v2608
        %v3295 = vunpack.c.h.b16 %v2608
        %v3296 = vunpack.c.l.b16 %v2609
        %v3297 = vunpack.c.h.b16 %v2609
        %v3298 = vunpack.c.l.b16 %v2610
        %v3299 = vunpack.c.h.b16 %v2610
        %v3300 = vunpack.c.l.b16 %v2611
        %v3301 = vunpack.c.h.b16 %v2611
        %v3302 = vunpack.c.l.b16 %v2612
        %v3303 = vunpack.c.h.b16 %v2612
        %v3304 = vunpack.c.l.b16 %v2613
        %v3305 = vunpack.c.h.b16 %v2613
        %v3306 = vunpack.c.l.b16 %v2614
        %v3307 = vunpack.c.h.b16 %v2614
        %v3308 = vunpack.c.l.b16 %v2615
        %v3309 = vunpack.c.h.b16 %v2615
        %v3310 = vunpack.c.l.b16 %v2616
        %v3311 = vunpack.c.h.b16 %v2616
        %v3312 = vunpack.c.l.b16 %v2617
        %v3313 = vunpack.c.h.b16 %v2617
        %v3314 = vunpack.c.l.b16 %v2618
        %v3315 = vunpack.c.h.b16 %v2618
        %v3316 = vunpack.c.l.b16 %v2619
        %v3317 = vunpack.c.h.b16 %v2619
        %v3318 = vunpack.c.l.b16 %v2620
        %v3319 = vunpack.c.h.b16 %v2620
        %v3320 = vunpack.c.l.b16 %v2621
        %v3321 = vunpack.c.h.b16 %v2621
        %v3322 = vunpack.c.l.b16 %v2622
        %v3323 = vunpack.c.h.b16 %v2622
        %v3324 = vunpack.c.l.b16 %v2623
        %v3325 = vunpack.c.h.b16 %v2623
        %v3326 = vunpack.c.l.b16 %v2624
        %v3327 = vunpack.c.h.b16 %v2624
        %v3328 = vunpack.c.l.b16 %v2625
        %v3329 = vunpack.c.h.b16 %v2625
        %v3330 = vunpack.c.l.b16 %v2626
        %v3331 = vunpack.c.h.b16 %v2626
        %v3332 = vunpack.c.l.b16 %v2627
        %v3333 = vunpack.c.h.b16 %v2627
        %v3334 = vunpack.c.l.b16 %v2628
        %v3335 = vunpack.c.h.b16 %v2628
        %v3336 = vunpack.c.l.b16 %v2629
        %v3337 = vunpack.c.h.b16 %v2629
        %v3338 = vunpack.c.l.b16 %v2630
        %v3339 = vunpack.c.h.b16 %v2630
        %v3340 = vunpack.c.l.b16 %v2631
        %v3341 = vunpack.c.h.b16 %v2631
        %v3342 = vunpack.c.l.b16 %v2632
        %v3343 = vunpack.c.h.b16 %v2632
        %v3344 = vunpack.c.l.b16 %v2633
        %v3345 = vunpack.c.h.b16 %v2633
        %v3346 = vunpack.c.l.b16 %v2634
        %v3347 = vunpack.c.h.b16 %v2634
        %v3348 = vunpack.c.l.b16 %v2635
        %v3349 = vunpack.c.h.b16 %v2635
        %v3350 = vunpack.c.l.b16 %v2636
        %v3351 = vunpack.c.h.b16 %v2636
        %v3352 = vunpack.c.l.b16 %v2637
        %v3353 = vunpack.c.h.b16 %v2637
        %v3354 = vunpack.c.l.b16 %v2638
        %v3355 = vunpack.c.h.b16 %v2638
        %v3356 = vunpack.c.l.b16 %v2639
        %v3357 = vunpack.c.h.b16 %v2639
        %v3358 = vunpack.c.l.b16 %v2640
        %v3359 = vunpack.c.h.b16 %v2640
        %v3360 = vunpack.c.l.b16 %v2641
        %v3361 = vunpack.c.h.b16 %v2641
        %v3362 = vunpack.c.l.b16 %v2642
        %v3363 = vunpack.c.h.b16 %v2642
        %v3364 = vunpack.c.l.b16 %v2643
        %v3365 = vunpack.c.h.b16 %v2643
        %v3366 = vunpack.c.l.b16 %v2644
        %v3367 = vunpack.c.h.b16 %v2644
        %v3368 = vunpack.c.l.b16 %v2645
        %v3369 = vunpack.c.h.b16 %v2645
        %v3370 = vunpack.c.l.b16 %v2646
        %v3371 = vunpack.c.h.b16 %v2646
        %v3372 = vunpack.c.l.b16 %v2647
        %v3373 = vunpack.c.h.b16 %v2647
        %v3374 = vunpack.c.l.b16 %v2648
        %v3375 = vunpack.c.h.b16 %v2648
        %v3376 = vunpack.c.l.b16 %v2649
        %v3377 = vunpack.c.h.b16 %v2649
        %v3378 = vunpack.c.l.b16 %v2650
        %v3379 = vunpack.c.h.b16 %v2650
        %v3380 = vunpack.c.l.b16 %v2651
        %v3381 = vunpack.c.h.b16 %v2651
        %v3382 = vunpack.c.l.b16 %v2652
        %v3383 = vunpack.c.h.b16 %v2652
        %v3384 = vunpack.c.l.b16 %v2653
        %v3385 = vunpack.c.h.b16 %v2653
        %v3386 = vunpack.c.l.b16 %v2654
        %v3387 = vunpack.c.h.b16 %v2654
        %v3388 = vunpack.c.l.b16 %v2655
        %v3389 = vunpack.c.h.b16 %v2655
        %v3390 = vunpack.c.l.b16 %v2656
        %v3391 = vunpack.c.h.b16 %v2656
        %v3392 = vunpack.c.l.b16 %v2657
        %v3393 = vunpack.c.h.b16 %v2657
        %v3394 = vunpack.c.l.b16 %v2658
        %v3395 = vunpack.c.h.b16 %v2658
        %v3396 = vunpack.c.l.b16 %v2659
        %v3397 = vunpack.c.h.b16 %v2659
        %v3398 = vunpack.c.l.b16 %v2660
        %v3399 = vunpack.c.h.b16 %v2660
        %v3400 = vunpack.c.l.b16 %v2661
        %v3401 = vunpack.c.h.b16 %v2661
        %v3402 = vunpack.c.l.b16 %v2662
        %v3403 = vunpack.c.h.b16 %v2662
        %v3404 = vunpack.c.l.b16 %v2663
        %v3405 = vunpack.c.h.b16 %v2663
        %v3406 = vunpack.c.l.b16 %v2664
        %v3407 = vunpack.c.h.b16 %v2664
        %v3408 = vunpack.c.l.b16 %v2665
        %v3409 = vunpack.c.h.b16 %v2665
        %v3410 = vunpack.c.l.b16 %v2666
        %v3411 = vunpack.c.h.b16 %v2666
        %v3412 = vunpack.c.l.b16 %v2667
        %v3413 = vunpack.c.h.b16 %v2667
        %v3414 = vunpack.c.l.b16 %v2668
        %v3415 = vunpack.c.h.b16 %v2668
        %v3416 = vunpack.c.l.b16 %v2669
        %v3417 = vunpack.c.h.b16 %v2669
        %v3418 = vunpack.c.l.b16 %v2670
        %v3419 = vunpack.c.h.b16 %v2670
        %v3420 = vunpack.c.l.b16 %v2671
        %v3421 = vunpack.c.h.b16 %v2671
        %v3422 = vunpack.c.l.b16 %v2672
        %v3423 = vunpack.c.h.b16 %v2672
        %v3424 = vunpack.c.l.b16 %v2673
        %v3425 = vunpack.c.h.b16 %v2673
        %v3426 = vunpack.c.l.b16 %v2674
        %v3427 = vunpack.c.h.b16 %v2674
        %v3428 = vunpack.c.l.b16 %v2675
        %v3429 = vunpack.c.h.b16 %v2675
        %v3430 = vunpack.c.l.b16 %v2676
        %v3431 = vunpack.c.h.b16 %v2676
        %v3432 = vunpack.c.l.b16 %v2677
        %v3433 = vunpack.c.h.b16 %v2677
        %v3434 = vunpack.c.l.b16 %v2678
        %v3435 = vunpack.c.h.b16 %v2678
        %v3436 = vunpack.c.l.b16 %v2679
        %v3437 = vunpack.c.h.b16 %v2679
        %v3438 = vunpack.c.l.b16 %v2680
        %v3439 = vunpack.c.h.b16 %v2680
        %v3440 = vunpack.c.l.b16 %v2681
        %v3441 = vunpack.c.h.b16 %v2681
        %v3442 = vunpack.c.l.b16 %v2682
        %v3443 = vunpack.c.h.b16 %v2682
        %v3444 = vunpack.c.l.b16 %v2683
        %v3445 = vunpack.c.h.b16 %v2683
        %v3446 = vunpack.c.l.b16 %v2684
        %v3447 = vunpack.c.h.b16 %v2684
        %v3448 = vunpack.c.l.b16 %v2685
        %v3449 = vunpack.c.h.b16 %v2685
        %v3450 = vunpack.c.l.b16 %v2686
        %v3451 = vunpack.c.h.b16 %v2686
        %v3452 = vunpack.c.l.b16 %v2687
        %v3453 = vunpack.c.h.b16 %v2687
        %v3454 = vunpack.c.l.b16 %v2688
        %v3455 = vunpack.c.h.b16 %v2688
        %v3456 = vunpack.c.l.b16 %v2689
        %v3457 = vunpack.c.h.b16 %v2689
        %v3458 = vunpack.c.l.b16 %v2690
        %v3459 = vunpack.c.h.b16 %v2690
        %v3460 = vunpack.c.l.b16 %v2691
        %v3461 = vunpack.c.h.b16 %v2691
        %v3462 = vunpack.c.l.b16 %v2692
        %v3463 = vunpack.c.h.b16 %v2692
        %v3464 = vunpack.c.l.b16 %v2693
        %v3465 = vunpack.c.h.b16 %v2693
        %v3466 = vunpack.c.l.b16 %v2694
        %v3467 = vunpack.c.h.b16 %v2694
        %v3468 = vunpack.c.l.b16 %v2695
        %v3469 = vunpack.c.h.b16 %v2695
        %v3470 = vunpack.c.l.b16 %v2696
        %v3471 = vunpack.c.h.b16 %v2696
        %v3472 = vunpack.c.l.b16 %v2697
        %v3473 = vunpack.c.h.b16 %v2697
        %v3474 = vunpack.c.l.b16 %v2698
        %v3475 = vunpack.c.h.b16 %v2698
        %v3476 = vunpack.c.l.b16 %v2699
        %v3477 = vunpack.c.h.b16 %v2699
        %v3478 = vunpack.c.l.b16 %v2700
        %v3479 = vunpack.c.h.b16 %v2700
        %v3480 = vunpack.c.l.b16 %v2701
        %v3481 = vunpack.c.h.b16 %v2701
        %v3482 = vunpack.c.l.b16 %v2702
        %v3483 = vunpack.c.h.b16 %v2702
        %v3484 = vunpack.c.l.b16 %v2703
        %v3485 = vunpack.c.h.b16 %v2703
        %v3486 = vunpack.c.l.b16 %v2704
        %v3487 = vunpack.c.h.b16 %v2704
        %v3488 = vunpack.c.l.b16 %v2705
        %v3489 = vunpack.c.h.b16 %v2705
        %v3490 = vunpack.c.l.b16 %v2706
        %v3491 = vunpack.c.h.b16 %v2706
        %v3492 = vunpack.c.l.b16 %v2707
        %v3493 = vunpack.c.h.b16 %v2707
        %v3494 = vunpack.c.l.b16 %v2708
        %v3495 = vunpack.c.h.b16 %v2708
        %v3496 = vunpack.c.l.b16 %v2709
        %v3497 = vunpack.c.h.b16 %v2709
        %v3498 = vunpack.c.l.b16 %v2710
        %v3499 = vunpack.c.h.b16 %v2710
        %v3500 = vunpack.c.l.b16 %v2711
        %v3501 = vunpack.c.h.b16 %v2711
        %v3502 = vunpack.c.l.b16 %v2712
        %v3503 = vunpack.c.h.b16 %v2712
        %v3504 = vunpack.c.l.b16 %v2713
        %v3505 = vunpack.c.h.b16 %v2713
        %v3506 = vunpack.c.l.b16 %v2714
        %v3507 = vunpack.c.h.b16 %v2714
        %v3508 = vunpack.c.l.b16 %v2715
        %v3509 = vunpack.c.h.b16 %v2715
        %v3510 = vunpack.c.l.b16 %v2716
        %v3511 = vunpack.c.h.b16 %v2716
        %v3512 = vunpack.c.l.b16 %v2717
        %v3513 = vunpack.c.h.b16 %v2717
        %v3514 = vunpack.c.l.b16 %v2718
        %v3515 = vunpack.c.h.b16 %v2718
        %v3516 = vunpack.c.l.b16 %v2719
        %v3517 = vunpack.c.h.b16 %v2719
        %v3518 = vunpack.c.l.b16 %v2720
        %v3519 = vunpack.c.h.b16 %v2720
        %v3520 = vunpack.c.l.b16 %v2721
        %v3521 = vunpack.c.h.b16 %v2721
        %v3522 = vunpack.c.l.b16 %v2722
        %v3523 = vunpack.c.h.b16 %v2722
        %v3524 = vunpack.c.l.b16 %v2723
        %v3525 = vunpack.c.h.b16 %v2723
        %v3526 = vunpack.c.l.b16 %v2724
        %v3527 = vunpack.c.h.b16 %v2724
        %v3528 = vunpack.c.l.b16 %v2725
        %v3529 = vunpack.c.h.b16 %v2725
        %v3530 = vunpack.c.l.b16 %v2726
        %v3531 = vunpack.c.h.b16 %v2726
        %v3532 = vunpack.c.l.b16 %v2727
        %v3533 = vunpack.c.h.b16 %v2727
        %v3534 = vunpack.c.l.b16 %v2728
        %v3535 = vunpack.c.h.b16 %v2728
        %v3536 = vunpack.c.l.b16 %v2729
        %v3537 = vunpack.c.h.b16 %v2729
        %v3538 = vunpack.c.l.b16 %v2730
        %v3539 = vunpack.c.h.b16 %v2730
        %v3540 = vunpack.c.l.b16 %v2731
        %v3541 = vunpack.c.h.b16 %v2731
        %v3542 = vunpack.c.l.b16 %v2732
        %v3543 = vunpack.c.h.b16 %v2732
        %v3544 = vunpack.c.l.b16 %v2733
        %v3545 = vunpack.c.h.b16 %v2733
        %v3546 = vunpack.c.l.b16 %v2734
        %v3547 = vunpack.c.h.b16 %v2734
        %v3548 = vunpack.c.l.b16 %v2735
        %v3549 = vunpack.c.h.b16 %v2735
        %v3550 = vunpack.c.l.b16 %v2736
        %v3551 = vunpack.c.h.b16 %v2736
        %v3552 = vunpack.c.l.b16 %v2737
        %v3553 = vunpack.c.h.b16 %v2737
        %v3554 = vunpack.c.l.b16 %v2738
        %v3555 = vunpack.c.h.b16 %v2738
        %v3556 = vunpack.c.l.b16 %v2739
        %v3557 = vunpack.c.h.b16 %v2739
        %v3558 = vunpack.c.l.b16 %v2740
        %v3559 = vunpack.c.h.b16 %v2740
        %v3560 = vunpack.c.l.b16 %v2741
        %v3561 = vunpack.c.h.b16 %v2741
        %v3562 = vunpack.c.l.b16 %v2742
        %v3563 = vunpack.c.h.b16 %v2742
        %v3564 = vunpack.c.l.b16 %v2743
        %v3565 = vunpack.c.h.b16 %v2743
        %v3566 = vunpack.c.l.b16 %v2744
        %v3567 = vunpack.c.h.b16 %v2744
        %v3568 = vunpack.c.l.b16 %v2745
        %v3569 = vunpack.c.h.b16 %v2745
        %v3570 = vunpack.c.l.b16 %v2746
        %v3571 = vunpack.c.h.b16 %v2746
        %v3572 = vunpack.c.l.b16 %v2747
        %v3573 = vunpack.c.h.b16 %v2747
        %v3574 = vunpack.c.l.b16 %v2748
        %v3575 = vunpack.c.h.b16 %v2748
        %v3576 = vunpack.c.l.b16 %v2749
        %v3577 = vunpack.c.h.b16 %v2749
        %v3578 = vunpack.c.l.b16 %v2750
        %v3579 = vunpack.c.h.b16 %v2750
        %v3580 = vunpack.c.l.b16 %v2751
        %v3581 = vunpack.c.h.b16 %v2751
        %v3582 = vunpack.c.l.b16 %v2752
        %v3583 = vunpack.c.h.b16 %v2752
        %v3584 = vunpack.c.l.b16 %v2753
        %v3585 = vunpack.c.h.b16 %v2753
        %v3586 = vunpack.c.l.b16 %v2754
        %v3587 = vunpack.c.h.b16 %v2754
        %v3588 = vunpack.c.l.b16 %v2755
        %v3589 = vunpack.c.h.b16 %v2755
        %v3590 = vunpack.c.l.b16 %v2756
        %v3591 = vunpack.c.h.b16 %v2756
        %v3592 = vunpack.c.l.b16 %v2757
        %v3593 = vunpack.c.h.b16 %v2757
        %v3594 = vunpack.c.l.b16 %v2758
        %v3595 = vunpack.c.h.b16 %v2758
        %v3596 = vunpack.c.l.b16 %v2759
        %v3597 = vunpack.c.h.b16 %v2759
        %v3598 = vunpack.c.l.b16 %v2760
        %v3599 = vunpack.c.h.b16 %v2760
        %v3600 = vunpack.c.l.b16 %v2761
        %v3601 = vunpack.c.h.b16 %v2761
        %v3602 = vunpack.c.l.b16 %v2762
        %v3603 = vunpack.c.h.b16 %v2762
        %v3604 = vunpack.c.l.b16 %v2763
        %v3605 = vunpack.c.h.b16 %v2763
        %v3606 = vunpack.c.l.b16 %v2764
        %v3607 = vunpack.c.h.b16 %v2764
        %v3608 = vunpack.c.l.b16 %v2765
        %v3609 = vunpack.c.h.b16 %v2765
        %v3610 = vunpack.c.l.b16 %v2766
        %v3611 = vunpack.c.h.b16 %v2766
        %v3612 = vunpack.c.l.b16 %v2767
        %v3613 = vunpack.c.h.b16 %v2767
        %v3614 = vunpack.c.l.b16 %v2768
        %v3615 = vunpack.c.h.b16 %v2768
        %v3616 = vunpack.c.l.b16 %v2769
        %v3617 = vunpack.c.h.b16 %v2769
        %v3618 = vunpack.c.l.b16 %v2770
        %v3619 = vunpack.c.h.b16 %v2770
        %v3620 = vunpack.c.l.b16 %v2771
        %v3621 = vunpack.c.h.b16 %v2771
        %v3622 = vunpack.c.l.b16 %v2772
        %v3623 = vunpack.c.h.b16 %v2772
        %v3624 = vunpack.c.l.b16 %v2773
        %v3625 = vunpack.c.h.b16 %v2773
        %v3626 = vunpack.c.l.b16 %v2774
        %v3627 = vunpack.c.h.b16 %v2774
        %v3628 = vunpack.c.l.b16 %v2775
        %v3629 = vunpack.c.h.b16 %v2775
        %v3630 = vunpack.c.l.b16 %v2776
        %v3631 = vunpack.c.h.b16 %v2776
        %v3632 = vunpack.c.l.b16 %v2777
        %v3633 = vunpack.c.h.b16 %v2777
        %v3634 = vunpack.c.l.b16 %v2778
        %v3635 = vunpack.c.h.b16 %v2778
        %v3636 = vunpack.c.l.b16 %v2779
        %v3637 = vunpack.c.h.b16 %v2779
        %v3638 = vunpack.c.l.b16 %v2780
        %v3639 = vunpack.c.h.b16 %v2780
        %v3640 = vunpack.c.l.b16 %v2781
        %v3641 = vunpack.c.h.b16 %v2781
        %v3642 = vunpack.c.l.b16 %v2782
        %v3643 = vunpack.c.h.b16 %v2782
        %v3644 = vunpack.c.l.b16 %v2783
        %v3645 = vunpack.c.h.b16 %v2783
        %v3646 = vunpack.c.l.b16 %v2784
        %v3647 = vunpack.c.h.b16 %v2784
        %v3648 = vunpack.c.l.b16 %v2785
        %v3649 = vunpack.c.h.b16 %v2785
        %v3650 = vunpack.c.l.b16 %v2786
        %v3651 = vunpack.c.h.b16 %v2786
        %v3652 = vunpack.c.l.b16 %v2787
        %v3653 = vunpack.c.h.b16 %v2787
        %v3654 = vunpack.c.l.b16 %v2788
        %v3655 = vunpack.c.h.b16 %v2788
        %v3656 = vunpack.c.l.b16 %v2789
        %v3657 = vunpack.c.h.b16 %v2789
        %v3658 = vunpack.c.l.b16 %v2790
        %v3659 = vunpack.c.h.b16 %v2790
        %v3660 = vunpack.c.l.b16 %v2791
        %v3661 = vunpack.c.h.b16 %v2791
        %v3662 = vunpack.c.l.b16 %v2792
        %v3663 = vunpack.c.h.b16 %v2792
        %v3664 = vunpack.c.l.b16 %v2793
        %v3665 = vunpack.c.h.b16 %v2793
        %v3666 = vunpack.c.l.b16 %v2794
        %v3667 = vunpack.c.h.b16 %v2794
        %v3668 = vunpack.c.l.b16 %v2795
        %v3669 = vunpack.c.h.b16 %v2795
        %v3670 = vunpack.c.l.b16 %v2796
        %v3671 = vunpack.c.h.b16 %v2796
        %v3672 = vunpack.c.l.b16 %v2797
        %v3673 = vunpack.c.h.b16 %v2797
        %v3674 = vunpack.c.l.b16 %v2798
        %v3675 = vunpack.c.h.b16 %v2798
        %v3676 = vunpack.c.l.b16 %v2799
        %v3677 = vunpack.c.h.b16 %v2799
        %v3678 = vunpack.c.l.b16 %v2800
        %v3679 = vunpack.c.h.b16 %v2800
        %v3680 = vunpack.c.l.b16 %v2801
        %v3681 = vunpack.c.h.b16 %v2801
        %v3682 = vunpack.c.l.b16 %v2802
        %v3683 = vunpack.c.h.b16 %v2802
        %v3684 = vunpack.c.l.b16 %v2803
        %v3685 = vunpack.c.h.b16 %v2803
        %v3686 = vunpack.c.l.b16 %v2804
        %v3687 = vunpack.c.h.b16 %v2804
        %v3688 = vunpack.c.l.b16 %v2805
        %v3689 = vunpack.c.h.b16 %v2805
        %v3690 = vunpack.c.l.b16 %v2806
        %v3691 = vunpack.c.h.b16 %v2806
        %v3692 = vunpack.c.l.b16 %v2807
        %v3693 = vunpack.c.h.b16 %v2807
        %v3694 = vunpack.c.l.b16 %v2808
        %v3695 = vunpack.c.h.b16 %v2808
        %v3696 = vunpack.c.l.b16 %v2809
        %v3697 = vunpack.c.h.b16 %v2809
        %v3698 = vunpack.c.l.b16 %v2810
        %v3699 = vunpack.c.h.b16 %v2810
        %v3700 = vunpack.c.l.b16 %v2811
        %v3701 = vunpack.c.h.b16 %v2811
        %v3702 = vunpack.c.l.b16 %v2812
        %v3703 = vunpack.c.h.b16 %v2812
        %v3704 = vunpack.c.l.b16 %v2813
        %v3705 = vunpack.c.h.b16 %v2813
        %v3706 = vunpack.c.l.b16 %v2814
        %v3707 = vunpack.c.h.b16 %v2814
        %v3708 = vunpack.c.l.b16 %v2815
        %v3709 = vunpack.c.h.b16 %v2815
        %v3710 = vunpack.c.l.b16 %v2816
        %v3711 = vunpack.c.h.b16 %v2816
        %v3712 = vunpack.c.l.b16 %v2817
        %v3713 = vunpack.c.h.b16 %v2817
        %v3714 = vpack.c.b16 %v3144, %v3138
        %v3715 = vpack.c.b16 %v3145, %v3139
        %v3716 = vpack.c.b16 %v3146, %v3140
        %v3717 = vpack.c.b16 %v3147, %v3141
        %v3718 = vpack.c.b16 %v3148, %v3142
        %v3719 = vpack.c.b16 %v3149, %v3143
        %v3720 = vpack.c.b16 %v3156, %v3150
        %v3721 = vpack.c.b16 %v3157, %v3151
        %v3722 = vpack.c.b16 %v3158, %v3152
        %v3723 = vpack.c.b16 %v3159, %v3153
        %v3724 = vpack.c.b16 %v3160, %v3154
        %v3725 = vpack.c.b16 %v3161, %v3155
        %v3726 = vpack.c.b16 %v3168, %v3162
        %v3727 = vpack.c.b16 %v3169, %v3163
        %v3728 = vpack.c.b16 %v3170, %v3164
        %v3729 = vpack.c.b16 %v3171, %v3165
        %v3730 = vpack.c.b16 %v3172, %v3166
        %v3731 = vpack.c.b16 %v3173, %v3167
        %v3732 = vpack.c.b16 %v3180, %v3174
        %v3733 = vpack.c.b16 %v3181, %v3175
        %v3734 = vpack.c.b16 %v3182, %v3176
        %v3735 = vpack.c.b16 %v3183, %v3177
        %v3736 = vpack.c.b16 %v3184, %v3178
        %v3737 = vpack.c.b16 %v3185, %v3179
        %v3738 = vpack.c.b16 %v3192, %v3186
        %v3739 = vpack.c.b16 %v3193, %v3187
        %v3740 = vpack.c.b16 %v3194, %v3188
        %v3741 = vpack.c.b16 %v3195, %v3189
        %v3742 = vpack.c.b16 %v3196, %v3190
        %v3743 = vpack.c.b16 %v3197, %v3191
        %v3744 = vpack.c.b16 %v3204, %v3198
        %v3745 = vpack.c.b16 %v3205, %v3199
        %v3746 = vpack.c.b16 %v3206, %v3200
        %v3747 = vpack.c.b16 %v3207, %v3201
        %v3748 = vpack.c.b16 %v3208, %v3202
        %v3749 = vpack.c.b16 %v3209, %v3203
        %v3750 = vpack.c.b16 %v3216, %v3210
        %v3751 = vpack.c.b16 %v3217, %v3211
        %v3752 = vpack.c.b16 %v3218, %v3212
        %v3753 = vpack.c.b16 %v3219, %v3213
        %v3754 = vpack.c.b16 %v3220, %v3214
        %v3755 = vpack.c.b16 %v3221, %v3215
        %v3756 = vpack.c.b16 %v3228, %v3222
        %v3757 = vpack.c.b16 %v3229, %v3223
        %v3758 = vpack.c.b16 %v3230, %v3224
        %v3759 = vpack.c.b16 %v3231, %v3225
        %v3760 = vpack.c.b16 %v3232, %v3226
        %v3761 = vpack.c.b16 %v3233, %v3227
        %v3762 = vpack.c.b16 %v3240, %v3234
        %v3763 = vpack.c.b16 %v3241, %v3235
        %v3764 = vpack.c.b16 %v3242, %v3236
        %v3765 = vpack.c.b16 %v3243, %v3237
        %v3766 = vpack.c.b16 %v3244, %v3238
        %v3767 = vpack.c.b16 %v3245, %v3239
        %v3768 = vpack.c.b16 %v3252, %v3246
        %v3769 = vpack.c.b16 %v3253, %v3247
        %v3770 = vpack.c.b16 %v3254, %v3248
        %v3771 = vpack.c.b16 %v3255, %v3249
        %v3772 = vpack.c.b16 %v3256, %v3250
        %v3773 = vpack.c.b16 %v3257, %v3251
        %v3774 = vpack.c.b16 %v3264, %v3258
        %v3775 = vpack.c.b16 %v3265, %v3259
        %v3776 = vpack.c.b16 %v3266, %v3260
        %v3777 = vpack.c.b16 %v3267, %v3261
        %v3778 = vpack.c.b16 %v3268, %v3262
        %v3779 = vpack.c.b16 %v3269, %v3263
        %v3780 = vpack.c.b16 %v3276, %v3270
        %v3781 = vpack.c.b16 %v3277, %v3271
        %v3782 = vpack.c.b16 %v3278, %v3272
        %v3783 = vpack.c.b16 %v3279, %v3273
        %v3784 = vpack.c.b16 %v3280, %v3274
        %v3785 = vpack.c.b16 %v3281, %v3275
        %v3786 = vpack.c.b16 %v3288, %v3282
        %v3787 = vpack.c.b16 %v3289, %v3283
        %v3788 = vpack.c.b16 %v3290, %v3284
        %v3789 = vpack.c.b16 %v3291, %v3285
        %v3790 = vpack.c.b16 %v3292, %v3286
        %v3791 = vpack.c.b16 %v3293, %v3287
        %v3792 = vpack.c.b16 %v3300, %v3294
        %v3793 = vpack.c.b16 %v3301, %v3295
        %v3794 = vpack.c.b16 %v3302, %v3296
        %v3795 = vpack.c.b16 %v3303, %v3297
        %v3796 = vpack.c.b16 %v3304, %v3298
        %v3797 = vpack.c.b16 %v3305, %v3299
        %v3798 = vpack.c.b16 %v3312, %v3306
        %v3799 = vpack.c.b16 %v3313, %v3307
        %v3800 = vpack.c.b16 %v3314, %v3308
        %v3801 = vpack.c.b16 %v3315, %v3309
        %v3802 = vpack.c.b16 %v3316, %v3310
        %v3803 = vpack.c.b16 %v3317, %v3311
        %v3804 = vpack.c.b16 %v3324, %v3318
        %v3805 = vpack.c.b16 %v3325, %v3319
        %v3806 = vpack.c.b16 %v3326, %v3320
        %v3807 = vpack.c.b16 %v3327, %v3321
        %v3808 = vpack.c.b16 %v3328, %v3322
        %v3809 = vpack.c.b16 %v3329, %v3323
        %v3810 = vpack.c.b16 %v3336, %v3330
        %v3811 = vpack.c.b16 %v3337, %v3331
        %v3812 = vpack.c.b16 %v3338, %v3332
        %v3813 = vpack.c.b16 %v3339, %v3333
        %v3814 = vpack.c.b16 %v3340, %v3334
        %v3815 = vpack.c.b16 %v3341, %v3335
        %v3816 = vpack.c.b16 %v3348, %v3342
        %v3817 = vpack.c.b16 %v3349, %v3343
        %v3818 = vpack.c.b16 %v3350, %v3344
        %v3819 = vpack.c.b16 %v3351, %v3345
        %v3820 = vpack.c.b16 %v3352, %v3346
        %v3821 = vpack.c.b16 %v3353, %v3347
        %v3822 = vpack.c.b16 %v3360, %v3354
        %v3823 = vpack.c.b16 %v3361, %v3355
        %v3824 = vpack.c.b16 %v3362, %v3356
        %v3825 = vpack.c.b16 %v3363, %v3357
        %v3826 = vpack.c.b16 %v3364, %v3358
        %v3827 = vpack.c.b16 %v3365, %v3359
        %v3828 = vpack.c.b16 %v3372, %v3366
        %v3829 = vpack.c.b16 %v3373, %v3367
        %v3830 = vpack.c.b16 %v3374, %v3368
        %v3831 = vpack.c.b16 %v3375, %v3369
        %v3832 = vpack.c.b16 %v3376, %v3370
        %v3833 = vpack.c.b16 %v3377, %v3371
        %v3834 = vpack.c.b16 %v3384, %v3378
        %v3835 = vpack.c.b16 %v3385, %v3379
        %v3836 = vpack.c.b16 %v3386, %v3380
        %v3837 = vpack.c.b16 %v3387, %v3381
        %v3838 = vpack.c.b16 %v3388, %v3382
        %v3839 = vpack.c.b16 %v3389, %v3383
        %v3840 = vpack.c.b16 %v3396, %v3390
        %v3841 = vpack.c.b16 %v3397, %v3391
        %v3842 = vpack.c.b16 %v3398, %v3392
        %v3843 = vpack.c.b16 %v3399, %v3393
        %v3844 = vpack.c.b16 %v3400, %v3394
        %v3845 = vpack.c.b16 %v3401, %v3395
        %v3846 = vpack.c.b16 %v3408, %v3402
        %v3847 = vpack.c.b16 %v3409, %v3403
        %v3848 = vpack.c.b16 %v3410, %v3404
        %v3849 = vpack.c.b16 %v3411, %v3405
        %v3850 = vpack.c.b16 %v3412, %v3406
        %v3851 = vpack.c.b16 %v3413, %v3407
        %v3852 = vpack.c.b16 %v3420, %v3414
        %v3853 = vpack.c.b16 %v3421, %v3415
        %v3854 = vpack.c.b16 %v3422, %v3416
        %v3855 = vpack.c.b16 %v3423, %v3417
        %v3856 = vpack.c.b16 %v3424, %v3418
        %v3857 = vpack.c.b16 %v3425, %v3419
        %v3858 = vpack.c.b16 %v3432, %v3426
        %v3859 = vpack.c.b16 %v3433, %v3427
        %v3860 = vpack.c.b16 %v3434, %v3428
        %v3861 = vpack.c.b16 %v3435, %v3429
        %v3862 = vpack.c.b16 %v3436, %v3430
        %v3863 = vpack.c.b16 %v3437, %v3431
        %v3864 = vpack.c.b16 %v3444, %v3438
        %v3865 = vpack.c.b16 %v3445, %v3439
        %v3866 = vpack.c.b16 %v3446, %v3440
        %v3867 = vpack.c.b16 %v3447, %v3441
        %v3868 = vpack.c.b16 %v3448, %v3442
        %v3869 = vpack.c.b16 %v3449, %v3443
        %v3870 = vpack.c.b16 %v3456, %v3450
        %v3871 = vpack.c.b16 %v3457, %v3451
        %v3872 = vpack.c.b16 %v3458, %v3452
        %v3873 = vpack.c.b16 %v3459, %v3453
        %v3874 = vpack.c.b16 %v3460, %v3454
        %v3875 = vpack.c.b16 %v3461, %v3455
        %v3876 = vpack.c.b16 %v3468, %v3462
        %v3877 = vpack.c.b16 %v3469, %v3463
        %v3878 = vpack.c.b16 %v3470, %v3464
        %v3879 = vpack.c.b16 %v3471, %v3465
        %v3880 = vpack.c.b16 %v3472, %v3466
        %v3881 = vpack.c.b16 %v3473, %v3467
        %v3882 = vpack.c.b16 %v3480, %v3474
        %v3883 = vpack.c.b16 %v3481, %v3475
        %v3884 = vpack.c.b16 %v3482, %v3476
        %v3885 = vpack.c.b16 %v3483, %v3477
        %v3886 = vpack.c.b16 %v3484, %v3478
        %v3887 = vpack.c.b16 %v3485, %v3479
        %v3888 = vpack.c.b16 %v3492, %v3486
        %v3889 = vpack.c.b16 %v3493, %v3487
        %v3890 = vpack.c.b16 %v3494, %v3488
        %v3891 = vpack.c.b16 %v3495, %v3489
        %v3892 = vpack.c.b16 %v3496, %v3490
        %v3893 = vpack.c.b16 %v3497, %v3491
        %v3894 = vpack.c.b16 %v3504, %v3498
        %v3895 = vpack.c.b16 %v3505, %v3499
        %v3896 = vpack.c.b16 %v3506, %v3500
        %v3897 = vpack.c.b16 %v3507, %v3501
        %v3898 = vpack.c.b16 %v3508, %v3502
        %v3899 = vpack.c.b16 %v3509, %v3503
        %v3900 = vpack.c.b16 %v3516, %v3510
        %v3901 = vpack.c.b16 %v3517, %v3511
        %v3902 = vpack.c.b16 %v3518, %v3512
        %v3903 = vpack.c.b16 %v3519, %v3513
        %v3904 = vpack.c.b16 %v3520, %v3514
        %v3905 = vpack.c.b16 %v3521, %v3515
        %v3906 = vpack.c.b16 %v3528, %v3522
        %v3907 = vpack.c.b16 %v3529, %v3523
        %v3908 = vpack.c.b16 %v3530, %v3524
        %v3909 = vpack.c.b16 %v3531, %v3525
        %v3910 = vpack.c.b16 %v3532, %v3526
        %v3911 = vpack.c.b16 %v3533, %v3527
        %v3912 = vpack.c.b16 %v3540, %v3534
        %v3913 = vpack.c.b16 %v3541, %v3535
        %v3914 = vpack.c.b16 %v3542, %v3536
        %v3915 = vpack.c.b16 %v3543, %v3537
        %v3916 = vpack.c.b16 %v3544, %v3538
        %v3917 = vpack.c.b16 %v3545, %v3539
        %v3918 = vpack.c.b16 %v3552, %v3546
        %v3919 = vpack.c.b16 %v3553, %v3547
        %v3920 = vpack.c.b16 %v3554, %v3548
        %v3921 = vpack.c.b16 %v3555, %v3549
        %v3922 = vpack.c.b16 %v3556, %v3550
        %v3923 = vpack.c.b16 %v3557, %v3551
        %v3924 = vpack.c.b16 %v3564, %v3558
        %v3925 = vpack.c.b16 %v3565, %v3559
        %v3926 = vpack.c.b16 %v3566, %v3560
        %v3927 = vpack.c.b16 %v3567, %v3561
        %v3928 = vpack.c.b16 %v3568, %v3562
        %v3929 = vpack.c.b16 %v3569, %v3563
        %v3930 = vpack.c.b16 %v3576, %v3570
        %v3931 = vpack.c.b16 %v3577, %v3571
        %v3932 = vpack.c.b16 %v3578, %v3572
        %v3933 = vpack.c.b16 %v3579, %v3573
        %v3934 = vpack.c.b16 %v3580, %v3574
        %v3935 = vpack.c.b16 %v3581, %v3575
        %v3936 = vpack.c.b16 %v3588, %v3582
        %v3937 = vpack.c.b16 %v3589, %v3583
        %v3938 = vpack.c.b16 %v3590, %v3584
        %v3939 = vpack.c.b16 %v3591, %v3585
        %v3940 = vpack.c.b16 %v3592, %v3586
        %v3941 = vpack.c.b16 %v3593, %v3587
        %v3942 = vpack.c.b16 %v3600, %v3594
        %v3943 = vpack.c.b16 %v3601, %v3595
        %v3944 = vpack.c.b16 %v3602, %v3596
        %v3945 = vpack.c.b16 %v3603, %v3597
        %v3946 = vpack.c.b16 %v3604, %v3598
        %v3947 = vpack.c.b16 %v3605, %v3599
        %v3948 = vpack.c.b16 %v3612, %v3606
        %v3949 = vpack.c.b16 %v3613, %v3607
        %v3950 = vpack.c.b16 %v3614, %v3608
        %v3951 = vpack.c.b16 %v3615, %v3609
        %v3952 = vpack.c.b16 %v3616, %v3610
        %v3953 = vpack.c.b16 %v3617, %v3611
        %v3954 = vpack.c.b16 %v3624, %v3618
        %v3955 = vpack.c.b16 %v3625, %v3619
        %v3956 = vpack.c.b16 %v3626, %v3620
        %v3957 = vpack.c.b16 %v3627, %v3621
        %v3958 = vpack.c.b16 %v3628, %v3622
        %v3959 = vpack.c.b16 %v3629, %v3623
        %v3960 = vpack.c.b16 %v3636, %v3630
        %v3961 = vpack.c.b16 %v3637, %v3631
        %v3962 = vpack.c.b16 %v3638, %v3632
        %v3963 = vpack.c.b16 %v3639, %v3633
        %v3964 = vpack.c.b16 %v3640, %v3634
        %v3965 = vpack.c.b16 %v3641, %v3635
        %v3966 = vpack.c.b16 %v3648, %v3642
        %v3967 = vpack.c.b16 %v3649, %v3643
        %v3968 = vpack.c.b16 %v3650, %v3644
        %v3969 = vpack.c.b16 %v3651, %v3645
        %v3970 = vpack.c.b16 %v3652, %v3646
        %v3971 = vpack.c.b16 %v3653, %v3647
        %v3972 = vpack.c.b16 %v3660, %v3654
        %v3973 = vpack.c.b16 %v3661, %v3655
        %v3974 = vpack.c.b16 %v3662, %v3656
        %v3975 = vpack.c.b16 %v3663, %v3657
        %v3976 = vpack.c.b16 %v3664, %v3658
        %v3977 = vpack.c.b16 %v3665, %v3659
        %v3978 = vpack.c.b16 %v3672, %v3666
        %v3979 = vpack.c.b16 %v3673, %v3667
        %v3980 = vpack.c.b16 %v3674, %v3668
        %v3981 = vpack.c.b16 %v3675, %v3669
        %v3982 = vpack.c.b16 %v3676, %v3670
        %v3983 = vpack.c.b16 %v3677, %v3671
        %v3984 = vpack.c.b16 %v3684, %v3678
        %v3985 = vpack.c.b16 %v3685, %v3679
        %v3986 = vpack.c.b16 %v3686, %v3680
        %v3987 = vpack.c.b16 %v3687, %v3681
        %v3988 = vpack.c.b16 %v3688, %v3682
        %v3989 = vpack.c.b16 %v3689, %v3683
        %v3990 = vpack.c.b16 %v3696, %v3690
        %v3991 = vpack.c.b16 %v3697, %v3691
        %v3992 = vpack.c.b16 %v3698, %v3692
        %v3993 = vpack.c.b16 %v3699, %v3693
        %v3994 = vpack.c.b16 %v3700, %v3694
        %v3995 = vpack.c.b16 %v3701, %v3695
        %v3996 = vpack.c.b16 %v3708, %v3702
        %v3997 = vpack.c.b16 %v3709, %v3703
        %v3998 = vpack.c.b16 %v3710, %v3704
        %v3999 = vpack.c.b16 %v3711, %v3705
        %v4000 = vpack.c.b16 %v3712, %v3706
        %v4001 = vpack.c.b16 %v3713, %v3707
        %4290 = vmatprep.subr.bf16.mxu0 %v3757
        %4291 = vmatpush1.bf16.msra.mxu0 %v3756
        %4292 = vmatprep.subr.bf16.mxu0 %v3751
        %4293 = vmatpush1.bf16.msra.mxu0 %v3750
        %4294 = vmatprep.subr.bf16.mxu0 %v3745
        %4295 = vmatpush1.bf16.msra.mxu0 %v3744
        %4296 = vmatprep.subr.bf16.mxu0 %v3739
        %4297 = vmatpush1.bf16.msra.mxu0 %v3738
        %4298 = vmatprep.subr.bf16.mxu0 %v3733
        %4299 = vmatpush1.bf16.msra.mxu0 %v3732
        %4300 = vmatprep.subr.bf16.mxu0 %v3727
        %4301 = vmatpush1.bf16.msra.mxu0 %v3726
        %4302 = vmatprep.subr.bf16.mxu0 %v3721
        %4303 = vmatpush1.bf16.msra.mxu0 %v3720
        %4304 = vmatprep.subr.bf16.mxu0 %v3715
        %4305 = vmatpush1.bf16.msra.mxu0 %v3714
        %4306 = vmatprep.subr.bf16.mxu0 %v3805
        %4307 = vmatpush2.bf16.msra.mxu0 %v3804
        %4308 = vmatprep.subr.bf16.mxu0 %v3799
        %4309 = vmatpush2.bf16.msra.mxu0 %v3798
        %4310 = vmatprep.subr.bf16.mxu0 %v3793
        %4311 = vmatpush2.bf16.msra.mxu0 %v3792
        %4312 = vmatprep.subr.bf16.mxu0 %v3787
        %4313 = vmatpush2.bf16.msra.mxu0 %v3786
        %4314 = vmatprep.subr.bf16.mxu0 %v3781
        %4315 = vmatpush2.bf16.msra.mxu0 %v3780
        %4316 = vmatprep.subr.bf16.mxu0 %v3775
        %4317 = vmatpush2.bf16.msra.mxu0 %v3774
        %4318 = vmatprep.subr.bf16.mxu0 %v3769
        %4319 = vmatpush2.bf16.msra.mxu0 %v3768
        %4320 = vmatprep.subr.bf16.mxu0 %v3763
        %4321 = vmatpush2.bf16.msra.mxu0 %v3762
        %4322 = vmatprep.mubr.bf16.mxu0 %v2525
        %4323 = vmatmul.mubr.bf16.gmra.mxu0 %v2524
        %v4324 = vpop.f32.mrf.mxu0
        %v4325 = vadd.f32 %v2823, %v4324
        %v4326 = vpop.f32.mrf.mxu0
        %v4327 = vadd.f32 %v2827, %v4326
        %v4328 = vpop.f32.mrf.mxu0
        %v4329 = vpop.f32.mrf.mxu0
        %4330 = vdwg.mxu0
        %4331 = vmatprep.subr.bf16.mxu0 %v3853
        %4332 = vmatpush1.bf16.msra.mxu0 %v3852
        %4333 = vmatprep.subr.bf16.mxu0 %v3847
        %4334 = vmatpush1.bf16.msra.mxu0 %v3846
        %4335 = vmatprep.subr.bf16.mxu0 %v3841
        %4336 = vmatpush1.bf16.msra.mxu0 %v3840
        %4337 = vmatprep.subr.bf16.mxu0 %v3835
        %4338 = vmatpush1.bf16.msra.mxu0 %v3834
        %4339 = vmatprep.subr.bf16.mxu0 %v3829
        %4340 = vmatpush1.bf16.msra.mxu0 %v3828
        %4341 = vmatprep.subr.bf16.mxu0 %v3823
        %4342 = vmatpush1.bf16.msra.mxu0 %v3822
        %4343 = vmatprep.subr.bf16.mxu0 %v3817
        %4344 = vmatpush1.bf16.msra.mxu0 %v3816
        %4345 = vmatprep.subr.bf16.mxu0 %v3811
        %4346 = vmatpush1.bf16.msra.mxu0 %v3810
        %4347 = vmatprep.subr.bf16.mxu0 %v3901
        %4348 = vmatpush2.bf16.msra.mxu0 %v3900
        %4349 = vmatprep.subr.bf16.mxu0 %v3895
        %4350 = vmatpush2.bf16.msra.mxu0 %v3894
        %4351 = vmatprep.subr.bf16.mxu0 %v3889
        %4352 = vmatpush2.bf16.msra.mxu0 %v3888
        %4353 = vmatprep.subr.bf16.mxu0 %v3883
        %4354 = vmatpush2.bf16.msra.mxu0 %v3882
        %4355 = vmatprep.subr.bf16.mxu0 %v3877
        %4356 = vmatpush2.bf16.msra.mxu0 %v3876
        %4357 = vmatprep.subr.bf16.mxu0 %v3871
        %4358 = vmatpush2.bf16.msra.mxu0 %v3870
        %4359 = vmatprep.subr.bf16.mxu0 %v3865
        %4360 = vmatpush2.bf16.msra.mxu0 %v3864
        %4361 = vmatprep.subr.bf16.mxu0 %v3859
        %4362 = vmatpush2.bf16.msra.mxu0 %v3858
        %4363 = vmatprep.mubr.bf16.mxu0 %v2527
        %4364 = vmatmul.mubr.bf16.gmra.mxu0 %v2526
        %v4365 = vpop.f32.mrf.mxu0
        %v4366 = vadd.f32 %v4325, %v4365
        %v4367 = vpop.f32.mrf.mxu0
        %v4368 = vadd.f32 %v4327, %v4367
        %v4369 = vpop.f32.mrf.mxu0
        %v4370 = vpop.f32.mrf.mxu0
        %4371 = vdwg.mxu0
        %4372 = vmatprep.subr.bf16.mxu0 %v3949
        %4373 = vmatpush1.bf16.msra.mxu0 %v3948
        %4374 = vmatprep.subr.bf16.mxu0 %v3943
        %4375 = vmatpush1.bf16.msra.mxu0 %v3942
        %4376 = vmatprep.subr.bf16.mxu0 %v3937
        %4377 = vmatpush1.bf16.msra.mxu0 %v3936
        %4378 = vmatprep.subr.bf16.mxu0 %v3931
        %4379 = vmatpush1.bf16.msra.mxu0 %v3930
        %4380 = vmatprep.subr.bf16.mxu0 %v3925
        %4381 = vmatpush1.bf16.msra.mxu0 %v3924
        %4382 = vmatprep.subr.bf16.mxu0 %v3919
        %4383 = vmatpush1.bf16.msra.mxu0 %v3918
        %4384 = vmatprep.subr.bf16.mxu0 %v3913
        %4385 = vmatpush1.bf16.msra.mxu0 %v3912
        %4386 = vmatprep.subr.bf16.mxu0 %v3907
        %4387 = vmatpush1.bf16.msra.mxu0 %v3906
        %4388 = vmatprep.subr.bf16.mxu0 %v3997
        %4389 = vmatpush2.bf16.msra.mxu0 %v3996
        %4390 = vmatprep.subr.bf16.mxu0 %v3991
        %4391 = vmatpush2.bf16.msra.mxu0 %v3990
        %4392 = vmatprep.subr.bf16.mxu0 %v3985
        %4393 = vmatpush2.bf16.msra.mxu0 %v3984
        %4394 = vmatprep.subr.bf16.mxu0 %v3979
        %4395 = vmatpush2.bf16.msra.mxu0 %v3978
        %4396 = vmatprep.subr.bf16.mxu0 %v3973
        %4397 = vmatpush2.bf16.msra.mxu0 %v3972
        %4398 = vmatprep.subr.bf16.mxu0 %v3967
        %4399 = vmatpush2.bf16.msra.mxu0 %v3966
        %4400 = vmatprep.subr.bf16.mxu0 %v3961
        %4401 = vmatpush2.bf16.msra.mxu0 %v3960
        %4402 = vmatprep.subr.bf16.mxu0 %v3955
        %4403 = vmatpush2.bf16.msra.mxu0 %v3954
        %4404 = vmatprep.mubr.bf16.mxu0 %v2529
        %4405 = vmatmul.mubr.bf16.gmra.mxu0 %v2528
        %v4406 = vpop.f32.mrf.mxu0
        %v4407 = vadd.f32 %v4366, %v4406
        %v4408 = vpop.f32.mrf.mxu0
        %v4409 = vadd.f32 %v4368, %v4408
        %v4410 = vpop.f32.mrf.mxu0
        %v4411 = vpop.f32.mrf.mxu0
        %4412 = vdwg.mxu0
        %4413 = vmatprep.subr.bf16.mxu0 %v3759
        %4414 = vmatpush1.bf16.msra.mxu0 %v3758
        %4415 = vmatprep.subr.bf16.mxu0 %v3753
        %4416 = vmatpush1.bf16.msra.mxu0 %v3752
        %4417 = vmatprep.subr.bf16.mxu0 %v3747
        %4418 = vmatpush1.bf16.msra.mxu0 %v3746
        %4419 = vmatprep.subr.bf16.mxu0 %v3741
        %4420 = vmatpush1.bf16.msra.mxu0 %v3740
        %4421 = vmatprep.subr.bf16.mxu0 %v3735
        %4422 = vmatpush1.bf16.msra.mxu0 %v3734
        %4423 = vmatprep.subr.bf16.mxu0 %v3729
        %4424 = vmatpush1.bf16.msra.mxu0 %v3728
        %4425 = vmatprep.subr.bf16.mxu0 %v3723
        %4426 = vmatpush1.bf16.msra.mxu0 %v3722
        %4427 = vmatprep.subr.bf16.mxu0 %v3717
        %4428 = vmatpush1.bf16.msra.mxu0 %v3716
        %4429 = vmatprep.subr.bf16.mxu0 %v3807
        %4430 = vmatpush2.bf16.msra.mxu0 %v3806
        %4431 = vmatprep.subr.bf16.mxu0 %v3801
        %4432 = vmatpush2.bf16.msra.mxu0 %v3800
        %4433 = vmatprep.subr.bf16.mxu0 %v3795
        %4434 = vmatpush2.bf16.msra.mxu0 %v3794
        %4435 = vmatprep.subr.bf16.mxu0 %v3789
        %4436 = vmatpush2.bf16.msra.mxu0 %v3788
        %4437 = vmatprep.subr.bf16.mxu0 %v3783
        %4438 = vmatpush2.bf16.msra.mxu0 %v3782
        %4439 = vmatprep.subr.bf16.mxu0 %v3777
        %4440 = vmatpush2.bf16.msra.mxu0 %v3776
        %4441 = vmatprep.subr.bf16.mxu0 %v3771
        %4442 = vmatpush2.bf16.msra.mxu0 %v3770
        %4443 = vmatprep.subr.bf16.mxu0 %v3765
        %4444 = vmatpush2.bf16.msra.mxu0 %v3764
        %4445 = vmatprep.mubr.bf16.mxu0 %v2525
        %4446 = vmatmul.mubr.bf16.gmra.mxu0 %v2524
        %v4447 = vpop.f32.mrf.mxu0
        %v4448 = vadd.f32 %v2831, %v4447
        %v4449 = vpop.f32.mrf.mxu0
        %v4450 = vadd.f32 %v2835, %v4449
        %v4451 = vpop.f32.mrf.mxu0
        %v4452 = vpop.f32.mrf.mxu0
        %4453 = vdwg.mxu0
        %4454 = vmatprep.subr.bf16.mxu0 %v3855
        %4455 = vmatpush1.bf16.msra.mxu0 %v3854
        %4456 = vmatprep.subr.bf16.mxu0 %v3849
        %4457 = vmatpush1.bf16.msra.mxu0 %v3848
        %4458 = vmatprep.subr.bf16.mxu0 %v3843
        %4459 = vmatpush1.bf16.msra.mxu0 %v3842
        %4460 = vmatprep.subr.bf16.mxu0 %v3837
        %4461 = vmatpush1.bf16.msra.mxu0 %v3836
        %4462 = vmatprep.subr.bf16.mxu0 %v3831
        %4463 = vmatpush1.bf16.msra.mxu0 %v3830
        %4464 = vmatprep.subr.bf16.mxu0 %v3825
        %4465 = vmatpush1.bf16.msra.mxu0 %v3824
        %4466 = vmatprep.subr.bf16.mxu0 %v3819
        %4467 = vmatpush1.bf16.msra.mxu0 %v3818
        %4468 = vmatprep.subr.bf16.mxu0 %v3813
        %4469 = vmatpush1.bf16.msra.mxu0 %v3812
        %4470 = vmatprep.subr.bf16.mxu0 %v3903
        %4471 = vmatpush2.bf16.msra.mxu0 %v3902
        %4472 = vmatprep.subr.bf16.mxu0 %v3897
        %4473 = vmatpush2.bf16.msra.mxu0 %v3896
        %4474 = vmatprep.subr.bf16.mxu0 %v3891
        %4475 = vmatpush2.bf16.msra.mxu0 %v3890
        %4476 = vmatprep.subr.bf16.mxu0 %v3885
        %4477 = vmatpush2.bf16.msra.mxu0 %v3884
        %4478 = vmatprep.subr.bf16.mxu0 %v3879
        %4479 = vmatpush2.bf16.msra.mxu0 %v3878
        %4480 = vmatprep.subr.bf16.mxu0 %v3873
        %4481 = vmatpush2.bf16.msra.mxu0 %v3872
        %4482 = vmatprep.subr.bf16.mxu0 %v3867
        %4483 = vmatpush2.bf16.msra.mxu0 %v3866
        %4484 = vmatprep.subr.bf16.mxu0 %v3861
        %4485 = vmatpush2.bf16.msra.mxu0 %v3860
        %4486 = vmatprep.mubr.bf16.mxu0 %v2527
        %4487 = vmatmul.mubr.bf16.gmra.mxu0 %v2526
        %v4488 = vpop.f32.mrf.mxu0
        %v4489 = vadd.f32 %v4448, %v4488
        %v4490 = vpop.f32.mrf.mxu0
        %v4491 = vadd.f32 %v4450, %v4490
        %v4492 = vpop.f32.mrf.mxu0
        %v4493 = vpop.f32.mrf.mxu0
        %4494 = vdwg.mxu0
        %4495 = vmatprep.subr.bf16.mxu0 %v3951
        %4496 = vmatpush1.bf16.msra.mxu0 %v3950
        %4497 = vmatprep.subr.bf16.mxu0 %v3945
        %4498 = vmatpush1.bf16.msra.mxu0 %v3944
        %4499 = vmatprep.subr.bf16.mxu0 %v3939
        %4500 = vmatpush1.bf16.msra.mxu0 %v3938
        %4501 = vmatprep.subr.bf16.mxu0 %v3933
        %4502 = vmatpush1.bf16.msra.mxu0 %v3932
        %4503 = vmatprep.subr.bf16.mxu0 %v3927
        %4504 = vmatpush1.bf16.msra.mxu0 %v3926
        %4505 = vmatprep.subr.bf16.mxu0 %v3921
        %4506 = vmatpush1.bf16.msra.mxu0 %v3920
        %4507 = vmatprep.subr.bf16.mxu0 %v3915
        %4508 = vmatpush1.bf16.msra.mxu0 %v3914
        %4509 = vmatprep.subr.bf16.mxu0 %v3909
        %4510 = vmatpush1.bf16.msra.mxu0 %v3908
        %4511 = vmatprep.subr.bf16.mxu0 %v3999
        %4512 = vmatpush2.bf16.msra.mxu0 %v3998
        %4513 = vmatprep.subr.bf16.mxu0 %v3993
        %4514 = vmatpush2.bf16.msra.mxu0 %v3992
        %4515 = vmatprep.subr.bf16.mxu0 %v3987
        %4516 = vmatpush2.bf16.msra.mxu0 %v3986
        %4517 = vmatprep.subr.bf16.mxu0 %v3981
        %4518 = vmatpush2.bf16.msra.mxu0 %v3980
        %4519 = vmatprep.subr.bf16.mxu0 %v3975
        %4520 = vmatpush2.bf16.msra.mxu0 %v3974
        %4521 = vmatprep.subr.bf16.mxu0 %v3969
        %4522 = vmatpush2.bf16.msra.mxu0 %v3968
        %4523 = vmatprep.subr.bf16.mxu0 %v3963
        %4524 = vmatpush2.bf16.msra.mxu0 %v3962
        %4525 = vmatprep.subr.bf16.mxu0 %v3957
        %4526 = vmatpush2.bf16.msra.mxu0 %v3956
        %4527 = vmatprep.mubr.bf16.mxu0 %v2529
        %4528 = vmatmul.mubr.bf16.gmra.mxu0 %v2528
        %v4529 = vpop.f32.mrf.mxu0
        %v4530 = vadd.f32 %v4489, %v4529
        %v4531 = vpop.f32.mrf.mxu0
        %v4532 = vadd.f32 %v4491, %v4531
        %v4533 = vpop.f32.mrf.mxu0
        %v4534 = vpop.f32.mrf.mxu0
        %4535 = vdwg.mxu0
        %4536 = vmatprep.subr.bf16.mxu0 %v3761
        %4537 = vmatpush1.bf16.msra.mxu0 %v3760
        %4538 = vmatprep.subr.bf16.mxu0 %v3755
        %4539 = vmatpush1.bf16.msra.mxu0 %v3754
        %4540 = vmatprep.subr.bf16.mxu0 %v3749
        %4541 = vmatpush1.bf16.msra.mxu0 %v3748
        %4542 = vmatprep.subr.bf16.mxu0 %v3743
        %4543 = vmatpush1.bf16.msra.mxu0 %v3742
        %4544 = vmatprep.subr.bf16.mxu0 %v3737
        %4545 = vmatpush1.bf16.msra.mxu0 %v3736
        %4546 = vmatprep.subr.bf16.mxu0 %v3731
        %4547 = vmatpush1.bf16.msra.mxu0 %v3730
        %4548 = vmatprep.subr.bf16.mxu0 %v3725
        %4549 = vmatpush1.bf16.msra.mxu0 %v3724
        %4550 = vmatprep.subr.bf16.mxu0 %v3719
        %4551 = vmatpush1.bf16.msra.mxu0 %v3718
        %4552 = vmatprep.subr.bf16.mxu0 %v3809
        %4553 = vmatpush2.bf16.msra.mxu0 %v3808
        %4554 = vmatprep.subr.bf16.mxu0 %v3803
        %4555 = vmatpush2.bf16.msra.mxu0 %v3802
        %4556 = vmatprep.subr.bf16.mxu0 %v3797
        %4557 = vmatpush2.bf16.msra.mxu0 %v3796
        %4558 = vmatprep.subr.bf16.mxu0 %v3791
        %4559 = vmatpush2.bf16.msra.mxu0 %v3790
        %4560 = vmatprep.subr.bf16.mxu0 %v3785
        %4561 = vmatpush2.bf16.msra.mxu0 %v3784
        %4562 = vmatprep.subr.bf16.mxu0 %v3779
        %4563 = vmatpush2.bf16.msra.mxu0 %v3778
        %4564 = vmatprep.subr.bf16.mxu0 %v3773
        %4565 = vmatpush2.bf16.msra.mxu0 %v3772
        %4566 = vmatprep.subr.bf16.mxu0 %v3767
        %4567 = vmatpush2.bf16.msra.mxu0 %v3766
        %4568 = vmatprep.mubr.bf16.mxu0 %v2525
        %4569 = vmatmul.mubr.bf16.gmra.mxu0 %v2524
        %v4570 = vpop.f32.mrf.mxu0
        %v4571 = vadd.f32 %v2839, %v4570
        %v4572 = vpop.f32.mrf.mxu0
        %v4573 = vadd.f32 %v2843, %v4572
        %v4574 = vpop.f32.mrf.mxu0
        %v4575 = vpop.f32.mrf.mxu0
        %4576 = vdwg.mxu0
        %4577 = vmatprep.subr.bf16.mxu0 %v3857
        %4578 = vmatpush1.bf16.msra.mxu0 %v3856
        %4579 = vmatprep.subr.bf16.mxu0 %v3851
        %4580 = vmatpush1.bf16.msra.mxu0 %v3850
        %4581 = vmatprep.subr.bf16.mxu0 %v3845
        %4582 = vmatpush1.bf16.msra.mxu0 %v3844
        %4583 = vmatprep.subr.bf16.mxu0 %v3839
        %4584 = vmatpush1.bf16.msra.mxu0 %v3838
        %4585 = vmatprep.subr.bf16.mxu0 %v3833
        %4586 = vmatpush1.bf16.msra.mxu0 %v3832
        %4587 = vmatprep.subr.bf16.mxu0 %v3827
        %4588 = vmatpush1.bf16.msra.mxu0 %v3826
        %4589 = vmatprep.subr.bf16.mxu0 %v3821
        %4590 = vmatpush1.bf16.msra.mxu0 %v3820
        %4591 = vmatprep.subr.bf16.mxu0 %v3815
        %4592 = vmatpush1.bf16.msra.mxu0 %v3814
        %4593 = vmatprep.subr.bf16.mxu0 %v3905
        %4594 = vmatpush2.bf16.msra.mxu0 %v3904
        %4595 = vmatprep.subr.bf16.mxu0 %v3899
        %4596 = vmatpush2.bf16.msra.mxu0 %v3898
        %4597 = vmatprep.subr.bf16.mxu0 %v3893
        %4598 = vmatpush2.bf16.msra.mxu0 %v3892
        %4599 = vmatprep.subr.bf16.mxu0 %v3887
        %4600 = vmatpush2.bf16.msra.mxu0 %v3886
        %4601 = vmatprep.subr.bf16.mxu0 %v3881
        %4602 = vmatpush2.bf16.msra.mxu0 %v3880
        %4603 = vmatprep.subr.bf16.mxu0 %v3875
        %4604 = vmatpush2.bf16.msra.mxu0 %v3874
        %4605 = vmatprep.subr.bf16.mxu0 %v3869
        %4606 = vmatpush2.bf16.msra.mxu0 %v3868
        %4607 = vmatprep.subr.bf16.mxu0 %v3863
        %4608 = vmatpush2.bf16.msra.mxu0 %v3862
        %4609 = vmatprep.mubr.bf16.mxu0 %v2527
        %4610 = vmatmul.mubr.bf16.gmra.mxu0 %v2526
        %v4611 = vpop.f32.mrf.mxu0
        %v4612 = vadd.f32 %v4571, %v4611
        %v4613 = vpop.f32.mrf.mxu0
        %v4614 = vadd.f32 %v4573, %v4613
        %v4615 = vpop.f32.mrf.mxu0
        %v4616 = vpop.f32.mrf.mxu0
        %4617 = vdwg.mxu0
        %4618 = vmatprep.subr.bf16.mxu0 %v3953
        %4619 = vmatpush1.bf16.msra.mxu0 %v3952
        %4620 = vmatprep.subr.bf16.mxu0 %v3947
        %4621 = vmatpush1.bf16.msra.mxu0 %v3946
        %4622 = vmatprep.subr.bf16.mxu0 %v3941
        %4623 = vmatpush1.bf16.msra.mxu0 %v3940
        %4624 = vmatprep.subr.bf16.mxu0 %v3935
        %4625 = vmatpush1.bf16.msra.mxu0 %v3934
        %4626 = vmatprep.subr.bf16.mxu0 %v3929
        %4627 = vmatpush1.bf16.msra.mxu0 %v3928
        %4628 = vmatprep.subr.bf16.mxu0 %v3923
        %4629 = vmatpush1.bf16.msra.mxu0 %v3922
        %4630 = vmatprep.subr.bf16.mxu0 %v3917
        %4631 = vmatpush1.bf16.msra.mxu0 %v3916
        %4632 = vmatprep.subr.bf16.mxu0 %v3911
        %4633 = vmatpush1.bf16.msra.mxu0 %v3910
        %4634 = vmatprep.subr.bf16.mxu0 %v4001
        %4635 = vmatpush2.bf16.msra.mxu0 %v4000
        %4636 = vmatprep.subr.bf16.mxu0 %v3995
        %4637 = vmatpush2.bf16.msra.mxu0 %v3994
        %4638 = vmatprep.subr.bf16.mxu0 %v3989
        %4639 = vmatpush2.bf16.msra.mxu0 %v3988
        %4640 = vmatprep.subr.bf16.mxu0 %v3983
        %4641 = vmatpush2.bf16.msra.mxu0 %v3982
        %4642 = vmatprep.subr.bf16.mxu0 %v3977
        %4643 = vmatpush2.bf16.msra.mxu0 %v3976
        %4644 = vmatprep.subr.bf16.mxu0 %v3971
        %4645 = vmatpush2.bf16.msra.mxu0 %v3970
        %4646 = vmatprep.subr.bf16.mxu0 %v3965
        %4647 = vmatpush2.bf16.msra.mxu0 %v3964
        %4648 = vmatprep.subr.bf16.mxu0 %v3959
        %4649 = vmatpush2.bf16.msra.mxu0 %v3958
        %4650 = vmatprep.mubr.bf16.mxu0 %v2529
        %4651 = vmatmul.mubr.bf16.gmra.mxu0 %v2528
        %v4652 = vpop.f32.mrf.mxu0
        %v4653 = vadd.f32 %v4612, %v4652
        %v4654 = vpop.f32.mrf.mxu0
        %v4655 = vadd.f32 %v4614, %v4654
        %v4656 = vpop.f32.mrf.mxu0
        %v4657 = vpop.f32.mrf.mxu0
        %4658 = vdwg.mxu0
        %v4659 = vmax.f32 %v4407, 0.0
        %v4660 = vmax.f32 %v4409, 0.0
        %v4661 = vmax.f32 %v4530, 0.0
        %v4662 = vmax.f32 %v4532, 0.0
        %v4663 = vmax.f32 %v4653, 0.0
        %v4664 = vmax.f32 %v4655, 0.0
        %v4665 = vpack.c.bf16 %v4659, %v4659
        %v4666 = vpack.c.bf16 %v4660, %v4660
        %v4667 = vpack.c.bf16 %v4661, %v4661
        %v4668 = vpack.c.bf16 %v4662, %v4662
        %v4669 = vpack.c.bf16 %v4663, %v4663
        %v4670 = vpack.c.bf16 %v4664, %v4664
        %v4671 = vld [vmem:[#allocation11] sm:$0xf]
        %v4672 = vld [vmem:[#allocation11 + $0x4] sm:$0xf]
        %v4673 = vld [vmem:[#allocation11 + $0x8] sm:$0xf]
        %v4674 = vld [vmem:[#allocation11 + $0xc] sm:$0xf]
        %v4675 = vld [vmem:[#allocation11 + $0x10] sm:$0xf]
        %v4676 = vld [vmem:[#allocation11 + $0x14] sm:$0xf]
        %v4677 = vld [vmem:[#allocation11 + $0x18] sm:$0xf]
        %v4678 = vld [vmem:[#allocation11 + $0x1c] sm:$0xf]
        %v4679 = vld [vmem:[#allocation11 + $0x20] sm:$0xf]
        %v4680 = vld [vmem:[#allocation11 + $0x24] sm:$0xf]
        %v4681 = vld [vmem:[#allocation11 + $0x28] sm:$0xf]
        %v4682 = vld [vmem:[#allocation11 + $0x2c] sm:$0xf]
        %v4683 = vld [vmem:[#allocation11 + $0x30] sm:$0xf]
        %v4684 = vld [vmem:[#allocation11 + $0x34] sm:$0xf]
        %v4685 = vld [vmem:[#allocation11 + $0x38] sm:$0xf]
        %v4686 = vld [vmem:[#allocation11 + $0x3c] sm:$0xf]
        %v4687 = vld [vmem:[#allocation11 + $0x40] sm:$0xf]
        %v4688 = vld [vmem:[#allocation11 + $0x44] sm:$0xf]
        %v4689 = vld [vmem:[#allocation11 + $0x48] sm:$0xf]
        %v4690 = vld [vmem:[#allocation11 + $0x4c] sm:$0xf]
        %v4691 = vld [vmem:[#allocation11 + $0x50] sm:$0xf]
        %v4692 = vld [vmem:[#allocation11 + $0x54] sm:$0xf]
        %v4693 = vld [vmem:[#allocation11 + $0x58] sm:$0xf]
        %v4694 = vld [vmem:[#allocation11 + $0x5c] sm:$0xf]
        %v4695 = vld [vmem:[#allocation11 + $0x60] sm:$0xf]
        %v4696 = vld [vmem:[#allocation11 + $0x64] sm:$0xf]
        %v4697 = vld [vmem:[#allocation11 + $0x68] sm:$0xf]
        %v4698 = vld [vmem:[#allocation11 + $0x6c] sm:$0xf]
        %v4699 = vld [vmem:[#allocation11 + $0x70] sm:$0xf]
        %v4700 = vld [vmem:[#allocation11 + $0x74] sm:$0xf]
        %v4701 = vld [vmem:[#allocation11 + $0x78] sm:$0xf]
        %v4702 = vld [vmem:[#allocation11 + $0x7c] sm:$0xf]
        %v4703 = vld [vmem:[#allocation11 + $0x80] sm:$0xf]
        %v4704 = vld [vmem:[#allocation11 + $0x84] sm:$0xf]
        %v4705 = vld [vmem:[#allocation11 + $0x88] sm:$0xf]
        %v4706 = vld [vmem:[#allocation11 + $0x8c] sm:$0xf]
        %v4707 = vld [vmem:[#allocation11 + $0x90] sm:$0xf]
        %v4708 = vld [vmem:[#allocation11 + $0x94] sm:$0xf]
        %v4709 = vld [vmem:[#allocation11 + $0x98] sm:$0xf]
        %v4710 = vld [vmem:[#allocation11 + $0x9c] sm:$0xf]
        %v4711 = vld [vmem:[#allocation11 + $0xa0] sm:$0xf]
        %v4712 = vld [vmem:[#allocation11 + $0xa4] sm:$0xf]
        %v4713 = vld [vmem:[#allocation11 + $0xa8] sm:$0xf]
        %v4714 = vld [vmem:[#allocation11 + $0xac] sm:$0xf]
        %v4715 = vld [vmem:[#allocation11 + $0xb0] sm:$0xf]
        %v4716 = vld [vmem:[#allocation11 + $0xb4] sm:$0xf]
        %v4717 = vld [vmem:[#allocation11 + $0xb8] sm:$0xf]
        %v4718 = vld [vmem:[#allocation11 + $0xbc] sm:$0xf]
        %v4719 = vld [vmem:[#allocation11 + $0xc0] sm:$0xf]
        %v4720 = vld [vmem:[#allocation11 + $0xc4] sm:$0xf]
        %v4721 = vld [vmem:[#allocation11 + $0xc8] sm:$0xf]
        %v4722 = vld [vmem:[#allocation11 + $0xcc] sm:$0xf]
        %v4723 = vld [vmem:[#allocation11 + $0xd0] sm:$0xf]
        %v4724 = vld [vmem:[#allocation11 + $0xd4] sm:$0xf]
        %v4725 = vld [vmem:[#allocation11 + $0xd8] sm:$0xf]
        %v4726 = vld [vmem:[#allocation11 + $0xdc] sm:$0xf]
        %v4727 = vld [vmem:[#allocation11 + $0xe0] sm:$0xf]
        %v4728 = vld [vmem:[#allocation11 + $0xe4] sm:$0xf]
        %v4729 = vld [vmem:[#allocation11 + $0xe8] sm:$0xf]
        %v4730 = vld [vmem:[#allocation11 + $0xec] sm:$0xf]
        %v4731 = vld [vmem:[#allocation11 + $0xf0] sm:$0xf]
        %v4732 = vld [vmem:[#allocation11 + $0xf4] sm:$0xf]
        %v4733 = vld [vmem:[#allocation11 + $0xf8] sm:$0xf]
        %v4734 = vld [vmem:[#allocation11 + $0xfc] sm:$0xf]
        %v4735 = vld [vmem:[#allocation11 + $0x100] sm:$0xf]
        %v4736 = vld [vmem:[#allocation11 + $0x104] sm:$0xf]
        %v4737 = vld [vmem:[#allocation11 + $0x108] sm:$0xf]
        %v4738 = vld [vmem:[#allocation11 + $0x10c] sm:$0xf]
        %v4739 = vld [vmem:[#allocation11 + $0x110] sm:$0xf]
        %v4740 = vld [vmem:[#allocation11 + $0x114] sm:$0xf]
        %v4741 = vld [vmem:[#allocation11 + $0x118] sm:$0xf]
        %v4742 = vld [vmem:[#allocation11 + $0x11c] sm:$0xf]
        %v4743 = vld [vmem:[#allocation11 + $0x120] sm:$0xf]
        %v4744 = vld [vmem:[#allocation11 + $0x124] sm:$0xf]
        %v4745 = vld [vmem:[#allocation11 + $0x128] sm:$0xf]
        %v4746 = vld [vmem:[#allocation11 + $0x12c] sm:$0xf]
        %v4747 = vld [vmem:[#allocation11 + $0x130] sm:$0xf]
        %v4748 = vld [vmem:[#allocation11 + $0x134] sm:$0xf]
        %v4749 = vld [vmem:[#allocation11 + $0x138] sm:$0xf]
        %v4750 = vld [vmem:[#allocation11 + $0x13c] sm:$0xf]
        %v4751 = vld [vmem:[#allocation11 + $0x140] sm:$0xf]
        %v4752 = vld [vmem:[#allocation11 + $0x144] sm:$0xf]
        %v4753 = vld [vmem:[#allocation11 + $0x148] sm:$0xf]
        %v4754 = vld [vmem:[#allocation11 + $0x14c] sm:$0xf]
        %v4755 = vld [vmem:[#allocation11 + $0x150] sm:$0xf]
        %v4756 = vld [vmem:[#allocation11 + $0x154] sm:$0xf]
        %v4757 = vld [vmem:[#allocation11 + $0x158] sm:$0xf]
        %v4758 = vld [vmem:[#allocation11 + $0x15c] sm:$0xf]
        %v4759 = vld [vmem:[#allocation11 + $0x160] sm:$0xf]
        %v4760 = vld [vmem:[#allocation11 + $0x164] sm:$0xf]
        %v4761 = vld [vmem:[#allocation11 + $0x168] sm:$0xf]
        %v4762 = vld [vmem:[#allocation11 + $0x16c] sm:$0xf]
        %v4763 = vld [vmem:[#allocation11 + $0x170] sm:$0xf]
        %v4764 = vld [vmem:[#allocation11 + $0x174] sm:$0xf]
        %v4765 = vld [vmem:[#allocation11 + $0x178] sm:$0xf]
        %v4766 = vld [vmem:[#allocation11 + $0x17c] sm:$0xf]
        %v4767 = vld [vmem:[#allocation13] sm:$0x1]
        %v4769 = vlaneseq
        %v4770 = vshrl.u32 %v4769, 7
        %v4771 = vsub.s32 0, %v4770
        %v4772 = vrot.slane %v4767, %v4771
        %v4870 = vunpack.c.l.b16 %v4671
        %v4871 = vunpack.c.l.b16 %v4672
        %v4872 = vunpack.c.l.b16 %v4673
        %v4873 = vunpack.c.l.b16 %v4674
        %v4874 = vunpack.c.l.b16 %v4675
        %v4875 = vunpack.c.l.b16 %v4676
        %v4876 = vunpack.c.l.b16 %v4677
        %v4877 = vunpack.c.l.b16 %v4678
        %v4878 = vunpack.c.l.b16 %v4679
        %v4879 = vunpack.c.l.b16 %v4680
        %v4880 = vunpack.c.l.b16 %v4681
        %v4881 = vunpack.c.l.b16 %v4682
        %v4882 = vunpack.c.l.b16 %v4683
        %v4883 = vunpack.c.l.b16 %v4684
        %v4884 = vunpack.c.l.b16 %v4685
        %v4885 = vunpack.c.l.b16 %v4686
        %v4886 = vunpack.c.l.b16 %v4687
        %v4887 = vunpack.c.l.b16 %v4688
        %v4888 = vunpack.c.l.b16 %v4689
        %v4889 = vunpack.c.l.b16 %v4690
        %v4890 = vunpack.c.l.b16 %v4691
        %v4891 = vunpack.c.l.b16 %v4692
        %v4892 = vunpack.c.l.b16 %v4693
        %v4893 = vunpack.c.l.b16 %v4694
        %v4894 = vunpack.c.l.b16 %v4695
        %v4895 = vunpack.c.l.b16 %v4696
        %v4896 = vunpack.c.l.b16 %v4697
        %v4897 = vunpack.c.l.b16 %v4698
        %v4898 = vunpack.c.l.b16 %v4699
        %v4899 = vunpack.c.l.b16 %v4700
        %v4900 = vunpack.c.l.b16 %v4701
        %v4901 = vunpack.c.l.b16 %v4702
        %v4902 = vunpack.c.l.b16 %v4703
        %v4903 = vunpack.c.l.b16 %v4704
        %v4904 = vunpack.c.l.b16 %v4705
        %v4905 = vunpack.c.l.b16 %v4706
        %v4906 = vunpack.c.l.b16 %v4707
        %v4907 = vunpack.c.l.b16 %v4708
        %v4908 = vunpack.c.l.b16 %v4709
        %v4909 = vunpack.c.l.b16 %v4710
        %v4910 = vunpack.c.l.b16 %v4711
        %v4911 = vunpack.c.l.b16 %v4712
        %v4912 = vunpack.c.l.b16 %v4713
        %v4913 = vunpack.c.l.b16 %v4714
        %v4914 = vunpack.c.l.b16 %v4715
        %v4915 = vunpack.c.l.b16 %v4716
        %v4916 = vunpack.c.l.b16 %v4717
        %v4917 = vunpack.c.l.b16 %v4718
        %v4918 = vunpack.c.l.b16 %v4719
        %v4919 = vunpack.c.l.b16 %v4720
        %v4920 = vunpack.c.l.b16 %v4721
        %v4921 = vunpack.c.l.b16 %v4722
        %v4922 = vunpack.c.l.b16 %v4723
        %v4923 = vunpack.c.l.b16 %v4724
        %v4924 = vunpack.c.l.b16 %v4725
        %v4925 = vunpack.c.l.b16 %v4726
        %v4926 = vunpack.c.l.b16 %v4727
        %v4927 = vunpack.c.l.b16 %v4728
        %v4928 = vunpack.c.l.b16 %v4729
        %v4929 = vunpack.c.l.b16 %v4730
        %v4930 = vunpack.c.l.b16 %v4731
        %v4931 = vunpack.c.l.b16 %v4732
        %v4932 = vunpack.c.l.b16 %v4733
        %v4933 = vunpack.c.l.b16 %v4734
        %v4934 = vunpack.c.l.b16 %v4735
        %v4935 = vunpack.c.l.b16 %v4736
        %v4936 = vunpack.c.l.b16 %v4737
        %v4937 = vunpack.c.l.b16 %v4738
        %v4938 = vunpack.c.l.b16 %v4739
        %v4939 = vunpack.c.l.b16 %v4740
        %v4940 = vunpack.c.l.b16 %v4741
        %v4941 = vunpack.c.l.b16 %v4742
        %v4942 = vunpack.c.l.b16 %v4743
        %v4943 = vunpack.c.l.b16 %v4744
        %v4944 = vunpack.c.l.b16 %v4745
        %v4945 = vunpack.c.l.b16 %v4746
        %v4946 = vunpack.c.l.b16 %v4747
        %v4947 = vunpack.c.l.b16 %v4748
        %v4948 = vunpack.c.l.b16 %v4749
        %v4949 = vunpack.c.l.b16 %v4750
        %v4950 = vunpack.c.l.b16 %v4751
        %v4951 = vunpack.c.l.b16 %v4752
        %v4952 = vunpack.c.l.b16 %v4753
        %v4953 = vunpack.c.l.b16 %v4754
        %v4954 = vunpack.c.l.b16 %v4755
        %v4955 = vunpack.c.l.b16 %v4756
        %v4956 = vunpack.c.l.b16 %v4757
        %v4957 = vunpack.c.l.b16 %v4758
        %v4958 = vunpack.c.l.b16 %v4759
        %v4959 = vunpack.c.l.b16 %v4760
        %v4960 = vunpack.c.l.b16 %v4761
        %v4961 = vunpack.c.l.b16 %v4762
        %v4962 = vunpack.c.l.b16 %v4763
        %v4963 = vunpack.c.l.b16 %v4764
        %v4964 = vunpack.c.l.b16 %v4765
        %v4965 = vunpack.c.l.b16 %v4766
        %v4966 = vpack.c.b16 %v4871, %v4870
        %v4967 = vpack.c.b16 %v4873, %v4872
        %v4968 = vpack.c.b16 %v4875, %v4874
        %v4969 = vpack.c.b16 %v4877, %v4876
        %v4970 = vpack.c.b16 %v4879, %v4878
        %v4971 = vpack.c.b16 %v4881, %v4880
        %v4972 = vpack.c.b16 %v4883, %v4882
        %v4973 = vpack.c.b16 %v4885, %v4884
        %v4974 = vpack.c.b16 %v4887, %v4886
        %v4975 = vpack.c.b16 %v4889, %v4888
        %v4976 = vpack.c.b16 %v4891, %v4890
        %v4977 = vpack.c.b16 %v4893, %v4892
        %v4978 = vpack.c.b16 %v4895, %v4894
        %v4979 = vpack.c.b16 %v4897, %v4896
        %v4980 = vpack.c.b16 %v4899, %v4898
        %v4981 = vpack.c.b16 %v4901, %v4900
        %v4982 = vpack.c.b16 %v4903, %v4902
        %v4983 = vpack.c.b16 %v4905, %v4904
        %v4984 = vpack.c.b16 %v4907, %v4906
        %v4985 = vpack.c.b16 %v4909, %v4908
        %v4986 = vpack.c.b16 %v4911, %v4910
        %v4987 = vpack.c.b16 %v4913, %v4912
        %v4988 = vpack.c.b16 %v4915, %v4914
        %v4989 = vpack.c.b16 %v4917, %v4916
        %v4990 = vpack.c.b16 %v4919, %v4918
        %v4991 = vpack.c.b16 %v4921, %v4920
        %v4992 = vpack.c.b16 %v4923, %v4922
        %v4993 = vpack.c.b16 %v4925, %v4924
        %v4994 = vpack.c.b16 %v4927, %v4926
        %v4995 = vpack.c.b16 %v4929, %v4928
        %v4996 = vpack.c.b16 %v4931, %v4930
        %v4997 = vpack.c.b16 %v4933, %v4932
        %v4998 = vpack.c.b16 %v4935, %v4934
        %v4999 = vpack.c.b16 %v4937, %v4936
        %v5000 = vpack.c.b16 %v4939, %v4938
        %v5001 = vpack.c.b16 %v4941, %v4940
        %v5002 = vpack.c.b16 %v4943, %v4942
        %v5003 = vpack.c.b16 %v4945, %v4944
        %v5004 = vpack.c.b16 %v4947, %v4946
        %v5005 = vpack.c.b16 %v4949, %v4948
        %v5006 = vpack.c.b16 %v4951, %v4950
        %v5007 = vpack.c.b16 %v4953, %v4952
        %v5008 = vpack.c.b16 %v4955, %v4954
        %v5009 = vpack.c.b16 %v4957, %v4956
        %v5010 = vpack.c.b16 %v4959, %v4958
        %v5011 = vpack.c.b16 %v4961, %v4960
        %v5012 = vpack.c.b16 %v4963, %v4962
        %v5013 = vpack.c.b16 %v4965, %v4964
        %5062 = vmatprep.subr.bf16.mxu0 0
        %5063 = vmatpush1.bf16.msra.mxu0 %v4973
        %5064 = vmatprep.subr.bf16.mxu0 0
        %5065 = vmatpush1.bf16.msra.mxu0 %v4972
        %5066 = vmatprep.subr.bf16.mxu0 0
        %5067 = vmatpush1.bf16.msra.mxu0 %v4971
        %5068 = vmatprep.subr.bf16.mxu0 0
        %5069 = vmatpush1.bf16.msra.mxu0 %v4970
        %5070 = vmatprep.subr.bf16.mxu0 0
        %5071 = vmatpush1.bf16.msra.mxu0 %v4969
        %5072 = vmatprep.subr.bf16.mxu0 0
        %5073 = vmatpush1.bf16.msra.mxu0 %v4968
        %5074 = vmatprep.subr.bf16.mxu0 0
        %5075 = vmatpush1.bf16.msra.mxu0 %v4967
        %5076 = vmatprep.subr.bf16.mxu0 0
        %5077 = vmatpush1.bf16.msra.mxu0 %v4966
        %5078 = vmatprep.subr.bf16.mxu0 0
        %5079 = vmatpush2.bf16.msra.mxu0 %v4981
        %5080 = vmatprep.subr.bf16.mxu0 0
        %5081 = vmatpush2.bf16.msra.mxu0 %v4980
        %5082 = vmatprep.subr.bf16.mxu0 0
        %5083 = vmatpush2.bf16.msra.mxu0 %v4979
        %5084 = vmatprep.subr.bf16.mxu0 0
        %5085 = vmatpush2.bf16.msra.mxu0 %v4978
        %5086 = vmatprep.subr.bf16.mxu0 0
        %5087 = vmatpush2.bf16.msra.mxu0 %v4977
        %5088 = vmatprep.subr.bf16.mxu0 0
        %5089 = vmatpush2.bf16.msra.mxu0 %v4976
        %5090 = vmatprep.subr.bf16.mxu0 0
        %5091 = vmatpush2.bf16.msra.mxu0 %v4975
        %5092 = vmatprep.subr.bf16.mxu0 0
        %5093 = vmatpush2.bf16.msra.mxu0 %v4974
        %5094 = vmatprep.mubr.bf16.mxu0 %v4666
        %5095 = vmatmul.mubr.bf16.gmra.mxu0 %v4665
        %v5096 = vpop.f32.mrf.mxu0
        %v5097 = vadd.f32 %v4772, %v5096
        %v5098 = vpop.f32.mrf.mxu0
        %v5099 = vpop.f32.mrf.mxu0
        %v5100 = vpop.f32.mrf.mxu0
        %5101 = vdwg.mxu0
        %5102 = vmatprep.subr.bf16.mxu0 0
        %5103 = vmatpush1.bf16.msra.mxu0 %v4989
        %5104 = vmatprep.subr.bf16.mxu0 0
        %5105 = vmatpush1.bf16.msra.mxu0 %v4988
        %5106 = vmatprep.subr.bf16.mxu0 0
        %5107 = vmatpush1.bf16.msra.mxu0 %v4987
        %5108 = vmatprep.subr.bf16.mxu0 0
        %5109 = vmatpush1.bf16.msra.mxu0 %v4986
        %5110 = vmatprep.subr.bf16.mxu0 0
        %5111 = vmatpush1.bf16.msra.mxu0 %v4985
        %5112 = vmatprep.subr.bf16.mxu0 0
        %5113 = vmatpush1.bf16.msra.mxu0 %v4984
        %5114 = vmatprep.subr.bf16.mxu0 0
        %5115 = vmatpush1.bf16.msra.mxu0 %v4983
        %5116 = vmatprep.subr.bf16.mxu0 0
        %5117 = vmatpush1.bf16.msra.mxu0 %v4982
        %5118 = vmatprep.subr.bf16.mxu0 0
        %5119 = vmatpush2.bf16.msra.mxu0 %v4997
        %5120 = vmatprep.subr.bf16.mxu0 0
        %5121 = vmatpush2.bf16.msra.mxu0 %v4996
        %5122 = vmatprep.subr.bf16.mxu0 0
        %5123 = vmatpush2.bf16.msra.mxu0 %v4995
        %5124 = vmatprep.subr.bf16.mxu0 0
        %5125 = vmatpush2.bf16.msra.mxu0 %v4994
        %5126 = vmatprep.subr.bf16.mxu0 0
        %5127 = vmatpush2.bf16.msra.mxu0 %v4993
        %5128 = vmatprep.subr.bf16.mxu0 0
        %5129 = vmatpush2.bf16.msra.mxu0 %v4992
        %5130 = vmatprep.subr.bf16.mxu0 0
        %5131 = vmatpush2.bf16.msra.mxu0 %v4991
        %5132 = vmatprep.subr.bf16.mxu0 0
        %5133 = vmatpush2.bf16.msra.mxu0 %v4990
        %5134 = vmatprep.mubr.bf16.mxu0 %v4668
        %5135 = vmatmul.mubr.bf16.gmra.mxu0 %v4667
        %v5136 = vpop.f32.mrf.mxu0
        %v5137 = vadd.f32 %v5097, %v5136
        %v5138 = vpop.f32.mrf.mxu0
        %v5139 = vpop.f32.mrf.mxu0
        %v5140 = vpop.f32.mrf.mxu0
        %5141 = vdwg.mxu0
        %5142 = vmatprep.subr.bf16.mxu0 0
        %5143 = vmatpush1.bf16.msra.mxu0 %v5005
        %5144 = vmatprep.subr.bf16.mxu0 0
        %5145 = vmatpush1.bf16.msra.mxu0 %v5004
        %5146 = vmatprep.subr.bf16.mxu0 0
        %5147 = vmatpush1.bf16.msra.mxu0 %v5003
        %5148 = vmatprep.subr.bf16.mxu0 0
        %5149 = vmatpush1.bf16.msra.mxu0 %v5002
        %5150 = vmatprep.subr.bf16.mxu0 0
        %5151 = vmatpush1.bf16.msra.mxu0 %v5001
        %5152 = vmatprep.subr.bf16.mxu0 0
        %5153 = vmatpush1.bf16.msra.mxu0 %v5000
        %5154 = vmatprep.subr.bf16.mxu0 0
        %5155 = vmatpush1.bf16.msra.mxu0 %v4999
        %5156 = vmatprep.subr.bf16.mxu0 0
        %5157 = vmatpush1.bf16.msra.mxu0 %v4998
        %5158 = vmatprep.subr.bf16.mxu0 0
        %5159 = vmatpush2.bf16.msra.mxu0 %v5013
        %5160 = vmatprep.subr.bf16.mxu0 0
        %5161 = vmatpush2.bf16.msra.mxu0 %v5012
        %5162 = vmatprep.subr.bf16.mxu0 0
        %5163 = vmatpush2.bf16.msra.mxu0 %v5011
        %5164 = vmatprep.subr.bf16.mxu0 0
        %5165 = vmatpush2.bf16.msra.mxu0 %v5010
        %5166 = vmatprep.subr.bf16.mxu0 0
        %5167 = vmatpush2.bf16.msra.mxu0 %v5009
        %5168 = vmatprep.subr.bf16.mxu0 0
        %5169 = vmatpush2.bf16.msra.mxu0 %v5008
        %5170 = vmatprep.subr.bf16.mxu0 0
        %5171 = vmatpush2.bf16.msra.mxu0 %v5007
        %5172 = vmatprep.subr.bf16.mxu0 0
        %5173 = vmatpush2.bf16.msra.mxu0 %v5006
        %5174 = vmatprep.mubr.bf16.mxu0 %v4670
        %5175 = vmatmul.mubr.bf16.gmra.mxu0 %v4669
        %v5176 = vpop.f32.mrf.mxu0
        %v5177 = vadd.f32 %v5137, %v5176
        %v5178 = vpop.f32.mrf.mxu0
        %v5179 = vpop.f32.mrf.mxu0
        %v5180 = vpop.f32.mrf.mxu0
        %5181 = vdwg.mxu0
        %v5182 = vpack.c.bf16 %v5177, %v5177
        %5183 = vst [vmem:[%s375] sm:$0xf] %v5182
        %s5184 = sand.u32 %s187, 1
        %s5185 = scalar_lea.sflag [#allocation4], %s5184
        %s5186 = sand.u32 %s187, 1
        %s5187 = smul.addr %s5186, 4
        %s5188 = scalar_lea.vmem [#allocation14], %s5187
        // Predicated region
        $region77: #{tpu_custom_call.1} parent=47 // pred_check
          %p5189 = pneg %p197
        $region78: #{tpu_custom_call.1} parent=47 // pred_check_branch
          %5191 = sbr.rel (%p5189) target = $region80
        $region79: #{tpu_custom_call.1} parent=47 // pred_region
          %s5193 = ssub.s32 64, 64
          %5194 = vsyncadd %s5185, %s5193
          %s5195 = smul.addr %s27, 64
          %s5196 = scalar_lea.hbm %s7, %s5195
          %s5198 = sshll.u32 %s5188, 4
          %s5199 = int_to_ptr.vmem [resolvable:$true] %s5198
          %5201 = dma.vmem_to_hbm [thread:$0]  %s5199, 64, %s5196, %s5185
        $region80: #{tpu_custom_call.1} parent=47 // pred_fallthru
          _
      $region48: #{tpu_custom_call.1} parent=5 // pred_fallthru
        _
      %p5202 = scmp.le.s32.totalorder 2, %s22
      // Predicated region
      $region81: #{tpu_custom_call.1} parent=5 // pred_check
        %p5203 = pneg %p5202
      $region82: #{tpu_custom_call.1} parent=5 // pred_check_branch
        %5205 = sbr.rel (%p5203) target = $region84
      $region83: #{tpu_custom_call.1} parent=5 // pred_region
        %s5206 = ssub.s32 %s22, 2
        // Predicated region
        $region85: #{tpu_custom_call.1} parent=83 // pred_check
          %p5207 = pneg %p203
        $region86: #{tpu_custom_call.1} parent=83 // pred_check_branch
          %5209 = sbr.rel (%p5207) target = $region88
        $region87: #{tpu_custom_call.1} parent=83 // pred_region
          %s5210 = sand.u32 %s188, 1
          %s5211 = scalar_lea.sflag [#allocation4], %s5210
          %s5212 = sand.u32 %s188, 1
          %s5213 = smul.addr %s5212, 4
          %s5214 = scalar_lea.vmem [#allocation14], %s5213
          %5215 = dma.done %s5211, 64
        $region88: #{tpu_custom_call.1} parent=83 // pred_fallthru
          _
      $region84: #{tpu_custom_call.1} parent=5 // pred_fallthru
        _
    $region6: #{tpu_custom_call.1} parent=1 // loop_footer
      %s26 = sadd.s32 1, %s22
    $region7: #{tpu_custom_call.1} parent=1 // loop_footer_branch
      %21 = sbr.rel target = $region3
    $region8: #{tpu_custom_call.1} parent=1 // loop_exit
      _
    %5216 = vsyncpa [#allocation3], 1
    %s5217 = scalar_lea.sflag [#allocation3], 1
    %5218 = vsyncpa %s5217, 1
    %5219 = vsyncpa [#allocation6], 1
    %5220 = vsyncpa [#allocation9], 1
    %5221 = vsyncpa [#allocation12], 1
    %5222 = vsyncpa [#allocation4], 1
    %s5223 = scalar_lea.sflag [#allocation4], 1
    %5224 = vsyncpa %s5223, 1

</llo_original>
